<compile_context>
chip_gen: v7x
topology: tpu7x:2x2x1
jax: 0.10.0
libtpu: 0.0.40
codegen_flags: <defaults>
</compile_context>

<pallas_src>
import math

import jax
import jax.numpy as jnp
from jax import lax
from jax.experimental import pallas as pl
from jax.experimental.pallas import tpu as pltpu


def _round_up(x, m):
    return ((x + m - 1) // m) * m


def _pick_tt(T, max_tt):
    """Largest T-tile that divides T, is a multiple of 8 (BlockSpec constraint),
    fits max_tt, and (if possible) leaves >= 2 tiles for megacore sharding."""
    cands = [d for d in range(8, min(T, max_tt) + 1, 8) if T % d == 0]
    if cands:
        multi = [d for d in cands if T // d >= 2]
        return max(multi) if multi else max(cands)
    return T  # tiny / odd T: full axis is always a legal block


def _pick_tv(V, max_tv):
    if V <= max_tv:
        return V
    cands = [d for d in range(128, max_tv + 1, 128) if V % d == 0]
    return max(cands) if cands else V


# ----------------------------------------------------------------------------- kernel

def _make_decoder_kernel(B, Ep, Hp, TT, TV, num_layers, model_type, matmul_dtype,
                         gather_inflight=8):
    """Kernel factory closed over the static (padded) config.

    Ref order: captions(B,T)i32 [SMEM prefetch], features(B,Ep), emb(V,Ep)[HBM],
               per layer l: w_ih_T(in_l,G*Hp), w_hh_T(Hp,G*Hp), b(1,G*Hp),
               fc_w_T(Hp,TV), fc_b(1,TV), out(B,TT,TV),
               scratch: x(B*TT,Ep), g0(B,TT,G*Hp), h(L,TT,Hp), c(L,TT,Hp),
                        hout(B,TT,Hp), gather DMA sem
    """
    is_rnn = (model_type == 'RNN')
    G = 1 if is_rnn else 4
    GH = G * Hp
    L = num_layers
    cdt = matmul_dtype

    def kernel(*refs):
        idx = 0
        cap_ref = refs[idx]; idx += 1          # (B, T) int32 in SMEM
        feat_ref = refs[idx]; idx += 1         # (B, Ep)  cdt
        emb_ref = refs[idx]; idx += 1          # (V, Ep)  cdt, lives in HBM (pl.ANY)
        w_ih_r, w_hh_r, b_r = [], [], []
        for _ in range(L):
            w_ih_r.append(refs[idx]); w_hh_r.append(refs[idx + 1]); b_r.append(refs[idx + 2])
            idx += 3
        fcw_ref = refs[idx]; idx += 1          # (Hp, TV)  cdt
        fcb_ref = refs[idx]; idx += 1          # (1, TV)   f32
        out_ref = refs[idx]; idx += 1          # (B, TT, TV)
        x_sc = refs[idx]; idx += 1             # (B*TT, Ep)   cdt
        g0_sc = refs[idx]; idx += 1            # (B, TT, GH)  f32
        h_st = refs[idx]; idx += 1             # (L, TT, Hp)  f32
        c_st = refs[idx]; idx += 1             # (L, TT, Hp)  f32 (unused for RNN)
        hout_sc = refs[idx]; idx += 1          # (B, TT, Hp)  cdt
        gsem = refs[idx]                       # DMA semaphore for the gather

        ti = pl.program_id(0)                  # T-tile (independent rows -> parallel)
        vj = pl.program_id(1)                  # V-tile of the FC (recurrence at vj==0 only)

        @pl.when(vj == 0)
        def _recurrence():
            # ---- embedding gather: per-row HBM->VMEM DMAs, pipelined, loops not unrolled
            def _wait_one():
                pltpu.make_async_copy(emb_ref.at[pl.ds(0, 1), :],
                                      x_sc.at[pl.ds(0, 1), :], gsem).wait()

            for b in range(B):                 # B is the recurrence length; tiny & static
                base = b * TT

                def _issue(k, _b=b, _base=base):
                    jm1 = jnp.maximum(ti * TT + k - 1, 0)   # clamp; row 0 overwritten below
                    tok = cap_ref[_b, jm1]
                    pltpu.make_async_copy(emb_ref.at[pl.ds(tok, 1), :],
                                          x_sc.at[pl.ds(_base + k, 1), :], gsem).start()

                nif = min(gather_inflight, TT)

                @pl.loop(0, nif)
                def _(k):
                    _issue(k)

                if nif < TT:
                    @pl.loop(nif, TT)
                    def _(k):
                        _wait_one()
                        _issue(k)

                @pl.loop(0, nif)
                def _(k):
                    _wait_one()

            @pl.when(ti == 0)
            def _():
                for b in range(B):
                    x_sc[b * TT, :] = feat_ref[b, :]        # x[b, 0] = features[b]

            # ---- hoisted layer-0 input projection: one big MXU matmul for all steps ---
            g0 = jnp.dot(x_sc[...].astype(cdt), w_ih_r[0][...],
                         preferred_element_type=jnp.float32) + b_r[0][...]
            g0_sc[...] = g0.reshape(B, TT, GH)

            h_st[...] = jnp.zeros_like(h_st)
            if not is_rnn:
                c_st[...] = jnp.zeros_like(c_st)

            def cell(gates, l):
                if is_rnn:
                    return jnp.tanh(gates)
                # PyTorch LSTM gate order i, f, g, o; Hp-aligned -> free lane views.
                i_g = jax.nn.sigmoid(gates[:, 0 * Hp:1 * Hp])
                f_g = jax.nn.sigmoid(gates[:, 1 * Hp:2 * Hp])
                g_g = jnp.tanh(gates[:, 2 * Hp:3 * Hp])
                o_g = jax.nn.sigmoid(gates[:, 3 * Hp:4 * Hp])
                c_new = f_g * c_st[l] + i_g * g_g
                c_st[l, :, :] = c_new
                return o_g * jnp.tanh(c_new)

            def step(b, carry):
                # layer 0: input gates precomputed; only h @ W_hh is sequential.
                # Weights are read straight from their refs (no hoisted value lists
                # that could pin vregs / spill for large G*H).
                gates = g0_sc[b] + jnp.dot(h_st[0].astype(cdt), w_hh_r[0][...],
                                           preferred_element_type=jnp.float32)
                h_new = cell(gates, 0)
                h_st[0, :, :] = h_new
                inp = h_new
                for l in range(1, L):
                    gates = (jnp.dot(inp.astype(cdt), w_ih_r[l][...],
                                     preferred_element_type=jnp.float32)
                             + jnp.dot(h_st[l].astype(cdt), w_hh_r[l][...],
                                       preferred_element_type=jnp.float32)
                             + b_r[l][...])
                    h_new = cell(gates, l)
                    h_st[l, :, :] = h_new
                    inp = h_new
                hout_sc[b, :, :] = inp.astype(cdt)   # cast once; reused by every V-tile
                return carry

            lax.fori_loop(0, B, step, 0, unroll=(B <= 8))

        # ---- FC over this V-tile: one big matmul + one lane-dense contiguous store ----
        h2d = hout_sc[...].reshape(B * TT, Hp)
        logits = jnp.dot(h2d, fcw_ref[...], preferred_element_type=jnp.float32) + fcb_ref[...]
        out_ref[...] = logits.reshape(B, TT, TV).astype(out_ref.dtype)

    return kernel


# ----------------------------------------------------------------------------- wrapper

def decoder_forward(features, captions, params, *, model_type, num_layers,
                    hidden_size, vocab_size, matmul_dtype=jnp.bfloat16,
                    out_dtype=jnp.float32, t_tile=None, v_tile=None,
                    single_buffer_consts=False, gather_inflight=8):
    B, E = features.shape
    _, T = captions.shape
    H, V = hidden_size, vocab_size
    G = 1 if model_type == 'RNN' else 4
    L = num_layers
    cdt = matmul_dtype

    # Lane-pad E / H (and the gate layout) to multiples of 128: gate slices and row
    # stores become full-lane; padding is exact (padded lanes stay 0 end-to-end).
    Ep = _round_up(E, 128)
    Hp = _round_up(H, 128)
    GHp = G * Hp

    # ---- generation-aware VMEM budget & tile defaults ------------------------------
    try:
        vmem_cap = int(pltpu.get_tpu_info().vmem_capacity_bytes)
    except Exception:
        vmem_cap = 64 << 20                     # conservative (v7x per-TC) fallback
    max_tt = 512 if vmem_cap >= (96 << 20) else 256
    max_tv = 2048

    TT = _pick_tt(T, max_tt) if t_tile is None else t_tile
    TV = _pick_tv(V, max_tv) if v_tile is None else v_tile
    assert T % TT == 0 and V % TV == 0, "tile sizes must divide (T, V)"

    # ---- pack & pad parameters (wrapper-side glue) ----------------------------------
    def _gate_pack_w(w, D, Dp):
        # PyTorch (G*H, D) -> transposed, per-gate Hp-padded (Dp, G*Hp)
        blks = []
        for g in range(G):
            blk = w[g * H:(g + 1) * H, :].T                        # (D, H)
            blks.append(jnp.pad(blk, ((0, Dp - D), (0, Hp - H))))
        return jnp.concatenate(blks, axis=1).astype(cdt)

    def _gate_pack_b(b_ih, b_hh):
        bsum = b_ih + b_hh                                         # pre-summed bias
        blks = [jnp.pad(bsum[g * H:(g + 1) * H], (0, Hp - H)) for g in range(G)]
        return jnp.concatenate(blks).reshape(1, GHp).astype(jnp.float32)

    emb_p = jnp.pad(params['emb'], ((0, 0), (0, Ep - E))).astype(cdt)    # (V, Ep), HBM
    feat_p = jnp.pad(features, ((0, 0), (0, Ep - E))).astype(cdt)        # (B, Ep)

    args = [captions.astype(jnp.int32), feat_p, emb_p]
    for l in range(L):
        w_ih, w_hh, b_ih, b_hh = params['layers'][l]
        D, Dp = (E, Ep) if l == 0 else (H, Hp)
        args += [_gate_pack_w(w_ih, D, Dp), _gate_pack_w(w_hh, H, Hp),
                 _gate_pack_b(b_ih, b_hh)]
    args += [jnp.pad(params['fc_w'].T, ((0, Hp - H), (0, 0))).astype(cdt),   # (Hp, V)
             params['fc_b'].reshape(1, V).astype(jnp.float32)]

    # ---- specs -----------------------------------------------------------------------
    const_kwargs = {}
    if single_buffer_consts:
        # opt-in: constant-index blocks don't need double-buffering (v7x VMEM headroom)
        const_kwargs = dict(pipeline_mode=pl.Buffered(1))

    def _const(*block):      # non-tiled block, resident across the grid
        return pl.BlockSpec(block, lambda ti, vj, cap: (0,) * len(block), **const_kwargs)

    in_specs = [_const(B, Ep),
                pl.BlockSpec(memory_space=pl.ANY)]     # emb stays in HBM; DMA-gathered
    for l in range(L):
        in_dim = Ep if l == 0 else Hp
        in_specs += [_const(in_dim, GHp), _const(Hp, GHp), _const(1, GHp)]
    in_specs += [pl.BlockSpec((Hp, TV), lambda ti, vj, cap: (0, vj)),    # fc_w_T tile
                 pl.BlockSpec((1, TV), lambda ti, vj, cap: (0, vj))]     # fc_b tile
    out_specs = pl.BlockSpec((B, TT, TV), lambda ti, vj, cap: (0, ti, vj))

    scratch_shapes = [
        pltpu.VMEM((B * TT, Ep), cdt),          # x : features + DMA-gathered embeddings
        pltpu.VMEM((B, TT, GHp), jnp.float32),  # hoisted layer-0 input gates
        pltpu.VMEM((L, TT, Hp), jnp.float32),   # h state per layer
        pltpu.VMEM((L, TT, Hp), jnp.float32),   # c state per layer (unused for RNN)
        pltpu.VMEM((B, TT, Hp), cdt),           # h[-1] per step -> feeds the FC matmul
        pltpu.SemaphoreType.DMA,                # gather completion semaphore
    ]

    # ---- footprint-derived scoped-VMEM limit (per-generation, no hard 64 MiB cap) ----
    def nbytes(shape, dt):
        return math.prod(shape) * jnp.dtype(dt).itemsize
    streamed = (nbytes((Hp, TV), cdt) + nbytes((1, TV), jnp.float32)
                + nbytes((B, TT, TV), out_dtype))
    consts = (nbytes((B, Ep), cdt)
              + sum(nbytes((Ep if l == 0 else Hp, GHp), cdt) + nbytes((Hp, GHp), cdt)
                    + nbytes((1, GHp), jnp.float32) for l in range(L)))
    scratch = (nbytes((B * TT, Ep), cdt) + nbytes((B, TT, GHp), jnp.float32)
               + 2 * nbytes((L, TT, Hp), jnp.float32) + nbytes((B, TT, Hp), cdt))
    const_bufs = 1 if single_buffer_consts else 2
    need = 2 * streamed + const_bufs * consts + scratch + (4 << 20)
    vmem_limit = int(min(max(need, 32 << 20), int(0.85 * vmem_cap)))

    kernel = _make_decoder_kernel(B, Ep, Hp, TT, TV, L, model_type, cdt,
                                  gather_inflight=gather_inflight)

    grid_spec = pltpu.PrefetchScalarGridSpec(
        num_scalar_prefetch=1,                 # captions -> SMEM, drives the DMA gather
        grid=(T // TT, V // TV),
        in_specs=in_specs,
        out_specs=out_specs,
        scratch_shapes=scratch_shapes,
    )

    return pl.pallas_call(
        kernel,
        out_shape=jax.ShapeDtypeStruct((B, T, V), out_dtype),
        grid_spec=grid_spec,
        compiler_params=pltpu.CompilerParams(
            dimension_semantics=("parallel", "arbitrary"),
            vmem_limit_bytes=vmem_limit,
        ),
    )(*args)


# ----------------------------------------------------------------------------- params & reference

def init_params(key, hidden_size, embedding_size, vocab_size, num_layers, model_type):
    G = 1 if model_type == 'RNN' else 4
    H, E, V = hidden_size, embedding_size, vocab_size
    keys = iter(jax.random.split(key, 3 + 4 * num_layers))
    scale = 1.0 / float(H) ** 0.5
    params = {'emb': jax.random.normal(next(keys), (V, E), jnp.float32), 'layers': []}
    for l in range(num_layers):
        in_dim = E if l == 0 else H
        w_ih = jax.random.uniform(next(keys), (G * H, in_dim), jnp.float32, -scale, scale)
        w_hh = jax.random.uniform(next(keys), (G * H, H), jnp.float32, -scale, scale)
        b_ih = jax.random.uniform(next(keys), (G * H,), jnp.float32, -scale, scale)
        b_hh = jnp.zeros((G * H,), jnp.float32)
        params['layers'].append((w_ih, w_hh, b_ih, b_hh))
    params['fc_w'] = jax.random.uniform(next(keys), (V, H), jnp.float32, -scale, scale)
    params['fc_b'] = jax.random.uniform(next(keys), (V,), jnp.float32, -scale, scale)
    return params


def decoder_reference(features, captions, params, model_type, num_layers, H,
                      matmul_dtype=jnp.float32):
    """Pure-JAX replica of the PyTorch forward (same gate order / axis conventions),
    with matmul operands cast like the kernel (f32 accumulation)."""
    md = matmul_dtype

    def mm(a, b):
        return jnp.dot(a.astype(md), b.astype(md), preferred_element_type=jnp.float32)

    emb = params['emb'][captions]                                          # (B, T, E)
    x = jnp.concatenate([features[:, None, :], emb[:, :-1, :]], axis=1)    # (B, T, E)
    B, T, _ = x.shape
    h = [jnp.zeros((T, H), jnp.float32) for _ in range(num_layers)]
    c = [jnp.zeros((T, H), jnp.float32) for _ in range(num_layers)]
    outs = []
    for t in range(B):
        inp = x[t]
        for l in range(num_layers):
            w_ih, w_hh, b_ih, b_hh = params['layers'][l]
            gates = mm(inp, w_ih.T) + mm(h[l], w_hh.T) + b_ih + b_hh
            if model_type == 'RNN':
                h[l] = jnp.tanh(gates)
            else:
                i_g = jax.nn.sigmoid(gates[:, 0 * H:1 * H])
                f_g = jax.nn.sigmoid(gates[:, 1 * H:2 * H])
                g_g = jnp.tanh(gates[:, 2 * H:3 * H])
                o_g = jax.nn.sigmoid(gates[:, 3 * H:4 * H])
                c[l] = f_g * c[l] + i_g * g_g
                h[l] = o_g * jnp.tanh(c[l])
            inp = h[l]
        outs.append(mm(h[-1], params['fc_w'].T) + params['fc_b'])
    return jnp.stack(outs, axis=0)


# ----------------------------------------------------------------------------- main

if __name__ == "__main__":
    B, T = 2, 8
    hidden_size, embedding_size, vocab_size, num_layers = 32, 16, 32, 2

    key = jax.random.PRNGKey(0)
    k_feat, k_cap, k_par = jax.random.split(key, 3)
    features = jax.random.normal(k_feat, (B, embedding_size), jnp.float32)
    captions = jax.random.randint(k_cap, (B, T), 0, vocab_size, jnp.int32)

    for model_type in ('LSTM', 'RNN'):
        params = init_params(k_par, hidden_size, embedding_size, vocab_size,
                             num_layers, model_type)
        # f32 matmuls: exact parity with the module semantics (padding is exact).
        # bf16 matmuls (perf path): checked against a reference using the same casts.
        for mm_dtype, tol in ((jnp.float32, 1e-4), (jnp.bfloat16, 2e-2)):
            out = decoder_forward(features, captions, params,
                                  model_type=model_type, num_layers=num_layers,
                                  hidden_size=hidden_size, vocab_size=vocab_size,
                                  matmul_dtype=mm_dtype)
            out = jax.block_until_ready(out)
            ref = decoder_reference(features, captions, params, model_type,
                                    num_layers, hidden_size, matmul_dtype=mm_dtype)
            assert out.shape == (B, T, vocab_size), out.shape
            err = float(jnp.max(jnp.abs(out - ref)))
            assert jnp.allclose(out, ref, rtol=tol, atol=tol), (
                f"{model_type}/{jnp.dtype(mm_dtype).name}: max abs err {err}")

    print("KERNEL_OK")
</pallas_src>

<mosaic_0001>
module attributes {stable_mosaic.version = 11 : i64} {
  func.func @kernel(%arg0: i32, %arg1: i32, %arg2: memref<2x8xi32, #tpu.memory_space<smem>>, %arg3: memref<2x128xf32, #tpu.memory_space<vmem>>, %arg4: memref<32x128xf32, #tpu.memory_space<any>>, %arg5: memref<128x512xf32, #tpu.memory_space<vmem>>, %arg6: memref<128x512xf32, #tpu.memory_space<vmem>>, %arg7: memref<1x512xf32, #tpu.memory_space<vmem>>, %arg8: memref<128x512xf32, #tpu.memory_space<vmem>>, %arg9: memref<128x512xf32, #tpu.memory_space<vmem>>, %arg10: memref<1x512xf32, #tpu.memory_space<vmem>>, %arg11: memref<128x32xf32, #tpu.memory_space<vmem>>, %arg12: memref<1x32xf32, #tpu.memory_space<vmem>>, %arg13: memref<2x8x32xf32, #tpu.memory_space<vmem>>, %arg14: memref<16x128xf32, #tpu.memory_space<vmem>>, %arg15: memref<2x8x512xf32, #tpu.memory_space<vmem>>, %arg16: memref<2x8x128xf32, #tpu.memory_space<vmem>>, %arg17: memref<2x8x128xf32, #tpu.memory_space<vmem>>, %arg18: memref<2x8x128xf32, #tpu.memory_space<vmem>>, %arg19: memref<!tpu.dma_semaphore, #tpu.memory_space<semaphore_mem>>) attributes {dimension_semantics = [#tpu.dimension_semantics<parallel>, #tpu.dimension_semantics<arbitrary>], iteration_bounds = array<i64: 1, 1>, scalar_prefetch = 1 : i64, scratch_operands = 6 : i64, tpu.core_type = #tpu.core_type<tc>, window_params = [{pipeline_mode = #tpu.pipeline_mode<synchronous>, transform_indices = @transform_0, window_bounds = array<i64: 2, 128>}, {}, {pipeline_mode = #tpu.pipeline_mode<synchronous>, transform_indices = @transform_2, window_bounds = array<i64: 128, 512>}, {pipeline_mode = #tpu.pipeline_mode<synchronous>, transform_indices = @transform_3, window_bounds = array<i64: 128, 512>}, {pipeline_mode = #tpu.pipeline_mode<synchronous>, transform_indices = @transform_4, window_bounds = array<i64: 1, 512>}, {pipeline_mode = #tpu.pipeline_mode<synchronous>, transform_indices = @transform_5, window_bounds = array<i64: 128, 512>}, {pipeline_mode = #tpu.pipeline_mode<synchronous>, transform_indices = @transform_6, window_bounds = array<i64: 128, 512>}, {pipeline_mode = #tpu.pipeline_mode<synchronous>, transform_indices = @transform_7, window_bounds = array<i64: 1, 512>}, {transform_indices = @transform_8, window_bounds = array<i64: 128, 32>}, {transform_indices = @transform_9, window_bounds = array<i64: 1, 32>}, {transform_indices = @transform_10, window_bounds = array<i64: 2, 8, 32>}]} {
    %c0_i32 = arith.constant 0 : i32
    %0 = arith.cmpi eq, %arg1, %c0_i32 : i32
    %1 = arith.extui %0 : i1 to i32
    %c0_i32_0 = arith.constant 0 : i32
    %2 = arith.cmpi ne, %1, %c0_i32_0 : i32
    scf.if %2 {
      %c0_i32_10 = arith.constant 0 : i32
      %c8_i32 = arith.constant 8 : i32
      %12 = arith.addi %c0_i32_10, %c8_i32 : i32
      %c1_i32 = arith.constant 1 : i32
      scf.for %arg20 = %c0_i32_10 to %12 step %c1_i32  : i32 {
        %c1_i32_133 = arith.constant 1 : i32
        %207 = arith.muli %arg20, %c1_i32_133 : i32
        %c0_i32_134 = arith.constant 0 : i32
        %208 = arith.addi %c0_i32_134, %207 : i32
        %c8_i32_135 = arith.constant 8 : i32
        %209 = arith.muli %arg0, %c8_i32_135 : i32
        %210 = arith.addi %209, %208 : i32
        %c1_i32_136 = arith.constant 1 : i32
        %211 = arith.subi %210, %c1_i32_136 : i32
        %c0_i32_137 = arith.constant 0 : i32
        %212 = arith.maxsi %211, %c0_i32_137 : i32
        %c0_138 = arith.constant 0 : index
        %213 = arith.index_cast %212 : i32 to index
        %214 = memref.load %arg2[%c0_138, %213] : memref<2x8xi32, #tpu.memory_space<smem>>
        %c0_i32_139 = arith.constant 0 : i32
        %215 = arith.addi %c0_i32_139, %208 : i32
        %c0_i32_140 = arith.constant 0 : i32
        %216 = tpu.memref_slice %arg4[%214, %c0_i32_140] : memref<32x128xf32, #tpu.memory_space<any>> -> memref<1x128xf32, #tpu.memory_space<any>>
        %c0_i32_141 = arith.constant 0 : i32
        %217 = tpu.memref_slice %arg14[%215, %c0_i32_141] : memref<16x128xf32, #tpu.memory_space<vmem>> -> memref<1x128xf32, #tpu.memory_space<vmem>>
        tpu.enqueue_dma source(%216 : memref<1x128xf32, #tpu.memory_space<any>>) target(%217 : memref<1x128xf32, #tpu.memory_space<vmem>>) target_semaphore(%arg19 : memref<!tpu.dma_semaphore, #tpu.memory_space<semaphore_mem>>)
      }
      %c8_i32_11 = arith.constant 8 : i32
      %c0_i32_12 = arith.constant 0 : i32
      %c8_i32_13 = arith.constant 8 : i32
      %13 = arith.addi %c0_i32_12, %c8_i32_13 : i32
      %c1_i32_14 = arith.constant 1 : i32
      scf.for %arg20 = %c0_i32_12 to %13 step %c1_i32_14  : i32 {
        %c0_i32_133 = arith.constant 0 : i32
        %c0_i32_134 = arith.constant 0 : i32
        %207 = tpu.memref_slice %arg4[%c0_i32_133, %c0_i32_134] : memref<32x128xf32, #tpu.memory_space<any>> -> memref<1x128xf32, #tpu.memory_space<any>>
        %c0_i32_135 = arith.constant 0 : i32
        %c0_i32_136 = arith.constant 0 : i32
        %208 = tpu.memref_slice %arg14[%c0_i32_135, %c0_i32_136] : memref<16x128xf32, #tpu.memory_space<vmem>> -> memref<1x128xf32, #tpu.memory_space<vmem>>
        tpu.wait_dma2 semaphore(%arg19 : memref<!tpu.dma_semaphore, #tpu.memory_space<semaphore_mem>>) src(%207 : memref<1x128xf32, #tpu.memory_space<any>>) dst(%208 : memref<1x128xf32, #tpu.memory_space<vmem>>)
      }
      %c0_i32_15 = arith.constant 0 : i32
      %c8_i32_16 = arith.constant 8 : i32
      %14 = arith.addi %c0_i32_15, %c8_i32_16 : i32
      %c1_i32_17 = arith.constant 1 : i32
      scf.for %arg20 = %c0_i32_15 to %14 step %c1_i32_17  : i32 {
        %c1_i32_133 = arith.constant 1 : i32
        %207 = arith.muli %arg20, %c1_i32_133 : i32
        %c0_i32_134 = arith.constant 0 : i32
        %208 = arith.addi %c0_i32_134, %207 : i32
        %c8_i32_135 = arith.constant 8 : i32
        %209 = arith.muli %arg0, %c8_i32_135 : i32
        %210 = arith.addi %209, %208 : i32
        %c1_i32_136 = arith.constant 1 : i32
        %211 = arith.subi %210, %c1_i32_136 : i32
        %c0_i32_137 = arith.constant 0 : i32
        %212 = arith.maxsi %211, %c0_i32_137 : i32
        %c1_138 = arith.constant 1 : index
        %213 = arith.index_cast %212 : i32 to index
        %214 = memref.load %arg2[%c1_138, %213] : memref<2x8xi32, #tpu.memory_space<smem>>
        %c8_i32_139 = arith.constant 8 : i32
        %215 = arith.addi %c8_i32_139, %208 : i32
        %c0_i32_140 = arith.constant 0 : i32
        %216 = tpu.memref_slice %arg4[%214, %c0_i32_140] : memref<32x128xf32, #tpu.memory_space<any>> -> memref<1x128xf32, #tpu.memory_space<any>>
        %c0_i32_141 = arith.constant 0 : i32
        %217 = tpu.memref_slice %arg14[%215, %c0_i32_141] : memref<16x128xf32, #tpu.memory_space<vmem>> -> memref<1x128xf32, #tpu.memory_space<vmem>>
        tpu.enqueue_dma source(%216 : memref<1x128xf32, #tpu.memory_space<any>>) target(%217 : memref<1x128xf32, #tpu.memory_space<vmem>>) target_semaphore(%arg19 : memref<!tpu.dma_semaphore, #tpu.memory_space<semaphore_mem>>)
      }
      %c8_i32_18 = arith.constant 8 : i32
      %c0_i32_19 = arith.constant 0 : i32
      %c8_i32_20 = arith.constant 8 : i32
      %15 = arith.addi %c0_i32_19, %c8_i32_20 : i32
      %c1_i32_21 = arith.constant 1 : i32
      scf.for %arg20 = %c0_i32_19 to %15 step %c1_i32_21  : i32 {
        %c0_i32_133 = arith.constant 0 : i32
        %c0_i32_134 = arith.constant 0 : i32
        %207 = tpu.memref_slice %arg4[%c0_i32_133, %c0_i32_134] : memref<32x128xf32, #tpu.memory_space<any>> -> memref<1x128xf32, #tpu.memory_space<any>>
        %c0_i32_135 = arith.constant 0 : i32
        %c0_i32_136 = arith.constant 0 : i32
        %208 = tpu.memref_slice %arg14[%c0_i32_135, %c0_i32_136] : memref<16x128xf32, #tpu.memory_space<vmem>> -> memref<1x128xf32, #tpu.memory_space<vmem>>
        tpu.wait_dma2 semaphore(%arg19 : memref<!tpu.dma_semaphore, #tpu.memory_space<semaphore_mem>>) src(%207 : memref<1x128xf32, #tpu.memory_space<any>>) dst(%208 : memref<1x128xf32, #tpu.memory_space<vmem>>)
      }
      %c0_i32_22 = arith.constant 0 : i32
      %16 = arith.cmpi eq, %arg0, %c0_i32_22 : i32
      %17 = arith.extui %16 : i1 to i32
      %c0_i32_23 = arith.constant 0 : i32
      %18 = arith.cmpi ne, %17, %c0_i32_23 : i32
      scf.if %18 {
        %c0_133 = arith.constant 0 : index
        %c0_134 = arith.constant 0 : index
        %207 = vector.load %arg3[%c0_133, %c0_134] : memref<2x128xf32, #tpu.memory_space<vmem>>, vector<1x128xf32>
        %208 = vector.shape_cast %207 : vector<1x128xf32> to vector<128xf32>
        %c0_135 = arith.constant 0 : index
        %c0_136 = arith.constant 0 : index
        %209 = vector.load %arg14[%c0_135, %c0_136] : memref<16x128xf32, #tpu.memory_space<vmem>>, vector<1x128xf32>
        %210 = vector.shape_cast %209 : vector<1x128xf32> to vector<128xf32>
        %211 = vector.shape_cast %208 : vector<128xf32> to vector<1x128xf32>
        tpu.vector_store %arg14[%c0_135, %c0_136], %211 {strides = array<i32>} : memref<16x128xf32, #tpu.memory_space<vmem>>, vector<1x128xf32>,
        %c1_137 = arith.constant 1 : index
        %c0_138 = arith.constant 0 : index
        %212 = vector.load %arg3[%c1_137, %c0_138] : memref<2x128xf32, #tpu.memory_space<vmem>>, vector<1x128xf32>
        %213 = vector.shape_cast %212 : vector<1x128xf32> to vector<128xf32>
        %c8 = arith.constant 8 : index
        %c0_139 = arith.constant 0 : index
        %214 = vector.load %arg14[%c8, %c0_139] : memref<16x128xf32, #tpu.memory_space<vmem>>, vector<1x128xf32>
        %215 = vector.shape_cast %214 : vector<1x128xf32> to vector<128xf32>
        %216 = vector.shape_cast %213 : vector<128xf32> to vector<1x128xf32>
        tpu.vector_store %arg14[%c8, %c0_139], %216 {strides = array<i32>} : memref<16x128xf32, #tpu.memory_space<vmem>>, vector<1x128xf32>,
      } else {
      }
      %c0_24 = arith.constant 0 : index
      %c0_25 = arith.constant 0 : index
      %19 = vector.load %arg14[%c0_24, %c0_25] : memref<16x128xf32, #tpu.memory_space<vmem>>, vector<16x128xf32>
      %c0_26 = arith.constant 0 : index
      %c0_27 = arith.constant 0 : index
      %20 = vector.load %arg5[%c0_26, %c0_27] : memref<128x512xf32, #tpu.memory_space<vmem>>, vector<128x512xf32>
      %cst_28 = arith.constant dense<0.000000e+00> : vector<16x512xf32>
      %21 = tpu.matmul %19, %20, %cst_28 {dimension_numbers = #tpu.dot_dimension_numbers<[1], [0], [0], [1], [0, 0, 1, 1], [], []>} : vector<16x128xf32>, vector<128x512xf32>, vector<16x512xf32> -> vector<16x512xf32>
      %c0_29 = arith.constant 0 : index
      %c0_30 = arith.constant 0 : index
      %22 = vector.load %arg7[%c0_29, %c0_30] : memref<1x512xf32, #tpu.memory_space<vmem>>, vector<1x512xf32>
      %23 = vector.broadcast %22 : vector<1x512xf32> to vector<16x512xf32>
      %24 = arith.addf %21, %23 : vector<16x512xf32>
      %25 = vector.shape_cast %24 : vector<16x512xf32> to vector<2x8x512xf32>
      %c0_31 = arith.constant 0 : index
      %c0_32 = arith.constant 0 : index
      %c0_33 = arith.constant 0 : index
      %26 = vector.load %arg15[%c0_31, %c0_32, %c0_33] : memref<2x8x512xf32, #tpu.memory_space<vmem>>, vector<2x8x512xf32>
      tpu.vector_store %arg15[%c0_31, %c0_32, %c0_33], %25 {strides = array<i32>} : memref<2x8x512xf32, #tpu.memory_space<vmem>>, vector<2x8x512xf32>,
      %cst_34 = arith.constant 0.000000e+00 : f32
      %27 = vector.broadcast %cst_34 : f32 to vector<2x8x128xf32>
      %c0_35 = arith.constant 0 : index
      %c0_36 = arith.constant 0 : index
      %c0_37 = arith.constant 0 : index
      %28 = vector.load %arg16[%c0_35, %c0_36, %c0_37] : memref<2x8x128xf32, #tpu.memory_space<vmem>>, vector<2x8x128xf32>
      tpu.vector_store %arg16[%c0_35, %c0_36, %c0_37], %27 {strides = array<i32>} : memref<2x8x128xf32, #tpu.memory_space<vmem>>, vector<2x8x128xf32>,
      %cst_38 = arith.constant 0.000000e+00 : f32
      %29 = vector.broadcast %cst_38 : f32 to vector<2x8x128xf32>
      %c0_39 = arith.constant 0 : index
      %c0_40 = arith.constant 0 : index
      %c0_41 = arith.constant 0 : index
      %30 = vector.load %arg17[%c0_39, %c0_40, %c0_41] : memref<2x8x128xf32, #tpu.memory_space<vmem>>, vector<2x8x128xf32>
      tpu.vector_store %arg17[%c0_39, %c0_40, %c0_41], %29 {strides = array<i32>} : memref<2x8x128xf32, #tpu.memory_space<vmem>>, vector<2x8x128xf32>,
      %c0_i32_42 = arith.constant 0 : i32
      %31 = arith.index_cast %c0_i32_42 : i32 to index
      %c0_43 = arith.constant 0 : index
      %c0_44 = arith.constant 0 : index
      %32 = vector.load %arg15[%31, %c0_43, %c0_44] : memref<2x8x512xf32, #tpu.memory_space<vmem>>, vector<1x8x512xf32>
      %33 = vector.shape_cast %32 : vector<1x8x512xf32> to vector<8x512xf32>
      %c0_45 = arith.constant 0 : index
      %c0_46 = arith.constant 0 : index
      %c0_47 = arith.constant 0 : index
      %34 = vector.load %arg16[%c0_45, %c0_46, %c0_47] : memref<2x8x128xf32, #tpu.memory_space<vmem>>, vector<1x8x128xf32>
      %35 = vector.shape_cast %34 : vector<1x8x128xf32> to vector<8x128xf32>
      %c0_48 = arith.constant 0 : index
      %c0_49 = arith.constant 0 : index
      %36 = vector.load %arg6[%c0_48, %c0_49] : memref<128x512xf32, #tpu.memory_space<vmem>>, vector<128x512xf32>
      %cst_50 = arith.constant dense<0.000000e+00> : vector<8x512xf32>
      %37 = tpu.matmul %35, %36, %cst_50 {dimension_numbers = #tpu.dot_dimension_numbers<[1], [0], [0], [1], [0, 0, 1, 1], [], []>} : vector<8x128xf32>, vector<128x512xf32>, vector<8x512xf32> -> vector<8x512xf32>
      %38 = arith.addf %33, %37 : vector<8x512xf32>
      %39 = vector.extract_strided_slice %38 {offsets = [0, 0], sizes = [8, 128], strides = [1, 1]} : vector<8x512xf32> to vector<8x128xf32>
      %40 = arith.negf %39 : vector<8x128xf32>
      %41 = math.exp %40 : vector<8x128xf32>
      %cst_51 = arith.constant 1.000000e+00 : f32
      %42 = vector.broadcast %cst_51 : f32 to vector<8x128xf32>
      %43 = arith.addf %42, %41 : vector<8x128xf32>
      %44 = arith.divf %42, %43 : vector<8x128xf32>
      %45 = vector.extract_strided_slice %38 {offsets = [0, 128], sizes = [8, 128], strides = [1, 1]} : vector<8x512xf32> to vector<8x128xf32>
      %46 = arith.negf %45 : vector<8x128xf32>
      %47 = math.exp %46 : vector<8x128xf32>
      %cst_52 = arith.constant 1.000000e+00 : f32
      %48 = vector.broadcast %cst_52 : f32 to vector<8x128xf32>
      %49 = arith.addf %48, %47 : vector<8x128xf32>
      %50 = arith.divf %48, %49 : vector<8x128xf32>
      %51 = vector.extract_strided_slice %38 {offsets = [0, 256], sizes = [8, 128], strides = [1, 1]} : vector<8x512xf32> to vector<8x128xf32>
      %52 = math.tanh %51 : vector<8x128xf32>
      %53 = vector.extract_strided_slice %38 {offsets = [0, 384], sizes = [8, 128], strides = [1, 1]} : vector<8x512xf32> to vector<8x128xf32>
      %54 = arith.negf %53 : vector<8x128xf32>
      %55 = math.exp %54 : vector<8x128xf32>
      %cst_53 = arith.constant 1.000000e+00 : f32
      %56 = vector.broadcast %cst_53 : f32 to vector<8x128xf32>
      %57 = arith.addf %56, %55 : vector<8x128xf32>
      %58 = arith.divf %56, %57 : vector<8x128xf32>
      %c0_54 = arith.constant 0 : index
      %c0_55 = arith.constant 0 : index
      %c0_56 = arith.constant 0 : index
      %59 = vector.load %arg17[%c0_54, %c0_55, %c0_56] : memref<2x8x128xf32, #tpu.memory_space<vmem>>, vector<1x8x128xf32>
      %60 = vector.shape_cast %59 : vector<1x8x128xf32> to vector<8x128xf32>
      %61 = arith.mulf %50, %60 : vector<8x128xf32>
      %62 = arith.mulf %44, %52 : vector<8x128xf32>
      %63 = arith.addf %61, %62 : vector<8x128xf32>
      %c0_57 = arith.constant 0 : index
      %c0_58 = arith.constant 0 : index
      %c0_59 = arith.constant 0 : index
      %64 = vector.load %arg17[%c0_57, %c0_58, %c0_59] : memref<2x8x128xf32, #tpu.memory_space<vmem>>, vector<1x8x128xf32>
      %65 = vector.shape_cast %64 : vector<1x8x128xf32> to vector<8x128xf32>
      %66 = vector.shape_cast %63 : vector<8x128xf32> to vector<1x8x128xf32>
      tpu.vector_store %arg17[%c0_57, %c0_58, %c0_59], %66 {strides = array<i32>} : memref<2x8x128xf32, #tpu.memory_space<vmem>>, vector<1x8x128xf32>,
      %67 = math.tanh %63 : vector<8x128xf32>
      %68 = arith.mulf %58, %67 : vector<8x128xf32>
      %c0_60 = arith.constant 0 : index
      %c0_61 = arith.constant 0 : index
      %c0_62 = arith.constant 0 : index
      %69 = vector.load %arg16[%c0_60, %c0_61, %c0_62] : memref<2x8x128xf32, #tpu.memory_space<vmem>>, vector<1x8x128xf32>
      %70 = vector.shape_cast %69 : vector<1x8x128xf32> to vector<8x128xf32>
      %71 = vector.shape_cast %68 : vector<8x128xf32> to vector<1x8x128xf32>
      tpu.vector_store %arg16[%c0_60, %c0_61, %c0_62], %71 {strides = array<i32>} : memref<2x8x128xf32, #tpu.memory_space<vmem>>, vector<1x8x128xf32>,
      %c0_63 = arith.constant 0 : index
      %c0_64 = arith.constant 0 : index
      %72 = vector.load %arg8[%c0_63, %c0_64] : memref<128x512xf32, #tpu.memory_space<vmem>>, vector<128x512xf32>
      %cst_65 = arith.constant dense<0.000000e+00> : vector<8x512xf32>
      %73 = tpu.matmul %68, %72, %cst_65 {dimension_numbers = #tpu.dot_dimension_numbers<[1], [0], [0], [1], [0, 0, 1, 1], [], []>} : vector<8x128xf32>, vector<128x512xf32>, vector<8x512xf32> -> vector<8x512xf32>
      %c1 = arith.constant 1 : index
      %c0_66 = arith.constant 0 : index
      %c0_67 = arith.constant 0 : index
      %74 = vector.load %arg16[%c1, %c0_66, %c0_67] : memref<2x8x128xf32, #tpu.memory_space<vmem>>, vector<1x8x128xf32>
      %75 = vector.shape_cast %74 : vector<1x8x128xf32> to vector<8x128xf32>
      %c0_68 = arith.constant 0 : index
      %c0_69 = arith.constant 0 : index
      %76 = vector.load %arg9[%c0_68, %c0_69] : memref<128x512xf32, #tpu.memory_space<vmem>>, vector<128x512xf32>
      %cst_70 = arith.constant dense<0.000000e+00> : vector<8x512xf32>
      %77 = tpu.matmul %75, %76, %cst_70 {dimension_numbers = #tpu.dot_dimension_numbers<[1], [0], [0], [1], [0, 0, 1, 1], [], []>} : vector<8x128xf32>, vector<128x512xf32>, vector<8x512xf32> -> vector<8x512xf32>
      %78 = arith.addf %73, %77 : vector<8x512xf32>
      %c0_71 = arith.constant 0 : index
      %c0_72 = arith.constant 0 : index
      %79 = vector.load %arg10[%c0_71, %c0_72] : memref<1x512xf32, #tpu.memory_space<vmem>>, vector<1x512xf32>
      %80 = vector.broadcast %79 : vector<1x512xf32> to vector<8x512xf32>
      %81 = arith.addf %78, %80 : vector<8x512xf32>
      %82 = vector.extract_strided_slice %81 {offsets = [0, 0], sizes = [8, 128], strides = [1, 1]} : vector<8x512xf32> to vector<8x128xf32>
      %83 = arith.negf %82 : vector<8x128xf32>
      %84 = math.exp %83 : vector<8x128xf32>
      %cst_73 = arith.constant 1.000000e+00 : f32
      %85 = vector.broadcast %cst_73 : f32 to vector<8x128xf32>
      %86 = arith.addf %85, %84 : vector<8x128xf32>
      %87 = arith.divf %85, %86 : vector<8x128xf32>
      %88 = vector.extract_strided_slice %81 {offsets = [0, 128], sizes = [8, 128], strides = [1, 1]} : vector<8x512xf32> to vector<8x128xf32>
      %89 = arith.negf %88 : vector<8x128xf32>
      %90 = math.exp %89 : vector<8x128xf32>
      %cst_74 = arith.constant 1.000000e+00 : f32
      %91 = vector.broadcast %cst_74 : f32 to vector<8x128xf32>
      %92 = arith.addf %91, %90 : vector<8x128xf32>
      %93 = arith.divf %91, %92 : vector<8x128xf32>
      %94 = vector.extract_strided_slice %81 {offsets = [0, 256], sizes = [8, 128], strides = [1, 1]} : vector<8x512xf32> to vector<8x128xf32>
      %95 = math.tanh %94 : vector<8x128xf32>
      %96 = vector.extract_strided_slice %81 {offsets = [0, 384], sizes = [8, 128], strides = [1, 1]} : vector<8x512xf32> to vector<8x128xf32>
      %97 = arith.negf %96 : vector<8x128xf32>
      %98 = math.exp %97 : vector<8x128xf32>
      %cst_75 = arith.constant 1.000000e+00 : f32
      %99 = vector.broadcast %cst_75 : f32 to vector<8x128xf32>
      %100 = arith.addf %99, %98 : vector<8x128xf32>
      %101 = arith.divf %99, %100 : vector<8x128xf32>
      %c1_76 = arith.constant 1 : index
      %c0_77 = arith.constant 0 : index
      %c0_78 = arith.constant 0 : index
      %102 = vector.load %arg17[%c1_76, %c0_77, %c0_78] : memref<2x8x128xf32, #tpu.memory_space<vmem>>, vector<1x8x128xf32>
      %103 = vector.shape_cast %102 : vector<1x8x128xf32> to vector<8x128xf32>
      %104 = arith.mulf %93, %103 : vector<8x128xf32>
      %105 = arith.mulf %87, %95 : vector<8x128xf32>
      %106 = arith.addf %104, %105 : vector<8x128xf32>
      %c1_79 = arith.constant 1 : index
      %c0_80 = arith.constant 0 : index
      %c0_81 = arith.constant 0 : index
      %107 = vector.load %arg17[%c1_79, %c0_80, %c0_81] : memref<2x8x128xf32, #tpu.memory_space<vmem>>, vector<1x8x128xf32>
      %108 = vector.shape_cast %107 : vector<1x8x128xf32> to vector<8x128xf32>
      %109 = vector.shape_cast %106 : vector<8x128xf32> to vector<1x8x128xf32>
      tpu.vector_store %arg17[%c1_79, %c0_80, %c0_81], %109 {strides = array<i32>} : memref<2x8x128xf32, #tpu.memory_space<vmem>>, vector<1x8x128xf32>,
      %110 = math.tanh %106 : vector<8x128xf32>
      %111 = arith.mulf %101, %110 : vector<8x128xf32>
      %c1_82 = arith.constant 1 : index
      %c0_83 = arith.constant 0 : index
      %c0_84 = arith.constant 0 : index
      %112 = vector.load %arg16[%c1_82, %c0_83, %c0_84] : memref<2x8x128xf32, #tpu.memory_space<vmem>>, vector<1x8x128xf32>
      %113 = vector.shape_cast %112 : vector<1x8x128xf32> to vector<8x128xf32>
      %114 = vector.shape_cast %111 : vector<8x128xf32> to vector<1x8x128xf32>
      tpu.vector_store %arg16[%c1_82, %c0_83, %c0_84], %114 {strides = array<i32>} : memref<2x8x128xf32, #tpu.memory_space<vmem>>, vector<1x8x128xf32>,
      %115 = arith.index_cast %c0_i32_42 : i32 to index
      %c0_85 = arith.constant 0 : index
      %c0_86 = arith.constant 0 : index
      %116 = vector.load %arg18[%115, %c0_85, %c0_86] : memref<2x8x128xf32, #tpu.memory_space<vmem>>, vector<1x8x128xf32>
      %117 = vector.shape_cast %116 : vector<1x8x128xf32> to vector<8x128xf32>
      %118 = vector.shape_cast %111 : vector<8x128xf32> to vector<1x8x128xf32>
      tpu.vector_store %arg18[%115, %c0_85, %c0_86], %118 {strides = array<i32>} : memref<2x8x128xf32, #tpu.memory_space<vmem>>, vector<1x8x128xf32>,
      %c1_i32_87 = arith.constant 1 : i32
      %119 = arith.index_cast %c1_i32_87 : i32 to index
      %c0_88 = arith.constant 0 : index
      %c0_89 = arith.constant 0 : index
      %120 = vector.load %arg15[%119, %c0_88, %c0_89] : memref<2x8x512xf32, #tpu.memory_space<vmem>>, vector<1x8x512xf32>
      %121 = vector.shape_cast %120 : vector<1x8x512xf32> to vector<8x512xf32>
      %c0_90 = arith.constant 0 : index
      %c0_91 = arith.constant 0 : index
      %c0_92 = arith.constant 0 : index
      %122 = vector.load %arg16[%c0_90, %c0_91, %c0_92] : memref<2x8x128xf32, #tpu.memory_space<vmem>>, vector<1x8x128xf32>
      %123 = vector.shape_cast %122 : vector<1x8x128xf32> to vector<8x128xf32>
      %c0_93 = arith.constant 0 : index
      %c0_94 = arith.constant 0 : index
      %124 = vector.load %arg6[%c0_93, %c0_94] : memref<128x512xf32, #tpu.memory_space<vmem>>, vector<128x512xf32>
      %cst_95 = arith.constant dense<0.000000e+00> : vector<8x512xf32>
      %125 = tpu.matmul %123, %124, %cst_95 {dimension_numbers = #tpu.dot_dimension_numbers<[1], [0], [0], [1], [0, 0, 1, 1], [], []>} : vector<8x128xf32>, vector<128x512xf32>, vector<8x512xf32> -> vector<8x512xf32>
      %126 = arith.addf %121, %125 : vector<8x512xf32>
      %127 = vector.extract_strided_slice %126 {offsets = [0, 0], sizes = [8, 128], strides = [1, 1]} : vector<8x512xf32> to vector<8x128xf32>
      %128 = arith.negf %127 : vector<8x128xf32>
      %129 = math.exp %128 : vector<8x128xf32>
      %cst_96 = arith.constant 1.000000e+00 : f32
      %130 = vector.broadcast %cst_96 : f32 to vector<8x128xf32>
      %131 = arith.addf %130, %129 : vector<8x128xf32>
      %132 = arith.divf %130, %131 : vector<8x128xf32>
      %133 = vector.extract_strided_slice %126 {offsets = [0, 128], sizes = [8, 128], strides = [1, 1]} : vector<8x512xf32> to vector<8x128xf32>
      %134 = arith.negf %133 : vector<8x128xf32>
      %135 = math.exp %134 : vector<8x128xf32>
      %cst_97 = arith.constant 1.000000e+00 : f32
      %136 = vector.broadcast %cst_97 : f32 to vector<8x128xf32>
      %137 = arith.addf %136, %135 : vector<8x128xf32>
      %138 = arith.divf %136, %137 : vector<8x128xf32>
      %139 = vector.extract_strided_slice %126 {offsets = [0, 256], sizes = [8, 128], strides = [1, 1]} : vector<8x512xf32> to vector<8x128xf32>
      %140 = math.tanh %139 : vector<8x128xf32>
      %141 = vector.extract_strided_slice %126 {offsets = [0, 384], sizes = [8, 128], strides = [1, 1]} : vector<8x512xf32> to vector<8x128xf32>
      %142 = arith.negf %141 : vector<8x128xf32>
      %143 = math.exp %142 : vector<8x128xf32>
      %cst_98 = arith.constant 1.000000e+00 : f32
      %144 = vector.broadcast %cst_98 : f32 to vector<8x128xf32>
      %145 = arith.addf %144, %143 : vector<8x128xf32>
      %146 = arith.divf %144, %145 : vector<8x128xf32>
      %c0_99 = arith.constant 0 : index
      %c0_100 = arith.constant 0 : index
      %c0_101 = arith.constant 0 : index
      %147 = vector.load %arg17[%c0_99, %c0_100, %c0_101] : memref<2x8x128xf32, #tpu.memory_space<vmem>>, vector<1x8x128xf32>
      %148 = vector.shape_cast %147 : vector<1x8x128xf32> to vector<8x128xf32>
      %149 = arith.mulf %138, %148 : vector<8x128xf32>
      %150 = arith.mulf %132, %140 : vector<8x128xf32>
      %151 = arith.addf %149, %150 : vector<8x128xf32>
      %c0_102 = arith.constant 0 : index
      %c0_103 = arith.constant 0 : index
      %c0_104 = arith.constant 0 : index
      %152 = vector.load %arg17[%c0_102, %c0_103, %c0_104] : memref<2x8x128xf32, #tpu.memory_space<vmem>>, vector<1x8x128xf32>
      %153 = vector.shape_cast %152 : vector<1x8x128xf32> to vector<8x128xf32>
      %154 = vector.shape_cast %151 : vector<8x128xf32> to vector<1x8x128xf32>
      tpu.vector_store %arg17[%c0_102, %c0_103, %c0_104], %154 {strides = array<i32>} : memref<2x8x128xf32, #tpu.memory_space<vmem>>, vector<1x8x128xf32>,
      %155 = math.tanh %151 : vector<8x128xf32>
      %156 = arith.mulf %146, %155 : vector<8x128xf32>
      %c0_105 = arith.constant 0 : index
      %c0_106 = arith.constant 0 : index
      %c0_107 = arith.constant 0 : index
      %157 = vector.load %arg16[%c0_105, %c0_106, %c0_107] : memref<2x8x128xf32, #tpu.memory_space<vmem>>, vector<1x8x128xf32>
      %158 = vector.shape_cast %157 : vector<1x8x128xf32> to vector<8x128xf32>
      %159 = vector.shape_cast %156 : vector<8x128xf32> to vector<1x8x128xf32>
      tpu.vector_store %arg16[%c0_105, %c0_106, %c0_107], %159 {strides = array<i32>} : memref<2x8x128xf32, #tpu.memory_space<vmem>>, vector<1x8x128xf32>,
      %c0_108 = arith.constant 0 : index
      %c0_109 = arith.constant 0 : index
      %160 = vector.load %arg8[%c0_108, %c0_109] : memref<128x512xf32, #tpu.memory_space<vmem>>, vector<128x512xf32>
      %cst_110 = arith.constant dense<0.000000e+00> : vector<8x512xf32>
      %161 = tpu.matmul %156, %160, %cst_110 {dimension_numbers = #tpu.dot_dimension_numbers<[1], [0], [0], [1], [0, 0, 1, 1], [], []>} : vector<8x128xf32>, vector<128x512xf32>, vector<8x512xf32> -> vector<8x512xf32>
      %c1_111 = arith.constant 1 : index
      %c0_112 = arith.constant 0 : index
      %c0_113 = arith.constant 0 : index
      %162 = vector.load %arg16[%c1_111, %c0_112, %c0_113] : memref<2x8x128xf32, #tpu.memory_space<vmem>>, vector<1x8x128xf32>
      %163 = vector.shape_cast %162 : vector<1x8x128xf32> to vector<8x128xf32>
      %c0_114 = arith.constant 0 : index
      %c0_115 = arith.constant 0 : index
      %164 = vector.load %arg9[%c0_114, %c0_115] : memref<128x512xf32, #tpu.memory_space<vmem>>, vector<128x512xf32>
      %cst_116 = arith.constant dense<0.000000e+00> : vector<8x512xf32>
      %165 = tpu.matmul %163, %164, %cst_116 {dimension_numbers = #tpu.dot_dimension_numbers<[1], [0], [0], [1], [0, 0, 1, 1], [], []>} : vector<8x128xf32>, vector<128x512xf32>, vector<8x512xf32> -> vector<8x512xf32>
      %166 = arith.addf %161, %165 : vector<8x512xf32>
      %c0_117 = arith.constant 0 : index
      %c0_118 = arith.constant 0 : index
      %167 = vector.load %arg10[%c0_117, %c0_118] : memref<1x512xf32, #tpu.memory_space<vmem>>, vector<1x512xf32>
      %168 = vector.broadcast %167 : vector<1x512xf32> to vector<8x512xf32>
      %169 = arith.addf %166, %168 : vector<8x512xf32>
      %170 = vector.extract_strided_slice %169 {offsets = [0, 0], sizes = [8, 128], strides = [1, 1]} : vector<8x512xf32> to vector<8x128xf32>
      %171 = arith.negf %170 : vector<8x128xf32>
      %172 = math.exp %171 : vector<8x128xf32>
      %cst_119 = arith.constant 1.000000e+00 : f32
      %173 = vector.broadcast %cst_119 : f32 to vector<8x128xf32>
      %174 = arith.addf %173, %172 : vector<8x128xf32>
      %175 = arith.divf %173, %174 : vector<8x128xf32>
      %176 = vector.extract_strided_slice %169 {offsets = [0, 128], sizes = [8, 128], strides = [1, 1]} : vector<8x512xf32> to vector<8x128xf32>
      %177 = arith.negf %176 : vector<8x128xf32>
      %178 = math.exp %177 : vector<8x128xf32>
      %cst_120 = arith.constant 1.000000e+00 : f32
      %179 = vector.broadcast %cst_120 : f32 to vector<8x128xf32>
      %180 = arith.addf %179, %178 : vector<8x128xf32>
      %181 = arith.divf %179, %180 : vector<8x128xf32>
      %182 = vector.extract_strided_slice %169 {offsets = [0, 256], sizes = [8, 128], strides = [1, 1]} : vector<8x512xf32> to vector<8x128xf32>
      %183 = math.tanh %182 : vector<8x128xf32>
      %184 = vector.extract_strided_slice %169 {offsets = [0, 384], sizes = [8, 128], strides = [1, 1]} : vector<8x512xf32> to vector<8x128xf32>
      %185 = arith.negf %184 : vector<8x128xf32>
      %186 = math.exp %185 : vector<8x128xf32>
      %cst_121 = arith.constant 1.000000e+00 : f32
      %187 = vector.broadcast %cst_121 : f32 to vector<8x128xf32>
      %188 = arith.addf %187, %186 : vector<8x128xf32>
      %189 = arith.divf %187, %188 : vector<8x128xf32>
      %c1_122 = arith.constant 1 : index
      %c0_123 = arith.constant 0 : index
      %c0_124 = arith.constant 0 : index
      %190 = vector.load %arg17[%c1_122, %c0_123, %c0_124] : memref<2x8x128xf32, #tpu.memory_space<vmem>>, vector<1x8x128xf32>
      %191 = vector.shape_cast %190 : vector<1x8x128xf32> to vector<8x128xf32>
      %192 = arith.mulf %181, %191 : vector<8x128xf32>
      %193 = arith.mulf %175, %183 : vector<8x128xf32>
      %194 = arith.addf %192, %193 : vector<8x128xf32>
      %c1_125 = arith.constant 1 : index
      %c0_126 = arith.constant 0 : index
      %c0_127 = arith.constant 0 : index
      %195 = vector.load %arg17[%c1_125, %c0_126, %c0_127] : memref<2x8x128xf32, #tpu.memory_space<vmem>>, vector<1x8x128xf32>
      %196 = vector.shape_cast %195 : vector<1x8x128xf32> to vector<8x128xf32>
      %197 = vector.shape_cast %194 : vector<8x128xf32> to vector<1x8x128xf32>
      tpu.vector_store %arg17[%c1_125, %c0_126, %c0_127], %197 {strides = array<i32>} : memref<2x8x128xf32, #tpu.memory_space<vmem>>, vector<1x8x128xf32>,
      %198 = math.tanh %194 : vector<8x128xf32>
      %199 = arith.mulf %189, %198 : vector<8x128xf32>
      %c1_128 = arith.constant 1 : index
      %c0_129 = arith.constant 0 : index
      %c0_130 = arith.constant 0 : index
      %200 = vector.load %arg16[%c1_128, %c0_129, %c0_130] : memref<2x8x128xf32, #tpu.memory_space<vmem>>, vector<1x8x128xf32>
      %201 = vector.shape_cast %200 : vector<1x8x128xf32> to vector<8x128xf32>
      %202 = vector.shape_cast %199 : vector<8x128xf32> to vector<1x8x128xf32>
      tpu.vector_store %arg16[%c1_128, %c0_129, %c0_130], %202 {strides = array<i32>} : memref<2x8x128xf32, #tpu.memory_space<vmem>>, vector<1x8x128xf32>,
      %203 = arith.index_cast %c1_i32_87 : i32 to index
      %c0_131 = arith.constant 0 : index
      %c0_132 = arith.constant 0 : index
      %204 = vector.load %arg18[%203, %c0_131, %c0_132] : memref<2x8x128xf32, #tpu.memory_space<vmem>>, vector<1x8x128xf32>
      %205 = vector.shape_cast %204 : vector<1x8x128xf32> to vector<8x128xf32>
      %206 = vector.shape_cast %199 : vector<8x128xf32> to vector<1x8x128xf32>
      tpu.vector_store %arg18[%203, %c0_131, %c0_132], %206 {strides = array<i32>} : memref<2x8x128xf32, #tpu.memory_space<vmem>>, vector<1x8x128xf32>,
      %c2_i32 = arith.constant 2 : i32
    } else {
    }
    %c0 = arith.constant 0 : index
    %c0_1 = arith.constant 0 : index
    %c0_2 = arith.constant 0 : index
    %3 = vector.load %arg18[%c0, %c0_1, %c0_2] : memref<2x8x128xf32, #tpu.memory_space<vmem>>, vector<2x8x128xf32>
    %4 = vector.shape_cast %3 : vector<2x8x128xf32> to vector<16x128xf32>
    %c0_3 = arith.constant 0 : index
    %c0_4 = arith.constant 0 : index
    %5 = vector.load %arg11[%c0_3, %c0_4] : memref<128x32xf32, #tpu.memory_space<vmem>>, vector<128x32xf32>
    %cst = arith.constant dense<0.000000e+00> : vector<16x32xf32>
    %6 = tpu.matmul %4, %5, %cst {dimension_numbers = #tpu.dot_dimension_numbers<[1], [0], [0], [1], [0, 0, 1, 1], [], []>} : vector<16x128xf32>, vector<128x32xf32>, vector<16x32xf32> -> vector<16x32xf32>
    %c0_5 = arith.constant 0 : index
    %c0_6 = arith.constant 0 : index
    %7 = vector.load %arg12[%c0_5, %c0_6] : memref<1x32xf32, #tpu.memory_space<vmem>>, vector<1x32xf32>
    %8 = vector.broadcast %7 : vector<1x32xf32> to vector<16x32xf32>
    %9 = arith.addf %6, %8 : vector<16x32xf32>
    %10 = vector.shape_cast %9 : vector<16x32xf32> to vector<2x8x32xf32>
    %c0_7 = arith.constant 0 : index
    %c0_8 = arith.constant 0 : index
    %c0_9 = arith.constant 0 : index
    %11 = vector.load %arg13[%c0_7, %c0_8, %c0_9] : memref<2x8x32xf32, #tpu.memory_space<vmem>>, vector<2x8x32xf32>
    tpu.vector_store %arg13[%c0_7, %c0_8, %c0_9], %10 {strides = array<i32>} : memref<2x8x32xf32, #tpu.memory_space<vmem>>, vector<2x8x32xf32>,
    return
  }
  func.func @transform_0(%arg0: i32, %arg1: i32, %arg2: memref<2x8xi32, #tpu.memory_space<smem>>) -> (i32, i32) {
    %c0_i32 = arith.constant 0 : i32
    %c0_i32_0 = arith.constant 0 : i32
    %c0_i32_1 = arith.constant 0 : i32
    return %c0_i32, %c0_i32_0 : i32, i32
  }
  func.func @transform_2(%arg0: i32, %arg1: i32, %arg2: memref<2x8xi32, #tpu.memory_space<smem>>) -> (i32, i32) {
    %c0_i32 = arith.constant 0 : i32
    %c0_i32_0 = arith.constant 0 : i32
    %c0_i32_1 = arith.constant 0 : i32
    return %c0_i32, %c0_i32_0 : i32, i32
  }
  func.func @transform_3(%arg0: i32, %arg1: i32, %arg2: memref<2x8xi32, #tpu.memory_space<smem>>) -> (i32, i32) {
    %c0_i32 = arith.constant 0 : i32
    %c0_i32_0 = arith.constant 0 : i32
    %c0_i32_1 = arith.constant 0 : i32
    return %c0_i32, %c0_i32_0 : i32, i32
  }
  func.func @transform_4(%arg0: i32, %arg1: i32, %arg2: memref<2x8xi32, #tpu.memory_space<smem>>) -> (i32, i32) {
    %c0_i32 = arith.constant 0 : i32
    %c0_i32_0 = arith.constant 0 : i32
    %c0_i32_1 = arith.constant 0 : i32
    return %c0_i32, %c0_i32_0 : i32, i32
  }
  func.func @transform_5(%arg0: i32, %arg1: i32, %arg2: memref<2x8xi32, #tpu.memory_space<smem>>) -> (i32, i32) {
    %c0_i32 = arith.constant 0 : i32
    %c0_i32_0 = arith.constant 0 : i32
    %c0_i32_1 = arith.constant 0 : i32
    return %c0_i32, %c0_i32_0 : i32, i32
  }
  func.func @transform_6(%arg0: i32, %arg1: i32, %arg2: memref<2x8xi32, #tpu.memory_space<smem>>) -> (i32, i32) {
    %c0_i32 = arith.constant 0 : i32
    %c0_i32_0 = arith.constant 0 : i32
    %c0_i32_1 = arith.constant 0 : i32
    return %c0_i32, %c0_i32_0 : i32, i32
  }
  func.func @transform_7(%arg0: i32, %arg1: i32, %arg2: memref<2x8xi32, #tpu.memory_space<smem>>) -> (i32, i32) {
    %c0_i32 = arith.constant 0 : i32
    %c0_i32_0 = arith.constant 0 : i32
    %c0_i32_1 = arith.constant 0 : i32
    return %c0_i32, %c0_i32_0 : i32, i32
  }
  func.func @transform_8(%arg0: i32, %arg1: i32, %arg2: memref<2x8xi32, #tpu.memory_space<smem>>) -> (i32, i32) {
    %c0_i32 = arith.constant 0 : i32
    %c0_i32_0 = arith.constant 0 : i32
    return %c0_i32, %arg1 : i32, i32
  }
  func.func @transform_9(%arg0: i32, %arg1: i32, %arg2: memref<2x8xi32, #tpu.memory_space<smem>>) -> (i32, i32) {
    %c0_i32 = arith.constant 0 : i32
    %c0_i32_0 = arith.constant 0 : i32
    return %c0_i32, %arg1 : i32, i32
  }
  func.func @transform_10(%arg0: i32, %arg1: i32, %arg2: memref<2x8xi32, #tpu.memory_space<smem>>) -> (i32, i32, i32) {
    %c0_i32 = arith.constant 0 : i32
    %c0_i32_0 = arith.constant 0 : i32
    return %c0_i32, %arg0, %arg1 : i32, i32, i32
  }
}

</mosaic_0001>

<llo_original>
// kernel: tpu_custom_call.1
$region0: #{tpu_custom_call.1}
  #allocation0 [shape = 'u32[]', space=smem, size = 0x4, offset = 0x4, fixed_abs, tag = 'smem constant byte address 0x4 - core index']
  #allocation1 [shape = 'u32[144,128]{1,0:T(1,128)}', space=vmem, size = 0x12000, scoped, tag = 'internal scratch']
  #allocation2 [shape = 'f32[16,128]{1,0:T(8,128)}', space=vmem, size = 0x2000, scoped, tag = 'scratch operand']
  #allocation3 [shape = 'f32[2,8,512]{2,1,0:T(8,128)}', space=vmem, size = 0x8000, scoped, tag = 'scratch operand']
  #allocation4 [shape = 'f32[2,8,128]{2,1,0:T(8,128)}', space=vmem, size = 0x2000, scoped, tag = 'scratch operand']
  #allocation5 [shape = 'f32[2,8,128]{2,1,0:T(8,128)}', space=vmem, size = 0x2000, scoped, tag = 'scratch operand']
  #allocation6 [shape = 'f32[2,8,128]{2,1,0:T(8,128)}', space=vmem, size = 0x2000, scoped, tag = 'scratch operand']
  #allocation7 [shape = 's32[1]{0}', space=sflag, size = 0x4, scoped, tag = 'scratch operand']
  #allocation8 [shape = 's32[1]{0}', space=sflag, size = 0x4, scoped, tag = 'scoped memory for tpu_custom_call.1']
  #allocation9 [shape = 'u8[1024]{0}', space=smem, size = 0x400, scoped, tag = 'prefetched SMEM operand 0']
  #allocation19 [shape = 's32[]', space=sflag, size = 0x4, offset = 0, fixed_abs, tag = 'sflag constant byte address 0x0 - dummy sync flag']
  #allocation20 [shape = 's32[]', space=sflag, size = 0x4, offset = 0, fixed_abs, tag = 'sflag constant byte address 0x0 - dummy sync flag']
  %s0 = inlined_call_operand.vmem [shape: s32[2,8], index: 0, kind: input, shape index: {}]
  %s1 = inlined_call_operand.vmem [shape: f32[2,128], index: 1, kind: input, shape index: {}]
  %s2 = inlined_call_operand.vmem [shape: f32[32,128], index: 2, kind: input, shape index: {}]
  %s3 = inlined_call_operand.hbm [shape: f32[128,512], index: 3, kind: input, shape index: {}]
  %s4 = inlined_call_operand.hbm [shape: f32[128,512], index: 4, kind: input, shape index: {}]
  %s5 = inlined_call_operand.vmem [shape: f32[1,512], index: 5, kind: input, shape index: {}]
  %s6 = inlined_call_operand.hbm [shape: f32[128,512], index: 6, kind: input, shape index: {}]
  %s7 = inlined_call_operand.hbm [shape: f32[128,512], index: 7, kind: input, shape index: {}]
  %s8 = inlined_call_operand.vmem [shape: f32[1,512], index: 8, kind: input, shape index: {}]
  %s9 = inlined_call_operand.vmem [shape: f32[128,32], index: 9, kind: input, shape index: {}]
  %s10 = inlined_call_operand.vmem [shape: f32[1,32], index: 10, kind: input, shape index: {}]
  %s11 = inlined_call_operand.hbm [shape: f32[2,8,32], index: 11, kind: output, shape index: {}]
  %s12 = sld [smem:[#allocation0]]
  $region158: #{tpu_custom_call.1} parent=0
    _
  %s14 = ssub.s32 1, %s12
  %s15 = scalar_select 0, %s14, %s12
  %s16 = sshll.u32 %s0, 4
  %s17 = int_to_ptr.vmem [resolvable:$true] %s16
  %19 = dma.vmem_to_smem %s17, 32, [#allocation9], [#allocation8]
  %20 = dma.done [#allocation8], 32
  %21 = sfence
  $region1: #{tpu_custom_call.1} parent=0
    #allocation10 [shape = 'u8[262144]{0}', space=vmem, size = 0x40000, scoped, tag = 'input window, operand 3, single buffered']
    #allocation11 [shape = 's32[1]{0}', space=sflag, size = 0x4, scoped, tag = 'scoped memory for tpu_custom_call.1']
    #allocation12 [shape = 's32[1]{0}', space=sflag, size = 0x4, scoped, tag = 'scoped memory for tpu_custom_call.1']
    #allocation13 [shape = 'u8[262144]{0}', space=vmem, size = 0x40000, scoped, tag = 'input window, operand 4, single buffered']
    #allocation14 [shape = 's32[1]{0}', space=sflag, size = 0x4, scoped, tag = 'scoped memory for tpu_custom_call.1']
    #allocation15 [shape = 'u8[262144]{0}', space=vmem, size = 0x40000, scoped, tag = 'input window, operand 6, single buffered']
    #allocation16 [shape = 'u8[262144]{0}', space=vmem, size = 0x40000, scoped, tag = 'input window, operand 7, single buffered']
    #allocation17 [shape = 's32[1]{0}', space=sflag, size = 0x4, scoped, tag = 'scoped memory for tpu_custom_call.1']
    #allocation18 [shape = 'u8[8192]{0}', space=vmem, size = 0x2000, scoped, tag = 'output window, operand 0, single buffered']
    %22 = vsyncpa [#allocation11], 0
    %23 = vsyncpa [#allocation14], 0
    %24 = vsyncpa [#allocation17], 0
    %25 = vsyncpa [#allocation12], 0
    // Predicated region
    $region2: #{tpu_custom_call.1} parent=1 // pred_check
      _
    $region3: #{tpu_custom_call.1} parent=1 // pred_check_branch
      %27 = sbr.rel (0) target = $region5
    $region4: #{tpu_custom_call.1} parent=1 // pred_region
      _
    $region5: #{tpu_custom_call.1} parent=1 // pred_fallthru
      _
    // Predicated region
    $region6: #{tpu_custom_call.1} parent=1 // pred_check
      _
    $region7: #{tpu_custom_call.1} parent=1 // pred_check_branch
      %29 = sbr.rel (0) target = $region9
    $region8: #{tpu_custom_call.1} parent=1 // pred_region
      %s31 = ssub.s32 8192, 8192
      %32 = vsyncadd [#allocation11], %s31
      %s33 = sshll.u32 [#allocation10], 4
      %s34 = int_to_ptr.vmem [resolvable:$true] %s33
      %39 = dma.hbm_to_vmem [thread:$0]  %s3, 8192, %s34, [#allocation11], 512, 512, 32
    $region9: #{tpu_custom_call.1} parent=1 // pred_fallthru
      _
    // Predicated region
    $region10: #{tpu_custom_call.1} parent=1 // pred_check
      _
    $region11: #{tpu_custom_call.1} parent=1 // pred_check_branch
      %41 = sbr.rel (0) target = $region13
    $region12: #{tpu_custom_call.1} parent=1 // pred_region
      %s43 = ssub.s32 8192, 8192
      %44 = vsyncadd [#allocation14], %s43
      %s45 = sshll.u32 [#allocation13], 4
      %s46 = int_to_ptr.vmem [resolvable:$true] %s45
      %51 = dma.hbm_to_vmem [thread:$0]  %s4, 8192, %s46, [#allocation14], 512, 512, 32
    $region13: #{tpu_custom_call.1} parent=1 // pred_fallthru
      _
    // Predicated region
    $region14: #{tpu_custom_call.1} parent=1 // pred_check
      _
    $region15: #{tpu_custom_call.1} parent=1 // pred_check_branch
      %53 = sbr.rel (0) target = $region17
    $region16: #{tpu_custom_call.1} parent=1 // pred_region
      _
    $region17: #{tpu_custom_call.1} parent=1 // pred_fallthru
      _
    // Predicated region
    $region18: #{tpu_custom_call.1} parent=1 // pred_check
      _
    $region19: #{tpu_custom_call.1} parent=1 // pred_check_branch
      %55 = sbr.rel (0) target = $region21
    $region20: #{tpu_custom_call.1} parent=1 // pred_region
      %s57 = ssub.s32 8192, 8192
      %58 = vsyncadd [#allocation14], %s57
      %s59 = sshll.u32 [#allocation15], 4
      %s60 = int_to_ptr.vmem [resolvable:$true] %s59
      %65 = dma.hbm_to_vmem [thread:$0]  %s6, 8192, %s60, [#allocation14], 512, 512, 32
    $region21: #{tpu_custom_call.1} parent=1 // pred_fallthru
      _
    // Predicated region
    $region22: #{tpu_custom_call.1} parent=1 // pred_check
      _
    $region23: #{tpu_custom_call.1} parent=1 // pred_check_branch
      %67 = sbr.rel (0) target = $region25
    $region24: #{tpu_custom_call.1} parent=1 // pred_region
      %s69 = ssub.s32 8192, 8192
      %70 = vsyncadd [#allocation17], %s69
      %s71 = sshll.u32 [#allocation16], 4
      %s72 = int_to_ptr.vmem [resolvable:$true] %s71
      %77 = dma.hbm_to_vmem [thread:$0]  %s7, 8192, %s72, [#allocation17], 512, 512, 32
    $region25: #{tpu_custom_call.1} parent=1 // pred_fallthru
      _
    // Predicated region
    $region26: #{tpu_custom_call.1} parent=1 // pred_check
      _
    $region27: #{tpu_custom_call.1} parent=1 // pred_check_branch
      %79 = sbr.rel (0) target = $region29
    $region28: #{tpu_custom_call.1} parent=1 // pred_region
      _
    $region29: #{tpu_custom_call.1} parent=1 // pred_fallthru
      _
    // Predicated region
    $region30: #{tpu_custom_call.1} parent=1 // pred_check
      _
    $region31: #{tpu_custom_call.1} parent=1 // pred_check_branch
      %81 = sbr.rel (0) target = $region33
    $region32: #{tpu_custom_call.1} parent=1 // pred_region
      _
    $region33: #{tpu_custom_call.1} parent=1 // pred_fallthru
      _
    // Predicated region
    $region34: #{tpu_custom_call.1} parent=1 // pred_check
      _
    $region35: #{tpu_custom_call.1} parent=1 // pred_check_branch
      %83 = sbr.rel (0) target = $region37
    $region36: #{tpu_custom_call.1} parent=1 // pred_region
      _
    $region37: #{tpu_custom_call.1} parent=1 // pred_fallthru
      _
    // Predicated region
    $region38: #{tpu_custom_call.1} parent=1 // pred_check
      _
    $region39: #{tpu_custom_call.1} parent=1 // pred_check_branch
      %85 = sbr.rel (0) target = $region41
    $region40: #{tpu_custom_call.1} parent=1 // pred_region
      %86 = dma.done [#allocation11], 8192
    $region41: #{tpu_custom_call.1} parent=1 // pred_fallthru
      _
    // Predicated region
    $region42: #{tpu_custom_call.1} parent=1 // pred_check
      _
    $region43: #{tpu_custom_call.1} parent=1 // pred_check_branch
      %88 = sbr.rel (0) target = $region45
    $region44: #{tpu_custom_call.1} parent=1 // pred_region
      %89 = dma.done [#allocation14], 8192
    $region45: #{tpu_custom_call.1} parent=1 // pred_fallthru
      _
    // Predicated region
    $region46: #{tpu_custom_call.1} parent=1 // pred_check
      _
    $region47: #{tpu_custom_call.1} parent=1 // pred_check_branch
      %91 = sbr.rel (0) target = $region49
    $region48: #{tpu_custom_call.1} parent=1 // pred_region
      %92 = dma.done [#allocation14], 8192
    $region49: #{tpu_custom_call.1} parent=1 // pred_fallthru
      _
    // Predicated region
    $region50: #{tpu_custom_call.1} parent=1 // pred_check
      _
    $region51: #{tpu_custom_call.1} parent=1 // pred_check_branch
      %94 = sbr.rel (0) target = $region53
    $region52: #{tpu_custom_call.1} parent=1 // pred_region
      %95 = dma.done [#allocation17], 8192
    $region53: #{tpu_custom_call.1} parent=1 // pred_fallthru
      _
    %p96 = scmp.eq.s32.totalorder 0, 0
    // Predicated region
    $region54: #{tpu_custom_call.1} parent=1 // pred_check
      %p97 = pneg %p96
    $region55: #{tpu_custom_call.1} parent=1 // pred_check_branch
      %99 = sbr.rel (%p97) target = $region57
    $region56: #{tpu_custom_call.1} parent=1 // pred_region
      loop: start=0, step=1, limit=8
      $region58: #{tpu_custom_call.1} parent=56 // loop_pre_header
        _
      $region59: #{tpu_custom_call.1} parent=56 // loop_header
        %s101 = sphi 0, %s105
        %p102 = scmp.ge.s32.totalorder %s101, 8
      $region60: #{tpu_custom_call.1} parent=56 // loop_header_branch
        %104 = sbr.rel (%p102) target = $region64
      $region61: #{tpu_custom_call.1} parent=56 // loop_body
        %s106 = smul.u32 0, 8
        %s107 = sadd.s32 %s106, %s101
        %s108 = ssub.s32 %s107, 1
        %p109 = scmp.gt.s32.totalorder %s108, 0
        %s110 = scalar_select %p109, %s108, 0
        %s111 = sld [smem:[#allocation9 + %s110]]
        %s112 = scalar_lea.vmem %s2, %s111
        %s113 = scalar_lea.vmem [#allocation2], %s101
        %p115 = scmp.lt.u32.totalorder 1, 8
        %p116 = pneg %p115
        // Predicated region
        $region65: #{tpu_custom_call.1} parent=61 // pred_check
          _
        $region66: #{tpu_custom_call.1} parent=61 // pred_check_branch
          %118 = sbr.rel (%p115) target = $region68
        $region67: #{tpu_custom_call.1} parent=61 // pred_region
          %s133 = sand.u32 1, 7
          %p134 = scmp.eq.s32.totalorder %s133, 0
          %p135 = pneg %p134
          // Predicated region
          $region80: #{tpu_custom_call.1} parent=67 // pred_check
            _
          $region81: #{tpu_custom_call.1} parent=67 // pred_check_branch
            %137 = sbr.rel (%p134) target = $region83
          $region82: #{tpu_custom_call.1} parent=67 // pred_region
            %s138 = sand.u32 1, 7
            %s139 = ssub.s32 1, %s138
            %s140 = scalar_lea.vmem %s112, %s139
            %s141 = ssub.s32 1, %s138
            %s142 = scalar_lea.vmem %s113, %s141 [#allocation2]
            %s143 = sshllo.u32 0, %s138
            loop: start=0, step=1, limit=1
            $region84: #{tpu_custom_call.1} parent=82 // loop_pre_header
              _
            $region85: #{tpu_custom_call.1} parent=82 // loop_header
              %s145 = sphi 0, %s149
              %p146 = scmp.ge.s32.totalorder %s145, 1
              %s150 = sphi %s140, %s140
              %s151 = sphi %s142, %s142
            $region86: #{tpu_custom_call.1} parent=82 // loop_header_branch
              %148 = sbr.rel (%p146) target = $region90
            $region87: #{tpu_custom_call.1} parent=82 // loop_body
              %v152 = vld [vmem:[%s150] sm:%s143]
              %153 = vst [vmem:[%s151] sm:%s143] %v152
            $region88: #{tpu_custom_call.1} parent=82 // loop_footer
              %s149 = sadd.s32 1, %s145
            $region89: #{tpu_custom_call.1} parent=82 // loop_footer_branch
              %144 = sbr.rel target = $region85
            $region90: #{tpu_custom_call.1} parent=82 // loop_exit
              _
          $region83: #{tpu_custom_call.1} parent=67 // pred_fallthru
            _
        $region68: #{tpu_custom_call.1} parent=61 // pred_fallthru
          _
        // Predicated region
        $region69: #{tpu_custom_call.1} parent=61 // pred_check
          %p119 = pneg %p115
        $region70: #{tpu_custom_call.1} parent=61 // pred_check_branch
          %121 = sbr.rel (%p119) target = $region72
        $region71: #{tpu_custom_call.1} parent=61 // pred_region
          %s122 = sshllo.u32 0, 1
          loop: start=0, step=1, limit=1
          $region73: #{tpu_custom_call.1} parent=71 // loop_pre_header
            _
          $region74: #{tpu_custom_call.1} parent=71 // loop_header
            %s124 = sphi 0, %s128
            %p125 = scmp.ge.s32.totalorder %s124, 1
            %s129 = sphi %s112, %s112
            %s130 = sphi %s113, %s113
          $region75: #{tpu_custom_call.1} parent=71 // loop_header_branch
            %127 = sbr.rel (%p125) target = $region79
          $region76: #{tpu_custom_call.1} parent=71 // loop_body
            %v131 = vld [vmem:[%s129] sm:%s122]
            %132 = vst [vmem:[%s130] sm:%s122] %v131
          $region77: #{tpu_custom_call.1} parent=71 // loop_footer
            %s128 = sadd.s32 1, %s124
          $region78: #{tpu_custom_call.1} parent=71 // loop_footer_branch
            %123 = sbr.rel target = $region74
          $region79: #{tpu_custom_call.1} parent=71 // loop_exit
            _
        $region72: #{tpu_custom_call.1} parent=61 // pred_fallthru
          _
        // Predicated region
        $region91: #{tpu_custom_call.1} parent=61 // pred_check
          _
        $region92: #{tpu_custom_call.1} parent=61 // pred_check_branch
          %156 = sbr.rel (0) target = $region94
        $region93: #{tpu_custom_call.1} parent=61 // pred_region
          %157 = vsyncadd [#allocation7], 16
        $region94: #{tpu_custom_call.1} parent=61 // pred_fallthru
          _
      $region62: #{tpu_custom_call.1} parent=56 // loop_footer
        %s105 = sadd.s32 1, %s101
      $region63: #{tpu_custom_call.1} parent=56 // loop_footer_branch
        %100 = sbr.rel target = $region59
      $region64: #{tpu_custom_call.1} parent=56 // loop_exit
        _
      loop: start=0, step=1, limit=8
      $region95: #{tpu_custom_call.1} parent=56 // loop_pre_header
        _
      $region96: #{tpu_custom_call.1} parent=56 // loop_header
        %s159 = sphi 0, %s163
        %p160 = scmp.ge.s32.totalorder %s159, 8
      $region97: #{tpu_custom_call.1} parent=56 // loop_header_branch
        %162 = sbr.rel (%p160) target = $region101
      $region98: #{tpu_custom_call.1} parent=56 // loop_body
        %s164 = smul.u32 1, 1
        %s165 = sshll.u32 %s164, 4
        %166 = dma.done [#allocation7], %s165
      $region99: #{tpu_custom_call.1} parent=56 // loop_footer
        %s163 = sadd.s32 1, %s159
      $region100: #{tpu_custom_call.1} parent=56 // loop_footer_branch
        %158 = sbr.rel target = $region96
      $region101: #{tpu_custom_call.1} parent=56 // loop_exit
        _
      loop: start=0, step=1, limit=8
      $region102: #{tpu_custom_call.1} parent=56 // loop_pre_header
        _
      $region103: #{tpu_custom_call.1} parent=56 // loop_header
        %s168 = sphi 0, %s172
        %p169 = scmp.ge.s32.totalorder %s168, 8
      $region104: #{tpu_custom_call.1} parent=56 // loop_header_branch
        %171 = sbr.rel (%p169) target = $region108
      $region105: #{tpu_custom_call.1} parent=56 // loop_body
        %s173 = smul.u32 0, 8
        %s174 = sadd.s32 %s173, %s168
        %s175 = ssub.s32 %s174, 1
        %p176 = scmp.gt.s32.totalorder %s175, 0
        %s177 = scalar_select %p176, %s175, 0
        %s178 = sshra.s32 %s177, 7
        %s179 = sand.u32 %s177, 127
        %s180 = sadd.s32 %s178, 1
        %s181 = smul.u32 %s180, 128
        %s182 = sshra.s32 %s177, 7
        %s183 = sand.u32 %s177, 127
        %s184 = sadd.s32 %s181, %s183
        %s185 = sld [smem:[#allocation9 + %s184]]
        %s186 = sadd.s32 %s168, 8
        %s187 = scalar_lea.vmem %s2, %s185
        %s188 = scalar_lea.vmem [#allocation2], %s186
        %p190 = scmp.lt.u32.totalorder 1, 8
        %p191 = pneg %p190
        // Predicated region
        $region109: #{tpu_custom_call.1} parent=105 // pred_check
          _
        $region110: #{tpu_custom_call.1} parent=105 // pred_check_branch
          %193 = sbr.rel (%p190) target = $region112
        $region111: #{tpu_custom_call.1} parent=105 // pred_region
          %s208 = sand.u32 1, 7
          %p209 = scmp.eq.s32.totalorder %s208, 0
          %p210 = pneg %p209
          // Predicated region
          $region124: #{tpu_custom_call.1} parent=111 // pred_check
            _
          $region125: #{tpu_custom_call.1} parent=111 // pred_check_branch
            %212 = sbr.rel (%p209) target = $region127
          $region126: #{tpu_custom_call.1} parent=111 // pred_region
            %s213 = sand.u32 1, 7
            %s214 = ssub.s32 1, %s213
            %s215 = scalar_lea.vmem %s187, %s214
            %s216 = ssub.s32 1, %s213
            %s217 = scalar_lea.vmem %s188, %s216 [#allocation2]
            %s218 = sshllo.u32 0, %s213
            loop: start=0, step=1, limit=1
            $region128: #{tpu_custom_call.1} parent=126 // loop_pre_header
              _
            $region129: #{tpu_custom_call.1} parent=126 // loop_header
              %s220 = sphi 0, %s224
              %p221 = scmp.ge.s32.totalorder %s220, 1
              %s225 = sphi %s215, %s215
              %s226 = sphi %s217, %s217
            $region130: #{tpu_custom_call.1} parent=126 // loop_header_branch
              %223 = sbr.rel (%p221) target = $region134
            $region131: #{tpu_custom_call.1} parent=126 // loop_body
              %v227 = vld [vmem:[%s225] sm:%s218]
              %228 = vst [vmem:[%s226] sm:%s218] %v227
            $region132: #{tpu_custom_call.1} parent=126 // loop_footer
              %s224 = sadd.s32 1, %s220
            $region133: #{tpu_custom_call.1} parent=126 // loop_footer_branch
              %219 = sbr.rel target = $region129
            $region134: #{tpu_custom_call.1} parent=126 // loop_exit
              _
          $region127: #{tpu_custom_call.1} parent=111 // pred_fallthru
            _
        $region112: #{tpu_custom_call.1} parent=105 // pred_fallthru
          _
        // Predicated region
        $region113: #{tpu_custom_call.1} parent=105 // pred_check
          %p194 = pneg %p190
        $region114: #{tpu_custom_call.1} parent=105 // pred_check_branch
          %196 = sbr.rel (%p194) target = $region116
        $region115: #{tpu_custom_call.1} parent=105 // pred_region
          %s197 = sshllo.u32 0, 1
          loop: start=0, step=1, limit=1
          $region117: #{tpu_custom_call.1} parent=115 // loop_pre_header
            _
          $region118: #{tpu_custom_call.1} parent=115 // loop_header
            %s199 = sphi 0, %s203
            %p200 = scmp.ge.s32.totalorder %s199, 1
            %s204 = sphi %s187, %s187
            %s205 = sphi %s188, %s188
          $region119: #{tpu_custom_call.1} parent=115 // loop_header_branch
            %202 = sbr.rel (%p200) target = $region123
          $region120: #{tpu_custom_call.1} parent=115 // loop_body
            %v206 = vld [vmem:[%s204] sm:%s197]
            %207 = vst [vmem:[%s205] sm:%s197] %v206
          $region121: #{tpu_custom_call.1} parent=115 // loop_footer
            %s203 = sadd.s32 1, %s199
          $region122: #{tpu_custom_call.1} parent=115 // loop_footer_branch
            %198 = sbr.rel target = $region118
          $region123: #{tpu_custom_call.1} parent=115 // loop_exit
            _
        $region116: #{tpu_custom_call.1} parent=105 // pred_fallthru
          _
        // Predicated region
        $region135: #{tpu_custom_call.1} parent=105 // pred_check
          _
        $region136: #{tpu_custom_call.1} parent=105 // pred_check_branch
          %231 = sbr.rel (0) target = $region138
        $region137: #{tpu_custom_call.1} parent=105 // pred_region
          %232 = vsyncadd [#allocation7], 16
        $region138: #{tpu_custom_call.1} parent=105 // pred_fallthru
          _
      $region106: #{tpu_custom_call.1} parent=56 // loop_footer
        %s172 = sadd.s32 1, %s168
      $region107: #{tpu_custom_call.1} parent=56 // loop_footer_branch
        %167 = sbr.rel target = $region103
      $region108: #{tpu_custom_call.1} parent=56 // loop_exit
        _
      loop: start=0, step=1, limit=8
      $region139: #{tpu_custom_call.1} parent=56 // loop_pre_header
        _
      $region140: #{tpu_custom_call.1} parent=56 // loop_header
        %s234 = sphi 0, %s238
        %p235 = scmp.ge.s32.totalorder %s234, 8
      $region141: #{tpu_custom_call.1} parent=56 // loop_header_branch
        %237 = sbr.rel (%p235) target = $region145
      $region142: #{tpu_custom_call.1} parent=56 // loop_body
        %s239 = smul.u32 1, 1
        %s240 = sshll.u32 %s239, 4
        %241 = dma.done [#allocation7], %s240
      $region143: #{tpu_custom_call.1} parent=56 // loop_footer
        %s238 = sadd.s32 1, %s234
      $region144: #{tpu_custom_call.1} parent=56 // loop_footer_branch
        %233 = sbr.rel target = $region140
      $region145: #{tpu_custom_call.1} parent=56 // loop_exit
        _
      %p242 = scmp.eq.s32.totalorder 0, 0
      // Predicated region
      $region146: #{tpu_custom_call.1} parent=56 // pred_check
        %p243 = pneg %p242
      $region147: #{tpu_custom_call.1} parent=56 // pred_check_branch
        %245 = sbr.rel (%p243) target = $region149
      $region148: #{tpu_custom_call.1} parent=56 // pred_region
        %v246 = vld [vmem:[%s1] sm:$0x1]
        %247 = vst [vmem:[#allocation2] sm:$0x1] %v246
        %v248 = vld [vmem:[%s1 + $0x1] sm:$0x1]
        %249 = vst [vmem:[#allocation2 + $0x8] sm:$0x1] %v248
      $region149: #{tpu_custom_call.1} parent=56 // pred_fallthru
        _
      %v250 = vld [vmem:[#allocation2] sm:$0xff]
      %v251 = vld [vmem:[#allocation2 + $0x8] sm:$0xff]
      %v252 = vld [vmem:[#allocation10] sm:$0xff]
      %v253 = vld [vmem:[#allocation10 + $0x8] sm:$0xff]
      %v254 = vld [vmem:[#allocation10 + $0x10] sm:$0xff]
      %v255 = vld [vmem:[#allocation10 + $0x18] sm:$0xff]
      %v256 = vld [vmem:[#allocation10 + $0x20] sm:$0xff]
      %v257 = vld [vmem:[#allocation10 + $0x28] sm:$0xff]
      %v258 = vld [vmem:[#allocation10 + $0x30] sm:$0xff]
      %v259 = vld [vmem:[#allocation10 + $0x38] sm:$0xff]
      %v260 = vld [vmem:[#allocation10 + $0x40] sm:$0xff]
      %v261 = vld [vmem:[#allocation10 + $0x48] sm:$0xff]
      %v262 = vld [vmem:[#allocation10 + $0x50] sm:$0xff]
      %v263 = vld [vmem:[#allocation10 + $0x58] sm:$0xff]
      %v264 = vld [vmem:[#allocation10 + $0x60] sm:$0xff]
      %v265 = vld [vmem:[#allocation10 + $0x68] sm:$0xff]
      %v266 = vld [vmem:[#allocation10 + $0x70] sm:$0xff]
      %v267 = vld [vmem:[#allocation10 + $0x78] sm:$0xff]
      %v268 = vld [vmem:[#allocation10 + $0x80] sm:$0xff]
      %v269 = vld [vmem:[#allocation10 + $0x88] sm:$0xff]
      %v270 = vld [vmem:[#allocation10 + $0x90] sm:$0xff]
      %v271 = vld [vmem:[#allocation10 + $0x98] sm:$0xff]
      %v272 = vld [vmem:[#allocation10 + $0xa0] sm:$0xff]
      %v273 = vld [vmem:[#allocation10 + $0xa8] sm:$0xff]
      %v274 = vld [vmem:[#allocation10 + $0xb0] sm:$0xff]
      %v275 = vld [vmem:[#allocation10 + $0xb8] sm:$0xff]
      %v276 = vld [vmem:[#allocation10 + $0xc0] sm:$0xff]
      %v277 = vld [vmem:[#allocation10 + $0xc8] sm:$0xff]
      %v278 = vld [vmem:[#allocation10 + $0xd0] sm:$0xff]
      %v279 = vld [vmem:[#allocation10 + $0xd8] sm:$0xff]
      %v280 = vld [vmem:[#allocation10 + $0xe0] sm:$0xff]
      %v281 = vld [vmem:[#allocation10 + $0xe8] sm:$0xff]
      %v282 = vld [vmem:[#allocation10 + $0xf0] sm:$0xff]
      %v283 = vld [vmem:[#allocation10 + $0xf8] sm:$0xff]
      %v284 = vld [vmem:[#allocation10 + $0x100] sm:$0xff]
      %v285 = vld [vmem:[#allocation10 + $0x108] sm:$0xff]
      %v286 = vld [vmem:[#allocation10 + $0x110] sm:$0xff]
      %v287 = vld [vmem:[#allocation10 + $0x118] sm:$0xff]
      %v288 = vld [vmem:[#allocation10 + $0x120] sm:$0xff]
      %v289 = vld [vmem:[#allocation10 + $0x128] sm:$0xff]
      %v290 = vld [vmem:[#allocation10 + $0x130] sm:$0xff]
      %v291 = vld [vmem:[#allocation10 + $0x138] sm:$0xff]
      %v292 = vld [vmem:[#allocation10 + $0x140] sm:$0xff]
      %v293 = vld [vmem:[#allocation10 + $0x148] sm:$0xff]
      %v294 = vld [vmem:[#allocation10 + $0x150] sm:$0xff]
      %v295 = vld [vmem:[#allocation10 + $0x158] sm:$0xff]
      %v296 = vld [vmem:[#allocation10 + $0x160] sm:$0xff]
      %v297 = vld [vmem:[#allocation10 + $0x168] sm:$0xff]
      %v298 = vld [vmem:[#allocation10 + $0x170] sm:$0xff]
      %v299 = vld [vmem:[#allocation10 + $0x178] sm:$0xff]
      %v300 = vld [vmem:[#allocation10 + $0x180] sm:$0xff]
      %v301 = vld [vmem:[#allocation10 + $0x188] sm:$0xff]
      %v302 = vld [vmem:[#allocation10 + $0x190] sm:$0xff]
      %v303 = vld [vmem:[#allocation10 + $0x198] sm:$0xff]
      %v304 = vld [vmem:[#allocation10 + $0x1a0] sm:$0xff]
      %v305 = vld [vmem:[#allocation10 + $0x1a8] sm:$0xff]
      %v306 = vld [vmem:[#allocation10 + $0x1b0] sm:$0xff]
      %v307 = vld [vmem:[#allocation10 + $0x1b8] sm:$0xff]
      %v308 = vld [vmem:[#allocation10 + $0x1c0] sm:$0xff]
      %v309 = vld [vmem:[#allocation10 + $0x1c8] sm:$0xff]
      %v310 = vld [vmem:[#allocation10 + $0x1d0] sm:$0xff]
      %v311 = vld [vmem:[#allocation10 + $0x1d8] sm:$0xff]
      %v312 = vld [vmem:[#allocation10 + $0x1e0] sm:$0xff]
      %v313 = vld [vmem:[#allocation10 + $0x1e8] sm:$0xff]
      %v314 = vld [vmem:[#allocation10 + $0x1f0] sm:$0xff]
      %v315 = vld [vmem:[#allocation10 + $0x1f8] sm:$0xff]
      %v316 = vld [vmem:[%s5] sm:$0xf]
      %v318 = vlaneseq
      %v319 = vshrl.u32 %v318, 7
      %v320 = vsub.s32 0, %v319
      %v321 = vrot.slane %v316, %v320
      %v322 = vlaneseq
      %v323 = vshrl.u32 %v322, 7
      %v324 = vsub.s32 1, %v323
      %v325 = vrot.slane %v316, %v324
      %v326 = vlaneseq
      %v327 = vshrl.u32 %v326, 7
      %v328 = vsub.s32 2, %v327
      %v329 = vrot.slane %v316, %v328
      %v330 = vlaneseq
      %v331 = vshrl.u32 %v330, 7
      %v332 = vsub.s32 3, %v331
      %v333 = vrot.slane %v316, %v332
      %338 = vmatprep.subr.mxu0 %v253
      %339 = vmatpush1.msra.mxu0 %v252
      %340 = vmatprep.subr.mxu0 %v257
      %341 = vmatpush1.msra.mxu0 %v256
      %342 = vmatprep.subr.mxu0 %v261
      %343 = vmatpush1.msra.mxu0 %v260
      %344 = vmatprep.subr.mxu0 %v265
      %345 = vmatpush1.msra.mxu0 %v264
      %346 = vmatprep.subr.mxu0 %v269
      %347 = vmatpush1.msra.mxu0 %v268
      %348 = vmatprep.subr.mxu0 %v273
      %349 = vmatpush1.msra.mxu0 %v272
      %350 = vmatprep.subr.mxu0 %v277
      %351 = vmatpush1.msra.mxu0 %v276
      %352 = vmatprep.subr.mxu0 %v281
      %353 = vmatpush1.msra.mxu0 %v280
      %354 = vmatprep.subr.mxu0 %v285
      %355 = vmatpush1.msra.mxu0 %v284
      %356 = vmatprep.subr.mxu0 %v289
      %357 = vmatpush1.msra.mxu0 %v288
      %358 = vmatprep.subr.mxu0 %v293
      %359 = vmatpush1.msra.mxu0 %v292
      %360 = vmatprep.subr.mxu0 %v297
      %361 = vmatpush1.msra.mxu0 %v296
      %362 = vmatprep.subr.mxu0 %v301
      %363 = vmatpush1.msra.mxu0 %v300
      %364 = vmatprep.subr.mxu0 %v305
      %365 = vmatpush1.msra.mxu0 %v304
      %366 = vmatprep.subr.mxu0 %v309
      %367 = vmatpush1.msra.mxu0 %v308
      %368 = vmatprep.subr.mxu0 %v313
      %369 = vmatpush1.msra.mxu0 %v312
      %370 = vmatprep.subr.mxu0 0.0
      %371 = vmatpush1.msra.mxu0 0.0
      %372 = vmatprep.subr.mxu0 0.0
      %373 = vmatpush1.msra.mxu0 0.0
      %374 = vmatprep.subr.mxu0 0.0
      %375 = vmatpush1.msra.mxu0 0.0
      %376 = vmatprep.subr.mxu0 0.0
      %377 = vmatpush1.msra.mxu0 0.0
      %378 = vmatprep.subr.mxu0 0.0
      %379 = vmatpush1.msra.mxu0 0.0
      %380 = vmatprep.subr.mxu0 0.0
      %381 = vmatpush1.msra.mxu0 0.0
      %382 = vmatprep.subr.mxu0 0.0
      %383 = vmatpush1.msra.mxu0 0.0
      %384 = vmatprep.subr.mxu0 0.0
      %385 = vmatpush1.msra.mxu0 0.0
      %386 = vmatprep.subr.mxu0 0.0
      %387 = vmatpush1.msra.mxu0 0.0
      %388 = vmatprep.subr.mxu0 0.0
      %389 = vmatpush1.msra.mxu0 0.0
      %390 = vmatprep.subr.mxu0 0.0
      %391 = vmatpush1.msra.mxu0 0.0
      %392 = vmatprep.subr.mxu0 0.0
      %393 = vmatpush1.msra.mxu0 0.0
      %394 = vmatprep.subr.mxu0 0.0
      %395 = vmatpush1.msra.mxu0 0.0
      %396 = vmatprep.subr.mxu0 0.0
      %397 = vmatpush1.msra.mxu0 0.0
      %398 = vmatprep.subr.mxu0 0.0
      %399 = vmatpush1.msra.mxu0 0.0
      %400 = vmatprep.subr.mxu0 0.0
      %401 = vmatpush1.msra.mxu0 0.0
      %402 = vmatprep.mubr.f32.mxu0 0.0
      %403 = vmatmul.mubr.f32.gmra.mrb[0].mxu0 %v250
      %v404 = vpop.f32.mrb[0].mxu0
      %v405 = vadd.f32 %v321, %v404
      %v406 = vpop.f32.mrb[0].mxu0
      %v407 = vadd.f32 %v325, %v406
      %408 = vmatprep.mubr.f32.mxu0 0.0
      %409 = vmatmul.mubr.f32.gmra.mrb[0].mxu0 %v251
      %v410 = vpop.f32.mrb[0].mxu0
      %v411 = vadd.f32 %v321, %v410
      %v412 = vpop.f32.mrb[0].mxu0
      %v413 = vadd.f32 %v325, %v412
      %414 = vdwg.mxu0
      %415 = vmatprep.subr.mxu0 %v255
      %416 = vmatpush1.msra.mxu0 %v254
      %417 = vmatprep.subr.mxu0 %v259
      %418 = vmatpush1.msra.mxu0 %v258
      %419 = vmatprep.subr.mxu0 %v263
      %420 = vmatpush1.msra.mxu0 %v262
      %421 = vmatprep.subr.mxu0 %v267
      %422 = vmatpush1.msra.mxu0 %v266
      %423 = vmatprep.subr.mxu0 %v271
      %424 = vmatpush1.msra.mxu0 %v270
      %425 = vmatprep.subr.mxu0 %v275
      %426 = vmatpush1.msra.mxu0 %v274
      %427 = vmatprep.subr.mxu0 %v279
      %428 = vmatpush1.msra.mxu0 %v278
      %429 = vmatprep.subr.mxu0 %v283
      %430 = vmatpush1.msra.mxu0 %v282
      %431 = vmatprep.subr.mxu0 %v287
      %432 = vmatpush1.msra.mxu0 %v286
      %433 = vmatprep.subr.mxu0 %v291
      %434 = vmatpush1.msra.mxu0 %v290
      %435 = vmatprep.subr.mxu0 %v295
      %436 = vmatpush1.msra.mxu0 %v294
      %437 = vmatprep.subr.mxu0 %v299
      %438 = vmatpush1.msra.mxu0 %v298
      %439 = vmatprep.subr.mxu0 %v303
      %440 = vmatpush1.msra.mxu0 %v302
      %441 = vmatprep.subr.mxu0 %v307
      %442 = vmatpush1.msra.mxu0 %v306
      %443 = vmatprep.subr.mxu0 %v311
      %444 = vmatpush1.msra.mxu0 %v310
      %445 = vmatprep.subr.mxu0 %v315
      %446 = vmatpush1.msra.mxu0 %v314
      %447 = vmatprep.subr.mxu0 0.0
      %448 = vmatpush1.msra.mxu0 0.0
      %449 = vmatprep.subr.mxu0 0.0
      %450 = vmatpush1.msra.mxu0 0.0
      %451 = vmatprep.subr.mxu0 0.0
      %452 = vmatpush1.msra.mxu0 0.0
      %453 = vmatprep.subr.mxu0 0.0
      %454 = vmatpush1.msra.mxu0 0.0
      %455 = vmatprep.subr.mxu0 0.0
      %456 = vmatpush1.msra.mxu0 0.0
      %457 = vmatprep.subr.mxu0 0.0
      %458 = vmatpush1.msra.mxu0 0.0
      %459 = vmatprep.subr.mxu0 0.0
      %460 = vmatpush1.msra.mxu0 0.0
      %461 = vmatprep.subr.mxu0 0.0
      %462 = vmatpush1.msra.mxu0 0.0
      %463 = vmatprep.subr.mxu0 0.0
      %464 = vmatpush1.msra.mxu0 0.0
      %465 = vmatprep.subr.mxu0 0.0
      %466 = vmatpush1.msra.mxu0 0.0
      %467 = vmatprep.subr.mxu0 0.0
      %468 = vmatpush1.msra.mxu0 0.0
      %469 = vmatprep.subr.mxu0 0.0
      %470 = vmatpush1.msra.mxu0 0.0
      %471 = vmatprep.subr.mxu0 0.0
      %472 = vmatpush1.msra.mxu0 0.0
      %473 = vmatprep.subr.mxu0 0.0
      %474 = vmatpush1.msra.mxu0 0.0
      %475 = vmatprep.subr.mxu0 0.0
      %476 = vmatpush1.msra.mxu0 0.0
      %477 = vmatprep.subr.mxu0 0.0
      %478 = vmatpush1.msra.mxu0 0.0
      %479 = vmatprep.mubr.f32.mxu0 0.0
      %480 = vmatmul.mubr.f32.gmra.mrb[0].mxu0 %v250
      %v481 = vpop.f32.mrb[0].mxu0
      %v482 = vadd.f32 %v329, %v481
      %v483 = vpop.f32.mrb[0].mxu0
      %v484 = vadd.f32 %v333, %v483
      %485 = vmatprep.mubr.f32.mxu0 0.0
      %486 = vmatmul.mubr.f32.gmra.mrb[0].mxu0 %v251
      %v487 = vpop.f32.mrb[0].mxu0
      %v488 = vadd.f32 %v329, %v487
      %v489 = vpop.f32.mrb[0].mxu0
      %v490 = vadd.f32 %v333, %v489
      %491 = vdwg.mxu0
      %492 = vst [vmem:[#allocation3] sm:$0xff] %v405
      %493 = vst [vmem:[#allocation3 + $0x8] sm:$0xff] %v407
      %494 = vst [vmem:[#allocation3 + $0x10] sm:$0xff] %v482
      %495 = vst [vmem:[#allocation3 + $0x18] sm:$0xff] %v484
      %496 = vst [vmem:[#allocation3 + $0x20] sm:$0xff] %v411
      %497 = vst [vmem:[#allocation3 + $0x28] sm:$0xff] %v413
      %498 = vst [vmem:[#allocation3 + $0x30] sm:$0xff] %v488
      %499 = vst [vmem:[#allocation3 + $0x38] sm:$0xff] %v490
      %500 = vst [vmem:[#allocation4] sm:$0xff] 0.0
      %501 = vst [vmem:[#allocation4 + $0x8] sm:$0xff] 0.0
      %502 = vst [vmem:[#allocation5] sm:$0xff] 0.0
      %503 = vst [vmem:[#allocation5 + $0x8] sm:$0xff] 0.0
      %v504 = vld [vmem:[#allocation3] sm:$0xff]
      %v505 = vld [vmem:[#allocation3 + $0x8] sm:$0xff]
      %v506 = vld [vmem:[#allocation3 + $0x10] sm:$0xff]
      %v507 = vld [vmem:[#allocation3 + $0x18] sm:$0xff]
      %v508 = vld [vmem:[#allocation4] sm:$0xff]
      %v509 = vld [vmem:[#allocation13] sm:$0xff]
      %v510 = vld [vmem:[#allocation13 + $0x8] sm:$0xff]
      %v511 = vld [vmem:[#allocation13 + $0x10] sm:$0xff]
      %v512 = vld [vmem:[#allocation13 + $0x18] sm:$0xff]
      %v513 = vld [vmem:[#allocation13 + $0x20] sm:$0xff]
      %v514 = vld [vmem:[#allocation13 + $0x28] sm:$0xff]
      %v515 = vld [vmem:[#allocation13 + $0x30] sm:$0xff]
      %v516 = vld [vmem:[#allocation13 + $0x38] sm:$0xff]
      %v517 = vld [vmem:[#allocation13 + $0x40] sm:$0xff]
      %v518 = vld [vmem:[#allocation13 + $0x48] sm:$0xff]
      %v519 = vld [vmem:[#allocation13 + $0x50] sm:$0xff]
      %v520 = vld [vmem:[#allocation13 + $0x58] sm:$0xff]
      %v521 = vld [vmem:[#allocation13 + $0x60] sm:$0xff]
      %v522 = vld [vmem:[#allocation13 + $0x68] sm:$0xff]
      %v523 = vld [vmem:[#allocation13 + $0x70] sm:$0xff]
      %v524 = vld [vmem:[#allocation13 + $0x78] sm:$0xff]
      %v525 = vld [vmem:[#allocation13 + $0x80] sm:$0xff]
      %v526 = vld [vmem:[#allocation13 + $0x88] sm:$0xff]
      %v527 = vld [vmem:[#allocation13 + $0x90] sm:$0xff]
      %v528 = vld [vmem:[#allocation13 + $0x98] sm:$0xff]
      %v529 = vld [vmem:[#allocation13 + $0xa0] sm:$0xff]
      %v530 = vld [vmem:[#allocation13 + $0xa8] sm:$0xff]
      %v531 = vld [vmem:[#allocation13 + $0xb0] sm:$0xff]
      %v532 = vld [vmem:[#allocation13 + $0xb8] sm:$0xff]
      %v533 = vld [vmem:[#allocation13 + $0xc0] sm:$0xff]
      %v534 = vld [vmem:[#allocation13 + $0xc8] sm:$0xff]
      %v535 = vld [vmem:[#allocation13 + $0xd0] sm:$0xff]
      %v536 = vld [vmem:[#allocation13 + $0xd8] sm:$0xff]
      %v537 = vld [vmem:[#allocation13 + $0xe0] sm:$0xff]
      %v538 = vld [vmem:[#allocation13 + $0xe8] sm:$0xff]
      %v539 = vld [vmem:[#allocation13 + $0xf0] sm:$0xff]
      %v540 = vld [vmem:[#allocation13 + $0xf8] sm:$0xff]
      %v541 = vld [vmem:[#allocation13 + $0x100] sm:$0xff]
      %v542 = vld [vmem:[#allocation13 + $0x108] sm:$0xff]
      %v543 = vld [vmem:[#allocation13 + $0x110] sm:$0xff]
      %v544 = vld [vmem:[#allocation13 + $0x118] sm:$0xff]
      %v545 = vld [vmem:[#allocation13 + $0x120] sm:$0xff]
      %v546 = vld [vmem:[#allocation13 + $0x128] sm:$0xff]
      %v547 = vld [vmem:[#allocation13 + $0x130] sm:$0xff]
      %v548 = vld [vmem:[#allocation13 + $0x138] sm:$0xff]
      %v549 = vld [vmem:[#allocation13 + $0x140] sm:$0xff]
      %v550 = vld [vmem:[#allocation13 + $0x148] sm:$0xff]
      %v551 = vld [vmem:[#allocation13 + $0x150] sm:$0xff]
      %v552 = vld [vmem:[#allocation13 + $0x158] sm:$0xff]
      %v553 = vld [vmem:[#allocation13 + $0x160] sm:$0xff]
      %v554 = vld [vmem:[#allocation13 + $0x168] sm:$0xff]
      %v555 = vld [vmem:[#allocation13 + $0x170] sm:$0xff]
      %v556 = vld [vmem:[#allocation13 + $0x178] sm:$0xff]
      %v557 = vld [vmem:[#allocation13 + $0x180] sm:$0xff]
      %v558 = vld [vmem:[#allocation13 + $0x188] sm:$0xff]
      %v559 = vld [vmem:[#allocation13 + $0x190] sm:$0xff]
      %v560 = vld [vmem:[#allocation13 + $0x198] sm:$0xff]
      %v561 = vld [vmem:[#allocation13 + $0x1a0] sm:$0xff]
      %v562 = vld [vmem:[#allocation13 + $0x1a8] sm:$0xff]
      %v563 = vld [vmem:[#allocation13 + $0x1b0] sm:$0xff]
      %v564 = vld [vmem:[#allocation13 + $0x1b8] sm:$0xff]
      %v565 = vld [vmem:[#allocation13 + $0x1c0] sm:$0xff]
      %v566 = vld [vmem:[#allocation13 + $0x1c8] sm:$0xff]
      %v567 = vld [vmem:[#allocation13 + $0x1d0] sm:$0xff]
      %v568 = vld [vmem:[#allocation13 + $0x1d8] sm:$0xff]
      %v569 = vld [vmem:[#allocation13 + $0x1e0] sm:$0xff]
      %v570 = vld [vmem:[#allocation13 + $0x1e8] sm:$0xff]
      %v571 = vld [vmem:[#allocation13 + $0x1f0] sm:$0xff]
      %v572 = vld [vmem:[#allocation13 + $0x1f8] sm:$0xff]
      %573 = vmatprep.subr.mxu0 %v510
      %574 = vmatpush1.msra.mxu0 %v509
      %575 = vmatprep.subr.mxu0 %v514
      %576 = vmatpush1.msra.mxu0 %v513
      %577 = vmatprep.subr.mxu0 %v518
      %578 = vmatpush1.msra.mxu0 %v517
      %579 = vmatprep.subr.mxu0 %v522
      %580 = vmatpush1.msra.mxu0 %v521
      %581 = vmatprep.subr.mxu0 %v526
      %582 = vmatpush1.msra.mxu0 %v525
      %583 = vmatprep.subr.mxu0 %v530
      %584 = vmatpush1.msra.mxu0 %v529
      %585 = vmatprep.subr.mxu0 %v534
      %586 = vmatpush1.msra.mxu0 %v533
      %587 = vmatprep.subr.mxu0 %v538
      %588 = vmatpush1.msra.mxu0 %v537
      %589 = vmatprep.subr.mxu0 %v542
      %590 = vmatpush1.msra.mxu0 %v541
      %591 = vmatprep.subr.mxu0 %v546
      %592 = vmatpush1.msra.mxu0 %v545
      %593 = vmatprep.subr.mxu0 %v550
      %594 = vmatpush1.msra.mxu0 %v549
      %595 = vmatprep.subr.mxu0 %v554
      %596 = vmatpush1.msra.mxu0 %v553
      %597 = vmatprep.subr.mxu0 %v558
      %598 = vmatpush1.msra.mxu0 %v557
      %599 = vmatprep.subr.mxu0 %v562
      %600 = vmatpush1.msra.mxu0 %v561
      %601 = vmatprep.subr.mxu0 %v566
      %602 = vmatpush1.msra.mxu0 %v565
      %603 = vmatprep.subr.mxu0 %v570
      %604 = vmatpush1.msra.mxu0 %v569
      %605 = vmatprep.subr.mxu0 0.0
      %606 = vmatpush1.msra.mxu0 0.0
      %607 = vmatprep.subr.mxu0 0.0
      %608 = vmatpush1.msra.mxu0 0.0
      %609 = vmatprep.subr.mxu0 0.0
      %610 = vmatpush1.msra.mxu0 0.0
      %611 = vmatprep.subr.mxu0 0.0
      %612 = vmatpush1.msra.mxu0 0.0
      %613 = vmatprep.subr.mxu0 0.0
      %614 = vmatpush1.msra.mxu0 0.0
      %615 = vmatprep.subr.mxu0 0.0
      %616 = vmatpush1.msra.mxu0 0.0
      %617 = vmatprep.subr.mxu0 0.0
      %618 = vmatpush1.msra.mxu0 0.0
      %619 = vmatprep.subr.mxu0 0.0
      %620 = vmatpush1.msra.mxu0 0.0
      %621 = vmatprep.subr.mxu0 0.0
      %622 = vmatpush1.msra.mxu0 0.0
      %623 = vmatprep.subr.mxu0 0.0
      %624 = vmatpush1.msra.mxu0 0.0
      %625 = vmatprep.subr.mxu0 0.0
      %626 = vmatpush1.msra.mxu0 0.0
      %627 = vmatprep.subr.mxu0 0.0
      %628 = vmatpush1.msra.mxu0 0.0
      %629 = vmatprep.subr.mxu0 0.0
      %630 = vmatpush1.msra.mxu0 0.0
      %631 = vmatprep.subr.mxu0 0.0
      %632 = vmatpush1.msra.mxu0 0.0
      %633 = vmatprep.subr.mxu0 0.0
      %634 = vmatpush1.msra.mxu0 0.0
      %635 = vmatprep.subr.mxu0 0.0
      %636 = vmatpush1.msra.mxu0 0.0
      %637 = vmatprep.mubr.f32.mxu0 0.0
      %638 = vmatmul.mubr.f32.gmra.mrb[0].mxu0 %v508
      %v639 = vpop.f32.mrb[0].mxu0
      %v640 = vadd.f32 0.0, %v639
      %v641 = vpop.f32.mrb[0].mxu0
      %v642 = vadd.f32 0.0, %v641
      %643 = vdwg.mxu0
      %644 = vmatprep.subr.mxu0 %v512
      %645 = vmatpush1.msra.mxu0 %v511
      %646 = vmatprep.subr.mxu0 %v516
      %647 = vmatpush1.msra.mxu0 %v515
      %648 = vmatprep.subr.mxu0 %v520
      %649 = vmatpush1.msra.mxu0 %v519
      %650 = vmatprep.subr.mxu0 %v524
      %651 = vmatpush1.msra.mxu0 %v523
      %652 = vmatprep.subr.mxu0 %v528
      %653 = vmatpush1.msra.mxu0 %v527
      %654 = vmatprep.subr.mxu0 %v532
      %655 = vmatpush1.msra.mxu0 %v531
      %656 = vmatprep.subr.mxu0 %v536
      %657 = vmatpush1.msra.mxu0 %v535
      %658 = vmatprep.subr.mxu0 %v540
      %659 = vmatpush1.msra.mxu0 %v539
      %660 = vmatprep.subr.mxu0 %v544
      %661 = vmatpush1.msra.mxu0 %v543
      %662 = vmatprep.subr.mxu0 %v548
      %663 = vmatpush1.msra.mxu0 %v547
      %664 = vmatprep.subr.mxu0 %v552
      %665 = vmatpush1.msra.mxu0 %v551
      %666 = vmatprep.subr.mxu0 %v556
      %667 = vmatpush1.msra.mxu0 %v555
      %668 = vmatprep.subr.mxu0 %v560
      %669 = vmatpush1.msra.mxu0 %v559
      %670 = vmatprep.subr.mxu0 %v564
      %671 = vmatpush1.msra.mxu0 %v563
      %672 = vmatprep.subr.mxu0 %v568
      %673 = vmatpush1.msra.mxu0 %v567
      %674 = vmatprep.subr.mxu0 %v572
      %675 = vmatpush1.msra.mxu0 %v571
      %676 = vmatprep.subr.mxu0 0.0
      %677 = vmatpush1.msra.mxu0 0.0
      %678 = vmatprep.subr.mxu0 0.0
      %679 = vmatpush1.msra.mxu0 0.0
      %680 = vmatprep.subr.mxu0 0.0
      %681 = vmatpush1.msra.mxu0 0.0
      %682 = vmatprep.subr.mxu0 0.0
      %683 = vmatpush1.msra.mxu0 0.0
      %684 = vmatprep.subr.mxu0 0.0
      %685 = vmatpush1.msra.mxu0 0.0
      %686 = vmatprep.subr.mxu0 0.0
      %687 = vmatpush1.msra.mxu0 0.0
      %688 = vmatprep.subr.mxu0 0.0
      %689 = vmatpush1.msra.mxu0 0.0
      %690 = vmatprep.subr.mxu0 0.0
      %691 = vmatpush1.msra.mxu0 0.0
      %692 = vmatprep.subr.mxu0 0.0
      %693 = vmatpush1.msra.mxu0 0.0
      %694 = vmatprep.subr.mxu0 0.0
      %695 = vmatpush1.msra.mxu0 0.0
      %696 = vmatprep.subr.mxu0 0.0
      %697 = vmatpush1.msra.mxu0 0.0
      %698 = vmatprep.subr.mxu0 0.0
      %699 = vmatpush1.msra.mxu0 0.0
      %700 = vmatprep.subr.mxu0 0.0
      %701 = vmatpush1.msra.mxu0 0.0
      %702 = vmatprep.subr.mxu0 0.0
      %703 = vmatpush1.msra.mxu0 0.0
      %704 = vmatprep.subr.mxu0 0.0
      %705 = vmatpush1.msra.mxu0 0.0
      %706 = vmatprep.subr.mxu0 0.0
      %707 = vmatpush1.msra.mxu0 0.0
      %708 = vmatprep.mubr.f32.mxu0 0.0
      %709 = vmatmul.mubr.f32.gmra.mrb[0].mxu0 %v508
      %v710 = vpop.f32.mrb[0].mxu0
      %v711 = vadd.f32 0.0, %v710
      %v712 = vpop.f32.mrb[0].mxu0
      %v713 = vadd.f32 0.0, %v712
      %714 = vdwg.mxu0
      %v715 = vadd.f32 %v504, %v640
      %v716 = vadd.f32 %v505, %v642
      %v717 = vadd.f32 %v506, %v711
      %v718 = vadd.f32 %v507, %v713
      %v719 = vxor.u32 %v715, 2147483648
      %v720 = vmul.f32 %v719, 1.442695
      %v721 = vpow.pop %v720
      %v722 = vadd.f32 %v721, 1.0
      %v723 = vrcp.pop %v722
      %v724 = vmul.f32 1.0, %v723
      %v725 = vxor.u32 %v716, 2147483648
      %v726 = vmul.f32 %v725, 1.442695
      %v727 = vpow.pop %v726
      %v728 = vadd.f32 %v727, 1.0
      %v729 = vrcp.pop %v728
      %v730 = vmul.f32 1.0, %v729
      %v731 = vtanh.pop %v717
      %v732 = vxor.u32 %v718, 2147483648
      %v733 = vmul.f32 %v732, 1.442695
      %v734 = vpow.pop %v733
      %v735 = vadd.f32 %v734, 1.0
      %v736 = vrcp.pop %v735
      %v737 = vmul.f32 1.0, %v736
      %v738 = vld [vmem:[#allocation5] sm:$0xff]
      %v739 = vmul.f32 %v730, %v738
      %v740 = vmul.f32 %v724, %v731
      %v741 = vadd.f32 %v739, %v740
      %742 = vst [vmem:[#allocation5] sm:$0xff] %v741
      %v743 = vtanh.pop %v741
      %v744 = vmul.f32 %v737, %v743
      %745 = vst [vmem:[#allocation4] sm:$0xff] %v744
      %v746 = vld [vmem:[#allocation15] sm:$0xff]
      %v747 = vld [vmem:[#allocation15 + $0x8] sm:$0xff]
      %v748 = vld [vmem:[#allocation15 + $0x10] sm:$0xff]
      %v749 = vld [vmem:[#allocation15 + $0x18] sm:$0xff]
      %v750 = vld [vmem:[#allocation15 + $0x20] sm:$0xff]
      %v751 = vld [vmem:[#allocation15 + $0x28] sm:$0xff]
      %v752 = vld [vmem:[#allocation15 + $0x30] sm:$0xff]
      %v753 = vld [vmem:[#allocation15 + $0x38] sm:$0xff]
      %v754 = vld [vmem:[#allocation15 + $0x40] sm:$0xff]
      %v755 = vld [vmem:[#allocation15 + $0x48] sm:$0xff]
      %v756 = vld [vmem:[#allocation15 + $0x50] sm:$0xff]
      %v757 = vld [vmem:[#allocation15 + $0x58] sm:$0xff]
      %v758 = vld [vmem:[#allocation15 + $0x60] sm:$0xff]
      %v759 = vld [vmem:[#allocation15 + $0x68] sm:$0xff]
      %v760 = vld [vmem:[#allocation15 + $0x70] sm:$0xff]
      %v761 = vld [vmem:[#allocation15 + $0x78] sm:$0xff]
      %v762 = vld [vmem:[#allocation15 + $0x80] sm:$0xff]
      %v763 = vld [vmem:[#allocation15 + $0x88] sm:$0xff]
      %v764 = vld [vmem:[#allocation15 + $0x90] sm:$0xff]
      %v765 = vld [vmem:[#allocation15 + $0x98] sm:$0xff]
      %v766 = vld [vmem:[#allocation15 + $0xa0] sm:$0xff]
      %v767 = vld [vmem:[#allocation15 + $0xa8] sm:$0xff]
      %v768 = vld [vmem:[#allocation15 + $0xb0] sm:$0xff]
      %v769 = vld [vmem:[#allocation15 + $0xb8] sm:$0xff]
      %v770 = vld [vmem:[#allocation15 + $0xc0] sm:$0xff]
      %v771 = vld [vmem:[#allocation15 + $0xc8] sm:$0xff]
      %v772 = vld [vmem:[#allocation15 + $0xd0] sm:$0xff]
      %v773 = vld [vmem:[#allocation15 + $0xd8] sm:$0xff]
      %v774 = vld [vmem:[#allocation15 + $0xe0] sm:$0xff]
      %v775 = vld [vmem:[#allocation15 + $0xe8] sm:$0xff]
      %v776 = vld [vmem:[#allocation15 + $0xf0] sm:$0xff]
      %v777 = vld [vmem:[#allocation15 + $0xf8] sm:$0xff]
      %v778 = vld [vmem:[#allocation15 + $0x100] sm:$0xff]
      %v779 = vld [vmem:[#allocation15 + $0x108] sm:$0xff]
      %v780 = vld [vmem:[#allocation15 + $0x110] sm:$0xff]
      %v781 = vld [vmem:[#allocation15 + $0x118] sm:$0xff]
      %v782 = vld [vmem:[#allocation15 + $0x120] sm:$0xff]
      %v783 = vld [vmem:[#allocation15 + $0x128] sm:$0xff]
      %v784 = vld [vmem:[#allocation15 + $0x130] sm:$0xff]
      %v785 = vld [vmem:[#allocation15 + $0x138] sm:$0xff]
      %v786 = vld [vmem:[#allocation15 + $0x140] sm:$0xff]
      %v787 = vld [vmem:[#allocation15 + $0x148] sm:$0xff]
      %v788 = vld [vmem:[#allocation15 + $0x150] sm:$0xff]
      %v789 = vld [vmem:[#allocation15 + $0x158] sm:$0xff]
      %v790 = vld [vmem:[#allocation15 + $0x160] sm:$0xff]
      %v791 = vld [vmem:[#allocation15 + $0x168] sm:$0xff]
      %v792 = vld [vmem:[#allocation15 + $0x170] sm:$0xff]
      %v793 = vld [vmem:[#allocation15 + $0x178] sm:$0xff]
      %v794 = vld [vmem:[#allocation15 + $0x180] sm:$0xff]
      %v795 = vld [vmem:[#allocation15 + $0x188] sm:$0xff]
      %v796 = vld [vmem:[#allocation15 + $0x190] sm:$0xff]
      %v797 = vld [vmem:[#allocation15 + $0x198] sm:$0xff]
      %v798 = vld [vmem:[#allocation15 + $0x1a0] sm:$0xff]
      %v799 = vld [vmem:[#allocation15 + $0x1a8] sm:$0xff]
      %v800 = vld [vmem:[#allocation15 + $0x1b0] sm:$0xff]
      %v801 = vld [vmem:[#allocation15 + $0x1b8] sm:$0xff]
      %v802 = vld [vmem:[#allocation15 + $0x1c0] sm:$0xff]
      %v803 = vld [vmem:[#allocation15 + $0x1c8] sm:$0xff]
      %v804 = vld [vmem:[#allocation15 + $0x1d0] sm:$0xff]
      %v805 = vld [vmem:[#allocation15 + $0x1d8] sm:$0xff]
      %v806 = vld [vmem:[#allocation15 + $0x1e0] sm:$0xff]
      %v807 = vld [vmem:[#allocation15 + $0x1e8] sm:$0xff]
      %v808 = vld [vmem:[#allocation15 + $0x1f0] sm:$0xff]
      %v809 = vld [vmem:[#allocation15 + $0x1f8] sm:$0xff]
      %s810 = scalar_lea.vmem [#allocation4], 8
      %v811 = vld [vmem:[%s810] sm:$0xff]
      %v812 = vld [vmem:[#allocation16] sm:$0xff]
      %v813 = vld [vmem:[#allocation16 + $0x8] sm:$0xff]
      %v814 = vld [vmem:[#allocation16 + $0x10] sm:$0xff]
      %v815 = vld [vmem:[#allocation16 + $0x18] sm:$0xff]
      %v816 = vld [vmem:[#allocation16 + $0x20] sm:$0xff]
      %v817 = vld [vmem:[#allocation16 + $0x28] sm:$0xff]
      %v818 = vld [vmem:[#allocation16 + $0x30] sm:$0xff]
      %v819 = vld [vmem:[#allocation16 + $0x38] sm:$0xff]
      %v820 = vld [vmem:[#allocation16 + $0x40] sm:$0xff]
      %v821 = vld [vmem:[#allocation16 + $0x48] sm:$0xff]
      %v822 = vld [vmem:[#allocation16 + $0x50] sm:$0xff]
      %v823 = vld [vmem:[#allocation16 + $0x58] sm:$0xff]
      %v824 = vld [vmem:[#allocation16 + $0x60] sm:$0xff]
      %v825 = vld [vmem:[#allocation16 + $0x68] sm:$0xff]
      %v826 = vld [vmem:[#allocation16 + $0x70] sm:$0xff]
      %v827 = vld [vmem:[#allocation16 + $0x78] sm:$0xff]
      %v828 = vld [vmem:[#allocation16 + $0x80] sm:$0xff]
      %v829 = vld [vmem:[#allocation16 + $0x88] sm:$0xff]
      %v830 = vld [vmem:[#allocation16 + $0x90] sm:$0xff]
      %v831 = vld [vmem:[#allocation16 + $0x98] sm:$0xff]
      %v832 = vld [vmem:[#allocation16 + $0xa0] sm:$0xff]
      %v833 = vld [vmem:[#allocation16 + $0xa8] sm:$0xff]
      %v834 = vld [vmem:[#allocation16 + $0xb0] sm:$0xff]
      %v835 = vld [vmem:[#allocation16 + $0xb8] sm:$0xff]
      %v836 = vld [vmem:[#allocation16 + $0xc0] sm:$0xff]
      %v837 = vld [vmem:[#allocation16 + $0xc8] sm:$0xff]
      %v838 = vld [vmem:[#allocation16 + $0xd0] sm:$0xff]
      %v839 = vld [vmem:[#allocation16 + $0xd8] sm:$0xff]
      %v840 = vld [vmem:[#allocation16 + $0xe0] sm:$0xff]
      %v841 = vld [vmem:[#allocation16 + $0xe8] sm:$0xff]
      %v842 = vld [vmem:[#allocation16 + $0xf0] sm:$0xff]
      %v843 = vld [vmem:[#allocation16 + $0xf8] sm:$0xff]
      %v844 = vld [vmem:[#allocation16 + $0x100] sm:$0xff]
      %v845 = vld [vmem:[#allocation16 + $0x108] sm:$0xff]
      %v846 = vld [vmem:[#allocation16 + $0x110] sm:$0xff]
      %v847 = vld [vmem:[#allocation16 + $0x118] sm:$0xff]
      %v848 = vld [vmem:[#allocation16 + $0x120] sm:$0xff]
      %v849 = vld [vmem:[#allocation16 + $0x128] sm:$0xff]
      %v850 = vld [vmem:[#allocation16 + $0x130] sm:$0xff]
      %v851 = vld [vmem:[#allocation16 + $0x138] sm:$0xff]
      %v852 = vld [vmem:[#allocation16 + $0x140] sm:$0xff]
      %v853 = vld [vmem:[#allocation16 + $0x148] sm:$0xff]
      %v854 = vld [vmem:[#allocation16 + $0x150] sm:$0xff]
      %v855 = vld [vmem:[#allocation16 + $0x158] sm:$0xff]
      %v856 = vld [vmem:[#allocation16 + $0x160] sm:$0xff]
      %v857 = vld [vmem:[#allocation16 + $0x168] sm:$0xff]
      %v858 = vld [vmem:[#allocation16 + $0x170] sm:$0xff]
      %v859 = vld [vmem:[#allocation16 + $0x178] sm:$0xff]
      %v860 = vld [vmem:[#allocation16 + $0x180] sm:$0xff]
      %v861 = vld [vmem:[#allocation16 + $0x188] sm:$0xff]
      %v862 = vld [vmem:[#allocation16 + $0x190] sm:$0xff]
      %v863 = vld [vmem:[#allocation16 + $0x198] sm:$0xff]
      %v864 = vld [vmem:[#allocation16 + $0x1a0] sm:$0xff]
      %v865 = vld [vmem:[#allocation16 + $0x1a8] sm:$0xff]
      %v866 = vld [vmem:[#allocation16 + $0x1b0] sm:$0xff]
      %v867 = vld [vmem:[#allocation16 + $0x1b8] sm:$0xff]
      %v868 = vld [vmem:[#allocation16 + $0x1c0] sm:$0xff]
      %v869 = vld [vmem:[#allocation16 + $0x1c8] sm:$0xff]
      %v870 = vld [vmem:[#allocation16 + $0x1d0] sm:$0xff]
      %v871 = vld [vmem:[#allocation16 + $0x1d8] sm:$0xff]
      %v872 = vld [vmem:[#allocation16 + $0x1e0] sm:$0xff]
      %v873 = vld [vmem:[#allocation16 + $0x1e8] sm:$0xff]
      %v874 = vld [vmem:[#allocation16 + $0x1f0] sm:$0xff]
      %v875 = vld [vmem:[#allocation16 + $0x1f8] sm:$0xff]
      %876 = vmatprep.subr.mxu0 %v813
      %877 = vmatpush1.msra.mxu0 %v812
      %878 = vmatprep.subr.mxu0 %v817
      %879 = vmatpush1.msra.mxu0 %v816
      %880 = vmatprep.subr.mxu0 %v821
      %881 = vmatpush1.msra.mxu0 %v820
      %882 = vmatprep.subr.mxu0 %v825
      %883 = vmatpush1.msra.mxu0 %v824
      %884 = vmatprep.subr.mxu0 %v829
      %885 = vmatpush1.msra.mxu0 %v828
      %886 = vmatprep.subr.mxu0 %v833
      %887 = vmatpush1.msra.mxu0 %v832
      %888 = vmatprep.subr.mxu0 %v837
      %889 = vmatpush1.msra.mxu0 %v836
      %890 = vmatprep.subr.mxu0 %v841
      %891 = vmatpush1.msra.mxu0 %v840
      %892 = vmatprep.subr.mxu0 %v845
      %893 = vmatpush1.msra.mxu0 %v844
      %894 = vmatprep.subr.mxu0 %v849
      %895 = vmatpush1.msra.mxu0 %v848
      %896 = vmatprep.subr.mxu0 %v853
      %897 = vmatpush1.msra.mxu0 %v852
      %898 = vmatprep.subr.mxu0 %v857
      %899 = vmatpush1.msra.mxu0 %v856
      %900 = vmatprep.subr.mxu0 %v861
      %901 = vmatpush1.msra.mxu0 %v860
      %902 = vmatprep.subr.mxu0 %v865
      %903 = vmatpush1.msra.mxu0 %v864
      %904 = vmatprep.subr.mxu0 %v869
      %905 = vmatpush1.msra.mxu0 %v868
      %906 = vmatprep.subr.mxu0 %v873
      %907 = vmatpush1.msra.mxu0 %v872
      %908 = vmatprep.subr.mxu0 0.0
      %909 = vmatpush1.msra.mxu0 0.0
      %910 = vmatprep.subr.mxu0 0.0
      %911 = vmatpush1.msra.mxu0 0.0
      %912 = vmatprep.subr.mxu0 0.0
      %913 = vmatpush1.msra.mxu0 0.0
      %914 = vmatprep.subr.mxu0 0.0
      %915 = vmatpush1.msra.mxu0 0.0
      %916 = vmatprep.subr.mxu0 0.0
      %917 = vmatpush1.msra.mxu0 0.0
      %918 = vmatprep.subr.mxu0 0.0
      %919 = vmatpush1.msra.mxu0 0.0
      %920 = vmatprep.subr.mxu0 0.0
      %921 = vmatpush1.msra.mxu0 0.0
      %922 = vmatprep.subr.mxu0 0.0
      %923 = vmatpush1.msra.mxu0 0.0
      %924 = vmatprep.subr.mxu0 0.0
      %925 = vmatpush1.msra.mxu0 0.0
      %926 = vmatprep.subr.mxu0 0.0
      %927 = vmatpush1.msra.mxu0 0.0
      %928 = vmatprep.subr.mxu0 0.0
      %929 = vmatpush1.msra.mxu0 0.0
      %930 = vmatprep.subr.mxu0 0.0
      %931 = vmatpush1.msra.mxu0 0.0
      %932 = vmatprep.subr.mxu0 0.0
      %933 = vmatpush1.msra.mxu0 0.0
      %934 = vmatprep.subr.mxu0 0.0
      %935 = vmatpush1.msra.mxu0 0.0
      %936 = vmatprep.subr.mxu0 0.0
      %937 = vmatpush1.msra.mxu0 0.0
      %938 = vmatprep.subr.mxu0 0.0
      %939 = vmatpush1.msra.mxu0 0.0
      %940 = vmatprep.mubr.f32.mxu0 0.0
      %941 = vmatmul.mubr.f32.gmra.mrb[0].mxu0 %v811
      %v942 = vpop.f32.mrb[0].mxu0
      %v943 = vadd.f32 0.0, %v942
      %v944 = vpop.f32.mrb[0].mxu0
      %v945 = vadd.f32 0.0, %v944
      %946 = vdwg.mxu0
      %947 = vmatprep.subr.mxu0 %v815
      %948 = vmatpush1.msra.mxu0 %v814
      %949 = vmatprep.subr.mxu0 %v819
      %950 = vmatpush1.msra.mxu0 %v818
      %951 = vmatprep.subr.mxu0 %v823
      %952 = vmatpush1.msra.mxu0 %v822
      %953 = vmatprep.subr.mxu0 %v827
      %954 = vmatpush1.msra.mxu0 %v826
      %955 = vmatprep.subr.mxu0 %v831
      %956 = vmatpush1.msra.mxu0 %v830
      %957 = vmatprep.subr.mxu0 %v835
      %958 = vmatpush1.msra.mxu0 %v834
      %959 = vmatprep.subr.mxu0 %v839
      %960 = vmatpush1.msra.mxu0 %v838
      %961 = vmatprep.subr.mxu0 %v843
      %962 = vmatpush1.msra.mxu0 %v842
      %963 = vmatprep.subr.mxu0 %v847
      %964 = vmatpush1.msra.mxu0 %v846
      %965 = vmatprep.subr.mxu0 %v851
      %966 = vmatpush1.msra.mxu0 %v850
      %967 = vmatprep.subr.mxu0 %v855
      %968 = vmatpush1.msra.mxu0 %v854
      %969 = vmatprep.subr.mxu0 %v859
      %970 = vmatpush1.msra.mxu0 %v858
      %971 = vmatprep.subr.mxu0 %v863
      %972 = vmatpush1.msra.mxu0 %v862
      %973 = vmatprep.subr.mxu0 %v867
      %974 = vmatpush1.msra.mxu0 %v866
      %975 = vmatprep.subr.mxu0 %v871
      %976 = vmatpush1.msra.mxu0 %v870
      %977 = vmatprep.subr.mxu0 %v875
      %978 = vmatpush1.msra.mxu0 %v874
      %979 = vmatprep.subr.mxu0 0.0
      %980 = vmatpush1.msra.mxu0 0.0
      %981 = vmatprep.subr.mxu0 0.0
      %982 = vmatpush1.msra.mxu0 0.0
      %983 = vmatprep.subr.mxu0 0.0
      %984 = vmatpush1.msra.mxu0 0.0
      %985 = vmatprep.subr.mxu0 0.0
      %986 = vmatpush1.msra.mxu0 0.0
      %987 = vmatprep.subr.mxu0 0.0
      %988 = vmatpush1.msra.mxu0 0.0
      %989 = vmatprep.subr.mxu0 0.0
      %990 = vmatpush1.msra.mxu0 0.0
      %991 = vmatprep.subr.mxu0 0.0
      %992 = vmatpush1.msra.mxu0 0.0
      %993 = vmatprep.subr.mxu0 0.0
      %994 = vmatpush1.msra.mxu0 0.0
      %995 = vmatprep.subr.mxu0 0.0
      %996 = vmatpush1.msra.mxu0 0.0
      %997 = vmatprep.subr.mxu0 0.0
      %998 = vmatpush1.msra.mxu0 0.0
      %999 = vmatprep.subr.mxu0 0.0
      %1000 = vmatpush1.msra.mxu0 0.0
      %1001 = vmatprep.subr.mxu0 0.0
      %1002 = vmatpush1.msra.mxu0 0.0
      %1003 = vmatprep.subr.mxu0 0.0
      %1004 = vmatpush1.msra.mxu0 0.0
      %1005 = vmatprep.subr.mxu0 0.0
      %1006 = vmatpush1.msra.mxu0 0.0
      %1007 = vmatprep.subr.mxu0 0.0
      %1008 = vmatpush1.msra.mxu0 0.0
      %1009 = vmatprep.subr.mxu0 0.0
      %1010 = vmatpush1.msra.mxu0 0.0
      %1011 = vmatprep.mubr.f32.mxu0 0.0
      %1012 = vmatmul.mubr.f32.gmra.mrb[0].mxu0 %v811
      %v1013 = vpop.f32.mrb[0].mxu0
      %v1014 = vadd.f32 0.0, %v1013
      %v1015 = vpop.f32.mrb[0].mxu0
      %v1016 = vadd.f32 0.0, %v1015
      %1017 = vdwg.mxu0
      %1018 = vmatprep.subr.mxu0 %v747
      %1019 = vmatpush1.msra.mxu0 %v746
      %1020 = vmatprep.subr.mxu0 %v751
      %1021 = vmatpush1.msra.mxu0 %v750
      %1022 = vmatprep.subr.mxu0 %v755
      %1023 = vmatpush1.msra.mxu0 %v754
      %1024 = vmatprep.subr.mxu0 %v759
      %1025 = vmatpush1.msra.mxu0 %v758
      %1026 = vmatprep.subr.mxu0 %v763
      %1027 = vmatpush1.msra.mxu0 %v762
      %1028 = vmatprep.subr.mxu0 %v767
      %1029 = vmatpush1.msra.mxu0 %v766
      %1030 = vmatprep.subr.mxu0 %v771
      %1031 = vmatpush1.msra.mxu0 %v770
      %1032 = vmatprep.subr.mxu0 %v775
      %1033 = vmatpush1.msra.mxu0 %v774
      %1034 = vmatprep.subr.mxu0 %v779
      %1035 = vmatpush1.msra.mxu0 %v778
      %1036 = vmatprep.subr.mxu0 %v783
      %1037 = vmatpush1.msra.mxu0 %v782
      %1038 = vmatprep.subr.mxu0 %v787
      %1039 = vmatpush1.msra.mxu0 %v786
      %1040 = vmatprep.subr.mxu0 %v791
      %1041 = vmatpush1.msra.mxu0 %v790
      %1042 = vmatprep.subr.mxu0 %v795
      %1043 = vmatpush1.msra.mxu0 %v794
      %1044 = vmatprep.subr.mxu0 %v799
      %1045 = vmatpush1.msra.mxu0 %v798
      %1046 = vmatprep.subr.mxu0 %v803
      %1047 = vmatpush1.msra.mxu0 %v802
      %1048 = vmatprep.subr.mxu0 %v807
      %1049 = vmatpush1.msra.mxu0 %v806
      %1050 = vmatprep.subr.mxu0 0.0
      %1051 = vmatpush1.msra.mxu0 0.0
      %1052 = vmatprep.subr.mxu0 0.0
      %1053 = vmatpush1.msra.mxu0 0.0
      %1054 = vmatprep.subr.mxu0 0.0
      %1055 = vmatpush1.msra.mxu0 0.0
      %1056 = vmatprep.subr.mxu0 0.0
      %1057 = vmatpush1.msra.mxu0 0.0
      %1058 = vmatprep.subr.mxu0 0.0
      %1059 = vmatpush1.msra.mxu0 0.0
      %1060 = vmatprep.subr.mxu0 0.0
      %1061 = vmatpush1.msra.mxu0 0.0
      %1062 = vmatprep.subr.mxu0 0.0
      %1063 = vmatpush1.msra.mxu0 0.0
      %1064 = vmatprep.subr.mxu0 0.0
      %1065 = vmatpush1.msra.mxu0 0.0
      %1066 = vmatprep.subr.mxu0 0.0
      %1067 = vmatpush1.msra.mxu0 0.0
      %1068 = vmatprep.subr.mxu0 0.0
      %1069 = vmatpush1.msra.mxu0 0.0
      %1070 = vmatprep.subr.mxu0 0.0
      %1071 = vmatpush1.msra.mxu0 0.0
      %1072 = vmatprep.subr.mxu0 0.0
      %1073 = vmatpush1.msra.mxu0 0.0
      %1074 = vmatprep.subr.mxu0 0.0
      %1075 = vmatpush1.msra.mxu0 0.0
      %1076 = vmatprep.subr.mxu0 0.0
      %1077 = vmatpush1.msra.mxu0 0.0
      %1078 = vmatprep.subr.mxu0 0.0
      %1079 = vmatpush1.msra.mxu0 0.0
      %1080 = vmatprep.subr.mxu0 0.0
      %1081 = vmatpush1.msra.mxu0 0.0
      %1082 = vmatprep.mubr.f32.mxu0 0.0
      %1083 = vmatmul.mubr.f32.gmra.mrb[0].mxu0 %v744
      %v1084 = vpop.f32.mrb[0].mxu0
      %v1085 = vadd.f32 %v943, %v1084
      %v1086 = vpop.f32.mrb[0].mxu0
      %v1087 = vadd.f32 %v945, %v1086
      %1088 = vdwg.mxu0
      %1089 = vmatprep.subr.mxu0 %v749
      %1090 = vmatpush1.msra.mxu0 %v748
      %1091 = vmatprep.subr.mxu0 %v753
      %1092 = vmatpush1.msra.mxu0 %v752
      %1093 = vmatprep.subr.mxu0 %v757
      %1094 = vmatpush1.msra.mxu0 %v756
      %1095 = vmatprep.subr.mxu0 %v761
      %1096 = vmatpush1.msra.mxu0 %v760
      %1097 = vmatprep.subr.mxu0 %v765
      %1098 = vmatpush1.msra.mxu0 %v764
      %1099 = vmatprep.subr.mxu0 %v769
      %1100 = vmatpush1.msra.mxu0 %v768
      %1101 = vmatprep.subr.mxu0 %v773
      %1102 = vmatpush1.msra.mxu0 %v772
      %1103 = vmatprep.subr.mxu0 %v777
      %1104 = vmatpush1.msra.mxu0 %v776
      %1105 = vmatprep.subr.mxu0 %v781
      %1106 = vmatpush1.msra.mxu0 %v780
      %1107 = vmatprep.subr.mxu0 %v785
      %1108 = vmatpush1.msra.mxu0 %v784
      %1109 = vmatprep.subr.mxu0 %v789
      %1110 = vmatpush1.msra.mxu0 %v788
      %1111 = vmatprep.subr.mxu0 %v793
      %1112 = vmatpush1.msra.mxu0 %v792
      %1113 = vmatprep.subr.mxu0 %v797
      %1114 = vmatpush1.msra.mxu0 %v796
      %1115 = vmatprep.subr.mxu0 %v801
      %1116 = vmatpush1.msra.mxu0 %v800
      %1117 = vmatprep.subr.mxu0 %v805
      %1118 = vmatpush1.msra.mxu0 %v804
      %1119 = vmatprep.subr.mxu0 %v809
      %1120 = vmatpush1.msra.mxu0 %v808
      %1121 = vmatprep.subr.mxu0 0.0
      %1122 = vmatpush1.msra.mxu0 0.0
      %1123 = vmatprep.subr.mxu0 0.0
      %1124 = vmatpush1.msra.mxu0 0.0
      %1125 = vmatprep.subr.mxu0 0.0
      %1126 = vmatpush1.msra.mxu0 0.0
      %1127 = vmatprep.subr.mxu0 0.0
      %1128 = vmatpush1.msra.mxu0 0.0
      %1129 = vmatprep.subr.mxu0 0.0
      %1130 = vmatpush1.msra.mxu0 0.0
      %1131 = vmatprep.subr.mxu0 0.0
      %1132 = vmatpush1.msra.mxu0 0.0
      %1133 = vmatprep.subr.mxu0 0.0
      %1134 = vmatpush1.msra.mxu0 0.0
      %1135 = vmatprep.subr.mxu0 0.0
      %1136 = vmatpush1.msra.mxu0 0.0
      %1137 = vmatprep.subr.mxu0 0.0
      %1138 = vmatpush1.msra.mxu0 0.0
      %1139 = vmatprep.subr.mxu0 0.0
      %1140 = vmatpush1.msra.mxu0 0.0
      %1141 = vmatprep.subr.mxu0 0.0
      %1142 = vmatpush1.msra.mxu0 0.0
      %1143 = vmatprep.subr.mxu0 0.0
      %1144 = vmatpush1.msra.mxu0 0.0
      %1145 = vmatprep.subr.mxu0 0.0
      %1146 = vmatpush1.msra.mxu0 0.0
      %1147 = vmatprep.subr.mxu0 0.0
      %1148 = vmatpush1.msra.mxu0 0.0
      %1149 = vmatprep.subr.mxu0 0.0
      %1150 = vmatpush1.msra.mxu0 0.0
      %1151 = vmatprep.subr.mxu0 0.0
      %1152 = vmatpush1.msra.mxu0 0.0
      %1153 = vmatprep.mubr.f32.mxu0 0.0
      %1154 = vmatmul.mubr.f32.gmra.mrb[0].mxu0 %v744
      %v1155 = vpop.f32.mrb[0].mxu0
      %v1156 = vadd.f32 %v1014, %v1155
      %v1157 = vpop.f32.mrb[0].mxu0
      %v1158 = vadd.f32 %v1016, %v1157
      %1159 = vdwg.mxu0
      %v1160 = vld [vmem:[%s8] sm:$0xf]
      %v1162 = vlaneseq
      %v1163 = vshrl.u32 %v1162, 7
      %v1164 = vsub.s32 0, %v1163
      %v1165 = vrot.slane %v1160, %v1164
      %v1166 = vlaneseq
      %v1167 = vshrl.u32 %v1166, 7
      %v1168 = vsub.s32 1, %v1167
      %v1169 = vrot.slane %v1160, %v1168
      %v1170 = vlaneseq
      %v1171 = vshrl.u32 %v1170, 7
      %v1172 = vsub.s32 2, %v1171
      %v1173 = vrot.slane %v1160, %v1172
      %v1174 = vlaneseq
      %v1175 = vshrl.u32 %v1174, 7
      %v1176 = vsub.s32 3, %v1175
      %v1177 = vrot.slane %v1160, %v1176
      %v1182 = vadd.f32 %v1085, %v1165
      %v1183 = vadd.f32 %v1087, %v1169
      %v1184 = vadd.f32 %v1156, %v1173
      %v1185 = vadd.f32 %v1158, %v1177
      %v1186 = vxor.u32 %v1182, 2147483648
      %v1187 = vmul.f32 %v1186, 1.442695
      %v1188 = vpow.pop %v1187
      %v1189 = vadd.f32 %v1188, 1.0
      %v1190 = vrcp.pop %v1189
      %v1191 = vmul.f32 1.0, %v1190
      %v1192 = vxor.u32 %v1183, 2147483648
      %v1193 = vmul.f32 %v1192, 1.442695
      %v1194 = vpow.pop %v1193
      %v1195 = vadd.f32 %v1194, 1.0
      %v1196 = vrcp.pop %v1195
      %v1197 = vmul.f32 1.0, %v1196
      %v1198 = vtanh.pop %v1184
      %v1199 = vxor.u32 %v1185, 2147483648
      %v1200 = vmul.f32 %v1199, 1.442695
      %v1201 = vpow.pop %v1200
      %v1202 = vadd.f32 %v1201, 1.0
      %v1203 = vrcp.pop %v1202
      %v1204 = vmul.f32 1.0, %v1203
      %s1205 = scalar_lea.vmem [#allocation5], 8
      %v1206 = vld [vmem:[%s1205] sm:$0xff]
      %v1207 = vmul.f32 %v1197, %v1206
      %v1208 = vmul.f32 %v1191, %v1198
      %v1209 = vadd.f32 %v1207, %v1208
      %1210 = vst [vmem:[%s1205] sm:$0xff] %v1209
      %v1211 = vtanh.pop %v1209
      %v1212 = vmul.f32 %v1204, %v1211
      %1213 = vst [vmem:[%s810] sm:$0xff] %v1212
      %1214 = vst [vmem:[#allocation6] sm:$0xff] %v1212
      %s1215 = scalar_lea.vmem [#allocation3], 32
      %v1216 = vld [vmem:[%s1215] sm:$0xff]
      %v1217 = vld [vmem:[%s1215 + $0x8] sm:$0xff]
      %v1218 = vld [vmem:[%s1215 + $0x10] sm:$0xff]
      %v1219 = vld [vmem:[%s1215 + $0x18] sm:$0xff]
      %v1220 = vld [vmem:[#allocation4] sm:$0xff]
      %v1221 = vld [vmem:[#allocation13] sm:$0xff]
      %v1222 = vld [vmem:[#allocation13 + $0x8] sm:$0xff]
      %v1223 = vld [vmem:[#allocation13 + $0x10] sm:$0xff]
      %v1224 = vld [vmem:[#allocation13 + $0x18] sm:$0xff]
      %v1225 = vld [vmem:[#allocation13 + $0x20] sm:$0xff]
      %v1226 = vld [vmem:[#allocation13 + $0x28] sm:$0xff]
      %v1227 = vld [vmem:[#allocation13 + $0x30] sm:$0xff]
      %v1228 = vld [vmem:[#allocation13 + $0x38] sm:$0xff]
      %v1229 = vld [vmem:[#allocation13 + $0x40] sm:$0xff]
      %v1230 = vld [vmem:[#allocation13 + $0x48] sm:$0xff]
      %v1231 = vld [vmem:[#allocation13 + $0x50] sm:$0xff]
      %v1232 = vld [vmem:[#allocation13 + $0x58] sm:$0xff]
      %v1233 = vld [vmem:[#allocation13 + $0x60] sm:$0xff]
      %v1234 = vld [vmem:[#allocation13 + $0x68] sm:$0xff]
      %v1235 = vld [vmem:[#allocation13 + $0x70] sm:$0xff]
      %v1236 = vld [vmem:[#allocation13 + $0x78] sm:$0xff]
      %v1237 = vld [vmem:[#allocation13 + $0x80] sm:$0xff]
      %v1238 = vld [vmem:[#allocation13 + $0x88] sm:$0xff]
      %v1239 = vld [vmem:[#allocation13 + $0x90] sm:$0xff]
      %v1240 = vld [vmem:[#allocation13 + $0x98] sm:$0xff]
      %v1241 = vld [vmem:[#allocation13 + $0xa0] sm:$0xff]
      %v1242 = vld [vmem:[#allocation13 + $0xa8] sm:$0xff]
      %v1243 = vld [vmem:[#allocation13 + $0xb0] sm:$0xff]
      %v1244 = vld [vmem:[#allocation13 + $0xb8] sm:$0xff]
      %v1245 = vld [vmem:[#allocation13 + $0xc0] sm:$0xff]
      %v1246 = vld [vmem:[#allocation13 + $0xc8] sm:$0xff]
      %v1247 = vld [vmem:[#allocation13 + $0xd0] sm:$0xff]
      %v1248 = vld [vmem:[#allocation13 + $0xd8] sm:$0xff]
      %v1249 = vld [vmem:[#allocation13 + $0xe0] sm:$0xff]
      %v1250 = vld [vmem:[#allocation13 + $0xe8] sm:$0xff]
      %v1251 = vld [vmem:[#allocation13 + $0xf0] sm:$0xff]
      %v1252 = vld [vmem:[#allocation13 + $0xf8] sm:$0xff]
      %v1253 = vld [vmem:[#allocation13 + $0x100] sm:$0xff]
      %v1254 = vld [vmem:[#allocation13 + $0x108] sm:$0xff]
      %v1255 = vld [vmem:[#allocation13 + $0x110] sm:$0xff]
      %v1256 = vld [vmem:[#allocation13 + $0x118] sm:$0xff]
      %v1257 = vld [vmem:[#allocation13 + $0x120] sm:$0xff]
      %v1258 = vld [vmem:[#allocation13 + $0x128] sm:$0xff]
      %v1259 = vld [vmem:[#allocation13 + $0x130] sm:$0xff]
      %v1260 = vld [vmem:[#allocation13 + $0x138] sm:$0xff]
      %v1261 = vld [vmem:[#allocation13 + $0x140] sm:$0xff]
      %v1262 = vld [vmem:[#allocation13 + $0x148] sm:$0xff]
      %v1263 = vld [vmem:[#allocation13 + $0x150] sm:$0xff]
      %v1264 = vld [vmem:[#allocation13 + $0x158] sm:$0xff]
      %v1265 = vld [vmem:[#allocation13 + $0x160] sm:$0xff]
      %v1266 = vld [vmem:[#allocation13 + $0x168] sm:$0xff]
      %v1267 = vld [vmem:[#allocation13 + $0x170] sm:$0xff]
      %v1268 = vld [vmem:[#allocation13 + $0x178] sm:$0xff]
      %v1269 = vld [vmem:[#allocation13 + $0x180] sm:$0xff]
      %v1270 = vld [vmem:[#allocation13 + $0x188] sm:$0xff]
      %v1271 = vld [vmem:[#allocation13 + $0x190] sm:$0xff]
      %v1272 = vld [vmem:[#allocation13 + $0x198] sm:$0xff]
      %v1273 = vld [vmem:[#allocation13 + $0x1a0] sm:$0xff]
      %v1274 = vld [vmem:[#allocation13 + $0x1a8] sm:$0xff]
      %v1275 = vld [vmem:[#allocation13 + $0x1b0] sm:$0xff]
      %v1276 = vld [vmem:[#allocation13 + $0x1b8] sm:$0xff]
      %v1277 = vld [vmem:[#allocation13 + $0x1c0] sm:$0xff]
      %v1278 = vld [vmem:[#allocation13 + $0x1c8] sm:$0xff]
      %v1279 = vld [vmem:[#allocation13 + $0x1d0] sm:$0xff]
      %v1280 = vld [vmem:[#allocation13 + $0x1d8] sm:$0xff]
      %v1281 = vld [vmem:[#allocation13 + $0x1e0] sm:$0xff]
      %v1282 = vld [vmem:[#allocation13 + $0x1e8] sm:$0xff]
      %v1283 = vld [vmem:[#allocation13 + $0x1f0] sm:$0xff]
      %v1284 = vld [vmem:[#allocation13 + $0x1f8] sm:$0xff]
      %1285 = vmatprep.subr.mxu0 %v1222
      %1286 = vmatpush1.msra.mxu0 %v1221
      %1287 = vmatprep.subr.mxu0 %v1226
      %1288 = vmatpush1.msra.mxu0 %v1225
      %1289 = vmatprep.subr.mxu0 %v1230
      %1290 = vmatpush1.msra.mxu0 %v1229
      %1291 = vmatprep.subr.mxu0 %v1234
      %1292 = vmatpush1.msra.mxu0 %v1233
      %1293 = vmatprep.subr.mxu0 %v1238
      %1294 = vmatpush1.msra.mxu0 %v1237
      %1295 = vmatprep.subr.mxu0 %v1242
      %1296 = vmatpush1.msra.mxu0 %v1241
      %1297 = vmatprep.subr.mxu0 %v1246
      %1298 = vmatpush1.msra.mxu0 %v1245
      %1299 = vmatprep.subr.mxu0 %v1250
      %1300 = vmatpush1.msra.mxu0 %v1249
      %1301 = vmatprep.subr.mxu0 %v1254
      %1302 = vmatpush1.msra.mxu0 %v1253
      %1303 = vmatprep.subr.mxu0 %v1258
      %1304 = vmatpush1.msra.mxu0 %v1257
      %1305 = vmatprep.subr.mxu0 %v1262
      %1306 = vmatpush1.msra.mxu0 %v1261
      %1307 = vmatprep.subr.mxu0 %v1266
      %1308 = vmatpush1.msra.mxu0 %v1265
      %1309 = vmatprep.subr.mxu0 %v1270
      %1310 = vmatpush1.msra.mxu0 %v1269
      %1311 = vmatprep.subr.mxu0 %v1274
      %1312 = vmatpush1.msra.mxu0 %v1273
      %1313 = vmatprep.subr.mxu0 %v1278
      %1314 = vmatpush1.msra.mxu0 %v1277
      %1315 = vmatprep.subr.mxu0 %v1282
      %1316 = vmatpush1.msra.mxu0 %v1281
      %1317 = vmatprep.subr.mxu0 0.0
      %1318 = vmatpush1.msra.mxu0 0.0
      %1319 = vmatprep.subr.mxu0 0.0
      %1320 = vmatpush1.msra.mxu0 0.0
      %1321 = vmatprep.subr.mxu0 0.0
      %1322 = vmatpush1.msra.mxu0 0.0
      %1323 = vmatprep.subr.mxu0 0.0
      %1324 = vmatpush1.msra.mxu0 0.0
      %1325 = vmatprep.subr.mxu0 0.0
      %1326 = vmatpush1.msra.mxu0 0.0
      %1327 = vmatprep.subr.mxu0 0.0
      %1328 = vmatpush1.msra.mxu0 0.0
      %1329 = vmatprep.subr.mxu0 0.0
      %1330 = vmatpush1.msra.mxu0 0.0
      %1331 = vmatprep.subr.mxu0 0.0
      %1332 = vmatpush1.msra.mxu0 0.0
      %1333 = vmatprep.subr.mxu0 0.0
      %1334 = vmatpush1.msra.mxu0 0.0
      %1335 = vmatprep.subr.mxu0 0.0
      %1336 = vmatpush1.msra.mxu0 0.0
      %1337 = vmatprep.subr.mxu0 0.0
      %1338 = vmatpush1.msra.mxu0 0.0
      %1339 = vmatprep.subr.mxu0 0.0
      %1340 = vmatpush1.msra.mxu0 0.0
      %1341 = vmatprep.subr.mxu0 0.0
      %1342 = vmatpush1.msra.mxu0 0.0
      %1343 = vmatprep.subr.mxu0 0.0
      %1344 = vmatpush1.msra.mxu0 0.0
      %1345 = vmatprep.subr.mxu0 0.0
      %1346 = vmatpush1.msra.mxu0 0.0
      %1347 = vmatprep.subr.mxu0 0.0
      %1348 = vmatpush1.msra.mxu0 0.0
      %1349 = vmatprep.mubr.f32.mxu0 0.0
      %1350 = vmatmul.mubr.f32.gmra.mrb[0].mxu0 %v1220
      %v1351 = vpop.f32.mrb[0].mxu0
      %v1352 = vadd.f32 0.0, %v1351
      %v1353 = vpop.f32.mrb[0].mxu0
      %v1354 = vadd.f32 0.0, %v1353
      %1355 = vdwg.mxu0
      %1356 = vmatprep.subr.mxu0 %v1224
      %1357 = vmatpush1.msra.mxu0 %v1223
      %1358 = vmatprep.subr.mxu0 %v1228
      %1359 = vmatpush1.msra.mxu0 %v1227
      %1360 = vmatprep.subr.mxu0 %v1232
      %1361 = vmatpush1.msra.mxu0 %v1231
      %1362 = vmatprep.subr.mxu0 %v1236
      %1363 = vmatpush1.msra.mxu0 %v1235
      %1364 = vmatprep.subr.mxu0 %v1240
      %1365 = vmatpush1.msra.mxu0 %v1239
      %1366 = vmatprep.subr.mxu0 %v1244
      %1367 = vmatpush1.msra.mxu0 %v1243
      %1368 = vmatprep.subr.mxu0 %v1248
      %1369 = vmatpush1.msra.mxu0 %v1247
      %1370 = vmatprep.subr.mxu0 %v1252
      %1371 = vmatpush1.msra.mxu0 %v1251
      %1372 = vmatprep.subr.mxu0 %v1256
      %1373 = vmatpush1.msra.mxu0 %v1255
      %1374 = vmatprep.subr.mxu0 %v1260
      %1375 = vmatpush1.msra.mxu0 %v1259
      %1376 = vmatprep.subr.mxu0 %v1264
      %1377 = vmatpush1.msra.mxu0 %v1263
      %1378 = vmatprep.subr.mxu0 %v1268
      %1379 = vmatpush1.msra.mxu0 %v1267
      %1380 = vmatprep.subr.mxu0 %v1272
      %1381 = vmatpush1.msra.mxu0 %v1271
      %1382 = vmatprep.subr.mxu0 %v1276
      %1383 = vmatpush1.msra.mxu0 %v1275
      %1384 = vmatprep.subr.mxu0 %v1280
      %1385 = vmatpush1.msra.mxu0 %v1279
      %1386 = vmatprep.subr.mxu0 %v1284
      %1387 = vmatpush1.msra.mxu0 %v1283
      %1388 = vmatprep.subr.mxu0 0.0
      %1389 = vmatpush1.msra.mxu0 0.0
      %1390 = vmatprep.subr.mxu0 0.0
      %1391 = vmatpush1.msra.mxu0 0.0
      %1392 = vmatprep.subr.mxu0 0.0
      %1393 = vmatpush1.msra.mxu0 0.0
      %1394 = vmatprep.subr.mxu0 0.0
      %1395 = vmatpush1.msra.mxu0 0.0
      %1396 = vmatprep.subr.mxu0 0.0
      %1397 = vmatpush1.msra.mxu0 0.0
      %1398 = vmatprep.subr.mxu0 0.0
      %1399 = vmatpush1.msra.mxu0 0.0
      %1400 = vmatprep.subr.mxu0 0.0
      %1401 = vmatpush1.msra.mxu0 0.0
      %1402 = vmatprep.subr.mxu0 0.0
      %1403 = vmatpush1.msra.mxu0 0.0
      %1404 = vmatprep.subr.mxu0 0.0
      %1405 = vmatpush1.msra.mxu0 0.0
      %1406 = vmatprep.subr.mxu0 0.0
      %1407 = vmatpush1.msra.mxu0 0.0
      %1408 = vmatprep.subr.mxu0 0.0
      %1409 = vmatpush1.msra.mxu0 0.0
      %1410 = vmatprep.subr.mxu0 0.0
      %1411 = vmatpush1.msra.mxu0 0.0
      %1412 = vmatprep.subr.mxu0 0.0
      %1413 = vmatpush1.msra.mxu0 0.0
      %1414 = vmatprep.subr.mxu0 0.0
      %1415 = vmatpush1.msra.mxu0 0.0
      %1416 = vmatprep.subr.mxu0 0.0
      %1417 = vmatpush1.msra.mxu0 0.0
      %1418 = vmatprep.subr.mxu0 0.0
      %1419 = vmatpush1.msra.mxu0 0.0
      %1420 = vmatprep.mubr.f32.mxu0 0.0
      %1421 = vmatmul.mubr.f32.gmra.mrb[0].mxu0 %v1220
      %v1422 = vpop.f32.mrb[0].mxu0
      %v1423 = vadd.f32 0.0, %v1422
      %v1424 = vpop.f32.mrb[0].mxu0
      %v1425 = vadd.f32 0.0, %v1424
      %1426 = vdwg.mxu0
      %v1427 = vadd.f32 %v1216, %v1352
      %v1428 = vadd.f32 %v1217, %v1354
      %v1429 = vadd.f32 %v1218, %v1423
      %v1430 = vadd.f32 %v1219, %v1425
      %v1431 = vxor.u32 %v1427, 2147483648
      %v1432 = vmul.f32 %v1431, 1.442695
      %v1433 = vpow.pop %v1432
      %v1434 = vadd.f32 %v1433, 1.0
      %v1435 = vrcp.pop %v1434
      %v1436 = vmul.f32 1.0, %v1435
      %v1437 = vxor.u32 %v1428, 2147483648
      %v1438 = vmul.f32 %v1437, 1.442695
      %v1439 = vpow.pop %v1438
      %v1440 = vadd.f32 %v1439, 1.0
      %v1441 = vrcp.pop %v1440
      %v1442 = vmul.f32 1.0, %v1441
      %v1443 = vtanh.pop %v1429
      %v1444 = vxor.u32 %v1430, 2147483648
      %v1445 = vmul.f32 %v1444, 1.442695
      %v1446 = vpow.pop %v1445
      %v1447 = vadd.f32 %v1446, 1.0
      %v1448 = vrcp.pop %v1447
      %v1449 = vmul.f32 1.0, %v1448
      %v1450 = vld [vmem:[#allocation5] sm:$0xff]
      %v1451 = vmul.f32 %v1442, %v1450
      %v1452 = vmul.f32 %v1436, %v1443
      %v1453 = vadd.f32 %v1451, %v1452
      %1454 = vst [vmem:[#allocation5] sm:$0xff] %v1453
      %v1455 = vtanh.pop %v1453
      %v1456 = vmul.f32 %v1449, %v1455
      %1457 = vst [vmem:[#allocation4] sm:$0xff] %v1456
      %v1458 = vld [vmem:[#allocation15] sm:$0xff]
      %v1459 = vld [vmem:[#allocation15 + $0x8] sm:$0xff]
      %v1460 = vld [vmem:[#allocation15 + $0x10] sm:$0xff]
      %v1461 = vld [vmem:[#allocation15 + $0x18] sm:$0xff]
      %v1462 = vld [vmem:[#allocation15 + $0x20] sm:$0xff]
      %v1463 = vld [vmem:[#allocation15 + $0x28] sm:$0xff]
      %v1464 = vld [vmem:[#allocation15 + $0x30] sm:$0xff]
      %v1465 = vld [vmem:[#allocation15 + $0x38] sm:$0xff]
      %v1466 = vld [vmem:[#allocation15 + $0x40] sm:$0xff]
      %v1467 = vld [vmem:[#allocation15 + $0x48] sm:$0xff]
      %v1468 = vld [vmem:[#allocation15 + $0x50] sm:$0xff]
      %v1469 = vld [vmem:[#allocation15 + $0x58] sm:$0xff]
      %v1470 = vld [vmem:[#allocation15 + $0x60] sm:$0xff]
      %v1471 = vld [vmem:[#allocation15 + $0x68] sm:$0xff]
      %v1472 = vld [vmem:[#allocation15 + $0x70] sm:$0xff]
      %v1473 = vld [vmem:[#allocation15 + $0x78] sm:$0xff]
      %v1474 = vld [vmem:[#allocation15 + $0x80] sm:$0xff]
      %v1475 = vld [vmem:[#allocation15 + $0x88] sm:$0xff]
      %v1476 = vld [vmem:[#allocation15 + $0x90] sm:$0xff]
      %v1477 = vld [vmem:[#allocation15 + $0x98] sm:$0xff]
      %v1478 = vld [vmem:[#allocation15 + $0xa0] sm:$0xff]
      %v1479 = vld [vmem:[#allocation15 + $0xa8] sm:$0xff]
      %v1480 = vld [vmem:[#allocation15 + $0xb0] sm:$0xff]
      %v1481 = vld [vmem:[#allocation15 + $0xb8] sm:$0xff]
      %v1482 = vld [vmem:[#allocation15 + $0xc0] sm:$0xff]
      %v1483 = vld [vmem:[#allocation15 + $0xc8] sm:$0xff]
      %v1484 = vld [vmem:[#allocation15 + $0xd0] sm:$0xff]
      %v1485 = vld [vmem:[#allocation15 + $0xd8] sm:$0xff]
      %v1486 = vld [vmem:[#allocation15 + $0xe0] sm:$0xff]
      %v1487 = vld [vmem:[#allocation15 + $0xe8] sm:$0xff]
      %v1488 = vld [vmem:[#allocation15 + $0xf0] sm:$0xff]
      %v1489 = vld [vmem:[#allocation15 + $0xf8] sm:$0xff]
      %v1490 = vld [vmem:[#allocation15 + $0x100] sm:$0xff]
      %v1491 = vld [vmem:[#allocation15 + $0x108] sm:$0xff]
      %v1492 = vld [vmem:[#allocation15 + $0x110] sm:$0xff]
      %v1493 = vld [vmem:[#allocation15 + $0x118] sm:$0xff]
      %v1494 = vld [vmem:[#allocation15 + $0x120] sm:$0xff]
      %v1495 = vld [vmem:[#allocation15 + $0x128] sm:$0xff]
      %v1496 = vld [vmem:[#allocation15 + $0x130] sm:$0xff]
      %v1497 = vld [vmem:[#allocation15 + $0x138] sm:$0xff]
      %v1498 = vld [vmem:[#allocation15 + $0x140] sm:$0xff]
      %v1499 = vld [vmem:[#allocation15 + $0x148] sm:$0xff]
      %v1500 = vld [vmem:[#allocation15 + $0x150] sm:$0xff]
      %v1501 = vld [vmem:[#allocation15 + $0x158] sm:$0xff]
      %v1502 = vld [vmem:[#allocation15 + $0x160] sm:$0xff]
      %v1503 = vld [vmem:[#allocation15 + $0x168] sm:$0xff]
      %v1504 = vld [vmem:[#allocation15 + $0x170] sm:$0xff]
      %v1505 = vld [vmem:[#allocation15 + $0x178] sm:$0xff]
      %v1506 = vld [vmem:[#allocation15 + $0x180] sm:$0xff]
      %v1507 = vld [vmem:[#allocation15 + $0x188] sm:$0xff]
      %v1508 = vld [vmem:[#allocation15 + $0x190] sm:$0xff]
      %v1509 = vld [vmem:[#allocation15 + $0x198] sm:$0xff]
      %v1510 = vld [vmem:[#allocation15 + $0x1a0] sm:$0xff]
      %v1511 = vld [vmem:[#allocation15 + $0x1a8] sm:$0xff]
      %v1512 = vld [vmem:[#allocation15 + $0x1b0] sm:$0xff]
      %v1513 = vld [vmem:[#allocation15 + $0x1b8] sm:$0xff]
      %v1514 = vld [vmem:[#allocation15 + $0x1c0] sm:$0xff]
      %v1515 = vld [vmem:[#allocation15 + $0x1c8] sm:$0xff]
      %v1516 = vld [vmem:[#allocation15 + $0x1d0] sm:$0xff]
      %v1517 = vld [vmem:[#allocation15 + $0x1d8] sm:$0xff]
      %v1518 = vld [vmem:[#allocation15 + $0x1e0] sm:$0xff]
      %v1519 = vld [vmem:[#allocation15 + $0x1e8] sm:$0xff]
      %v1520 = vld [vmem:[#allocation15 + $0x1f0] sm:$0xff]
      %v1521 = vld [vmem:[#allocation15 + $0x1f8] sm:$0xff]
      %v1522 = vld [vmem:[%s810] sm:$0xff]
      %v1523 = vld [vmem:[#allocation16] sm:$0xff]
      %v1524 = vld [vmem:[#allocation16 + $0x8] sm:$0xff]
      %v1525 = vld [vmem:[#allocation16 + $0x10] sm:$0xff]
      %v1526 = vld [vmem:[#allocation16 + $0x18] sm:$0xff]
      %v1527 = vld [vmem:[#allocation16 + $0x20] sm:$0xff]
      %v1528 = vld [vmem:[#allocation16 + $0x28] sm:$0xff]
      %v1529 = vld [vmem:[#allocation16 + $0x30] sm:$0xff]
      %v1530 = vld [vmem:[#allocation16 + $0x38] sm:$0xff]
      %v1531 = vld [vmem:[#allocation16 + $0x40] sm:$0xff]
      %v1532 = vld [vmem:[#allocation16 + $0x48] sm:$0xff]
      %v1533 = vld [vmem:[#allocation16 + $0x50] sm:$0xff]
      %v1534 = vld [vmem:[#allocation16 + $0x58] sm:$0xff]
      %v1535 = vld [vmem:[#allocation16 + $0x60] sm:$0xff]
      %v1536 = vld [vmem:[#allocation16 + $0x68] sm:$0xff]
      %v1537 = vld [vmem:[#allocation16 + $0x70] sm:$0xff]
      %v1538 = vld [vmem:[#allocation16 + $0x78] sm:$0xff]
      %v1539 = vld [vmem:[#allocation16 + $0x80] sm:$0xff]
      %v1540 = vld [vmem:[#allocation16 + $0x88] sm:$0xff]
      %v1541 = vld [vmem:[#allocation16 + $0x90] sm:$0xff]
      %v1542 = vld [vmem:[#allocation16 + $0x98] sm:$0xff]
      %v1543 = vld [vmem:[#allocation16 + $0xa0] sm:$0xff]
      %v1544 = vld [vmem:[#allocation16 + $0xa8] sm:$0xff]
      %v1545 = vld [vmem:[#allocation16 + $0xb0] sm:$0xff]
      %v1546 = vld [vmem:[#allocation16 + $0xb8] sm:$0xff]
      %v1547 = vld [vmem:[#allocation16 + $0xc0] sm:$0xff]
      %v1548 = vld [vmem:[#allocation16 + $0xc8] sm:$0xff]
      %v1549 = vld [vmem:[#allocation16 + $0xd0] sm:$0xff]
      %v1550 = vld [vmem:[#allocation16 + $0xd8] sm:$0xff]
      %v1551 = vld [vmem:[#allocation16 + $0xe0] sm:$0xff]
      %v1552 = vld [vmem:[#allocation16 + $0xe8] sm:$0xff]
      %v1553 = vld [vmem:[#allocation16 + $0xf0] sm:$0xff]
      %v1554 = vld [vmem:[#allocation16 + $0xf8] sm:$0xff]
      %v1555 = vld [vmem:[#allocation16 + $0x100] sm:$0xff]
      %v1556 = vld [vmem:[#allocation16 + $0x108] sm:$0xff]
      %v1557 = vld [vmem:[#allocation16 + $0x110] sm:$0xff]
      %v1558 = vld [vmem:[#allocation16 + $0x118] sm:$0xff]
      %v1559 = vld [vmem:[#allocation16 + $0x120] sm:$0xff]
      %v1560 = vld [vmem:[#allocation16 + $0x128] sm:$0xff]
      %v1561 = vld [vmem:[#allocation16 + $0x130] sm:$0xff]
      %v1562 = vld [vmem:[#allocation16 + $0x138] sm:$0xff]
      %v1563 = vld [vmem:[#allocation16 + $0x140] sm:$0xff]
      %v1564 = vld [vmem:[#allocation16 + $0x148] sm:$0xff]
      %v1565 = vld [vmem:[#allocation16 + $0x150] sm:$0xff]
      %v1566 = vld [vmem:[#allocation16 + $0x158] sm:$0xff]
      %v1567 = vld [vmem:[#allocation16 + $0x160] sm:$0xff]
      %v1568 = vld [vmem:[#allocation16 + $0x168] sm:$0xff]
      %v1569 = vld [vmem:[#allocation16 + $0x170] sm:$0xff]
      %v1570 = vld [vmem:[#allocation16 + $0x178] sm:$0xff]
      %v1571 = vld [vmem:[#allocation16 + $0x180] sm:$0xff]
      %v1572 = vld [vmem:[#allocation16 + $0x188] sm:$0xff]
      %v1573 = vld [vmem:[#allocation16 + $0x190] sm:$0xff]
      %v1574 = vld [vmem:[#allocation16 + $0x198] sm:$0xff]
      %v1575 = vld [vmem:[#allocation16 + $0x1a0] sm:$0xff]
      %v1576 = vld [vmem:[#allocation16 + $0x1a8] sm:$0xff]
      %v1577 = vld [vmem:[#allocation16 + $0x1b0] sm:$0xff]
      %v1578 = vld [vmem:[#allocation16 + $0x1b8] sm:$0xff]
      %v1579 = vld [vmem:[#allocation16 + $0x1c0] sm:$0xff]
      %v1580 = vld [vmem:[#allocation16 + $0x1c8] sm:$0xff]
      %v1581 = vld [vmem:[#allocation16 + $0x1d0] sm:$0xff]
      %v1582 = vld [vmem:[#allocation16 + $0x1d8] sm:$0xff]
      %v1583 = vld [vmem:[#allocation16 + $0x1e0] sm:$0xff]
      %v1584 = vld [vmem:[#allocation16 + $0x1e8] sm:$0xff]
      %v1585 = vld [vmem:[#allocation16 + $0x1f0] sm:$0xff]
      %v1586 = vld [vmem:[#allocation16 + $0x1f8] sm:$0xff]
      %1587 = vmatprep.subr.mxu0 %v1524
      %1588 = vmatpush1.msra.mxu0 %v1523
      %1589 = vmatprep.subr.mxu0 %v1528
      %1590 = vmatpush1.msra.mxu0 %v1527
      %1591 = vmatprep.subr.mxu0 %v1532
      %1592 = vmatpush1.msra.mxu0 %v1531
      %1593 = vmatprep.subr.mxu0 %v1536
      %1594 = vmatpush1.msra.mxu0 %v1535
      %1595 = vmatprep.subr.mxu0 %v1540
      %1596 = vmatpush1.msra.mxu0 %v1539
      %1597 = vmatprep.subr.mxu0 %v1544
      %1598 = vmatpush1.msra.mxu0 %v1543
      %1599 = vmatprep.subr.mxu0 %v1548
      %1600 = vmatpush1.msra.mxu0 %v1547
      %1601 = vmatprep.subr.mxu0 %v1552
      %1602 = vmatpush1.msra.mxu0 %v1551
      %1603 = vmatprep.subr.mxu0 %v1556
      %1604 = vmatpush1.msra.mxu0 %v1555
      %1605 = vmatprep.subr.mxu0 %v1560
      %1606 = vmatpush1.msra.mxu0 %v1559
      %1607 = vmatprep.subr.mxu0 %v1564
      %1608 = vmatpush1.msra.mxu0 %v1563
      %1609 = vmatprep.subr.mxu0 %v1568
      %1610 = vmatpush1.msra.mxu0 %v1567
      %1611 = vmatprep.subr.mxu0 %v1572
      %1612 = vmatpush1.msra.mxu0 %v1571
      %1613 = vmatprep.subr.mxu0 %v1576
      %1614 = vmatpush1.msra.mxu0 %v1575
      %1615 = vmatprep.subr.mxu0 %v1580
      %1616 = vmatpush1.msra.mxu0 %v1579
      %1617 = vmatprep.subr.mxu0 %v1584
      %1618 = vmatpush1.msra.mxu0 %v1583
      %1619 = vmatprep.subr.mxu0 0.0
      %1620 = vmatpush1.msra.mxu0 0.0
      %1621 = vmatprep.subr.mxu0 0.0
      %1622 = vmatpush1.msra.mxu0 0.0
      %1623 = vmatprep.subr.mxu0 0.0
      %1624 = vmatpush1.msra.mxu0 0.0
      %1625 = vmatprep.subr.mxu0 0.0
      %1626 = vmatpush1.msra.mxu0 0.0
      %1627 = vmatprep.subr.mxu0 0.0
      %1628 = vmatpush1.msra.mxu0 0.0
      %1629 = vmatprep.subr.mxu0 0.0
      %1630 = vmatpush1.msra.mxu0 0.0
      %1631 = vmatprep.subr.mxu0 0.0
      %1632 = vmatpush1.msra.mxu0 0.0
      %1633 = vmatprep.subr.mxu0 0.0
      %1634 = vmatpush1.msra.mxu0 0.0
      %1635 = vmatprep.subr.mxu0 0.0
      %1636 = vmatpush1.msra.mxu0 0.0
      %1637 = vmatprep.subr.mxu0 0.0
      %1638 = vmatpush1.msra.mxu0 0.0
      %1639 = vmatprep.subr.mxu0 0.0
      %1640 = vmatpush1.msra.mxu0 0.0
      %1641 = vmatprep.subr.mxu0 0.0
      %1642 = vmatpush1.msra.mxu0 0.0
      %1643 = vmatprep.subr.mxu0 0.0
      %1644 = vmatpush1.msra.mxu0 0.0
      %1645 = vmatprep.subr.mxu0 0.0
      %1646 = vmatpush1.msra.mxu0 0.0
      %1647 = vmatprep.subr.mxu0 0.0
      %1648 = vmatpush1.msra.mxu0 0.0
      %1649 = vmatprep.subr.mxu0 0.0
      %1650 = vmatpush1.msra.mxu0 0.0
      %1651 = vmatprep.mubr.f32.mxu0 0.0
      %1652 = vmatmul.mubr.f32.gmra.mrb[0].mxu0 %v1522
      %v1653 = vpop.f32.mrb[0].mxu0
      %v1654 = vadd.f32 0.0, %v1653
      %v1655 = vpop.f32.mrb[0].mxu0
      %v1656 = vadd.f32 0.0, %v1655
      %1657 = vdwg.mxu0
      %1658 = vmatprep.subr.mxu0 %v1526
      %1659 = vmatpush1.msra.mxu0 %v1525
      %1660 = vmatprep.subr.mxu0 %v1530
      %1661 = vmatpush1.msra.mxu0 %v1529
      %1662 = vmatprep.subr.mxu0 %v1534
      %1663 = vmatpush1.msra.mxu0 %v1533
      %1664 = vmatprep.subr.mxu0 %v1538
      %1665 = vmatpush1.msra.mxu0 %v1537
      %1666 = vmatprep.subr.mxu0 %v1542
      %1667 = vmatpush1.msra.mxu0 %v1541
      %1668 = vmatprep.subr.mxu0 %v1546
      %1669 = vmatpush1.msra.mxu0 %v1545
      %1670 = vmatprep.subr.mxu0 %v1550
      %1671 = vmatpush1.msra.mxu0 %v1549
      %1672 = vmatprep.subr.mxu0 %v1554
      %1673 = vmatpush1.msra.mxu0 %v1553
      %1674 = vmatprep.subr.mxu0 %v1558
      %1675 = vmatpush1.msra.mxu0 %v1557
      %1676 = vmatprep.subr.mxu0 %v1562
      %1677 = vmatpush1.msra.mxu0 %v1561
      %1678 = vmatprep.subr.mxu0 %v1566
      %1679 = vmatpush1.msra.mxu0 %v1565
      %1680 = vmatprep.subr.mxu0 %v1570
      %1681 = vmatpush1.msra.mxu0 %v1569
      %1682 = vmatprep.subr.mxu0 %v1574
      %1683 = vmatpush1.msra.mxu0 %v1573
      %1684 = vmatprep.subr.mxu0 %v1578
      %1685 = vmatpush1.msra.mxu0 %v1577
      %1686 = vmatprep.subr.mxu0 %v1582
      %1687 = vmatpush1.msra.mxu0 %v1581
      %1688 = vmatprep.subr.mxu0 %v1586
      %1689 = vmatpush1.msra.mxu0 %v1585
      %1690 = vmatprep.subr.mxu0 0.0
      %1691 = vmatpush1.msra.mxu0 0.0
      %1692 = vmatprep.subr.mxu0 0.0
      %1693 = vmatpush1.msra.mxu0 0.0
      %1694 = vmatprep.subr.mxu0 0.0
      %1695 = vmatpush1.msra.mxu0 0.0
      %1696 = vmatprep.subr.mxu0 0.0
      %1697 = vmatpush1.msra.mxu0 0.0
      %1698 = vmatprep.subr.mxu0 0.0
      %1699 = vmatpush1.msra.mxu0 0.0
      %1700 = vmatprep.subr.mxu0 0.0
      %1701 = vmatpush1.msra.mxu0 0.0
      %1702 = vmatprep.subr.mxu0 0.0
      %1703 = vmatpush1.msra.mxu0 0.0
      %1704 = vmatprep.subr.mxu0 0.0
      %1705 = vmatpush1.msra.mxu0 0.0
      %1706 = vmatprep.subr.mxu0 0.0
      %1707 = vmatpush1.msra.mxu0 0.0
      %1708 = vmatprep.subr.mxu0 0.0
      %1709 = vmatpush1.msra.mxu0 0.0
      %1710 = vmatprep.subr.mxu0 0.0
      %1711 = vmatpush1.msra.mxu0 0.0
      %1712 = vmatprep.subr.mxu0 0.0
      %1713 = vmatpush1.msra.mxu0 0.0
      %1714 = vmatprep.subr.mxu0 0.0
      %1715 = vmatpush1.msra.mxu0 0.0
      %1716 = vmatprep.subr.mxu0 0.0
      %1717 = vmatpush1.msra.mxu0 0.0
      %1718 = vmatprep.subr.mxu0 0.0
      %1719 = vmatpush1.msra.mxu0 0.0
      %1720 = vmatprep.subr.mxu0 0.0
      %1721 = vmatpush1.msra.mxu0 0.0
      %1722 = vmatprep.mubr.f32.mxu0 0.0
      %1723 = vmatmul.mubr.f32.gmra.mrb[0].mxu0 %v1522
      %v1724 = vpop.f32.mrb[0].mxu0
      %v1725 = vadd.f32 0.0, %v1724
      %v1726 = vpop.f32.mrb[0].mxu0
      %v1727 = vadd.f32 0.0, %v1726
      %1728 = vdwg.mxu0
      %1729 = vmatprep.subr.mxu0 %v1459
      %1730 = vmatpush1.msra.mxu0 %v1458
      %1731 = vmatprep.subr.mxu0 %v1463
      %1732 = vmatpush1.msra.mxu0 %v1462
      %1733 = vmatprep.subr.mxu0 %v1467
      %1734 = vmatpush1.msra.mxu0 %v1466
      %1735 = vmatprep.subr.mxu0 %v1471
      %1736 = vmatpush1.msra.mxu0 %v1470
      %1737 = vmatprep.subr.mxu0 %v1475
      %1738 = vmatpush1.msra.mxu0 %v1474
      %1739 = vmatprep.subr.mxu0 %v1479
      %1740 = vmatpush1.msra.mxu0 %v1478
      %1741 = vmatprep.subr.mxu0 %v1483
      %1742 = vmatpush1.msra.mxu0 %v1482
      %1743 = vmatprep.subr.mxu0 %v1487
      %1744 = vmatpush1.msra.mxu0 %v1486
      %1745 = vmatprep.subr.mxu0 %v1491
      %1746 = vmatpush1.msra.mxu0 %v1490
      %1747 = vmatprep.subr.mxu0 %v1495
      %1748 = vmatpush1.msra.mxu0 %v1494
      %1749 = vmatprep.subr.mxu0 %v1499
      %1750 = vmatpush1.msra.mxu0 %v1498
      %1751 = vmatprep.subr.mxu0 %v1503
      %1752 = vmatpush1.msra.mxu0 %v1502
      %1753 = vmatprep.subr.mxu0 %v1507
      %1754 = vmatpush1.msra.mxu0 %v1506
      %1755 = vmatprep.subr.mxu0 %v1511
      %1756 = vmatpush1.msra.mxu0 %v1510
      %1757 = vmatprep.subr.mxu0 %v1515
      %1758 = vmatpush1.msra.mxu0 %v1514
      %1759 = vmatprep.subr.mxu0 %v1519
      %1760 = vmatpush1.msra.mxu0 %v1518
      %1761 = vmatprep.subr.mxu0 0.0
      %1762 = vmatpush1.msra.mxu0 0.0
      %1763 = vmatprep.subr.mxu0 0.0
      %1764 = vmatpush1.msra.mxu0 0.0
      %1765 = vmatprep.subr.mxu0 0.0
      %1766 = vmatpush1.msra.mxu0 0.0
      %1767 = vmatprep.subr.mxu0 0.0
      %1768 = vmatpush1.msra.mxu0 0.0
      %1769 = vmatprep.subr.mxu0 0.0
      %1770 = vmatpush1.msra.mxu0 0.0
      %1771 = vmatprep.subr.mxu0 0.0
      %1772 = vmatpush1.msra.mxu0 0.0
      %1773 = vmatprep.subr.mxu0 0.0
      %1774 = vmatpush1.msra.mxu0 0.0
      %1775 = vmatprep.subr.mxu0 0.0
      %1776 = vmatpush1.msra.mxu0 0.0
      %1777 = vmatprep.subr.mxu0 0.0
      %1778 = vmatpush1.msra.mxu0 0.0
      %1779 = vmatprep.subr.mxu0 0.0
      %1780 = vmatpush1.msra.mxu0 0.0
      %1781 = vmatprep.subr.mxu0 0.0
      %1782 = vmatpush1.msra.mxu0 0.0
      %1783 = vmatprep.subr.mxu0 0.0
      %1784 = vmatpush1.msra.mxu0 0.0
      %1785 = vmatprep.subr.mxu0 0.0
      %1786 = vmatpush1.msra.mxu0 0.0
      %1787 = vmatprep.subr.mxu0 0.0
      %1788 = vmatpush1.msra.mxu0 0.0
      %1789 = vmatprep.subr.mxu0 0.0
      %1790 = vmatpush1.msra.mxu0 0.0
      %1791 = vmatprep.subr.mxu0 0.0
      %1792 = vmatpush1.msra.mxu0 0.0
      %1793 = vmatprep.mubr.f32.mxu0 0.0
      %1794 = vmatmul.mubr.f32.gmra.mrb[0].mxu0 %v1456
      %v1795 = vpop.f32.mrb[0].mxu0
      %v1796 = vadd.f32 %v1654, %v1795
      %v1797 = vpop.f32.mrb[0].mxu0
      %v1798 = vadd.f32 %v1656, %v1797
      %1799 = vdwg.mxu0
      %1800 = vmatprep.subr.mxu0 %v1461
      %1801 = vmatpush1.msra.mxu0 %v1460
      %1802 = vmatprep.subr.mxu0 %v1465
      %1803 = vmatpush1.msra.mxu0 %v1464
      %1804 = vmatprep.subr.mxu0 %v1469
      %1805 = vmatpush1.msra.mxu0 %v1468
      %1806 = vmatprep.subr.mxu0 %v1473
      %1807 = vmatpush1.msra.mxu0 %v1472
      %1808 = vmatprep.subr.mxu0 %v1477
      %1809 = vmatpush1.msra.mxu0 %v1476
      %1810 = vmatprep.subr.mxu0 %v1481
      %1811 = vmatpush1.msra.mxu0 %v1480
      %1812 = vmatprep.subr.mxu0 %v1485
      %1813 = vmatpush1.msra.mxu0 %v1484
      %1814 = vmatprep.subr.mxu0 %v1489
      %1815 = vmatpush1.msra.mxu0 %v1488
      %1816 = vmatprep.subr.mxu0 %v1493
      %1817 = vmatpush1.msra.mxu0 %v1492
      %1818 = vmatprep.subr.mxu0 %v1497
      %1819 = vmatpush1.msra.mxu0 %v1496
      %1820 = vmatprep.subr.mxu0 %v1501
      %1821 = vmatpush1.msra.mxu0 %v1500
      %1822 = vmatprep.subr.mxu0 %v1505
      %1823 = vmatpush1.msra.mxu0 %v1504
      %1824 = vmatprep.subr.mxu0 %v1509
      %1825 = vmatpush1.msra.mxu0 %v1508
      %1826 = vmatprep.subr.mxu0 %v1513
      %1827 = vmatpush1.msra.mxu0 %v1512
      %1828 = vmatprep.subr.mxu0 %v1517
      %1829 = vmatpush1.msra.mxu0 %v1516
      %1830 = vmatprep.subr.mxu0 %v1521
      %1831 = vmatpush1.msra.mxu0 %v1520
      %1832 = vmatprep.subr.mxu0 0.0
      %1833 = vmatpush1.msra.mxu0 0.0
      %1834 = vmatprep.subr.mxu0 0.0
      %1835 = vmatpush1.msra.mxu0 0.0
      %1836 = vmatprep.subr.mxu0 0.0
      %1837 = vmatpush1.msra.mxu0 0.0
      %1838 = vmatprep.subr.mxu0 0.0
      %1839 = vmatpush1.msra.mxu0 0.0
      %1840 = vmatprep.subr.mxu0 0.0
      %1841 = vmatpush1.msra.mxu0 0.0
      %1842 = vmatprep.subr.mxu0 0.0
      %1843 = vmatpush1.msra.mxu0 0.0
      %1844 = vmatprep.subr.mxu0 0.0
      %1845 = vmatpush1.msra.mxu0 0.0
      %1846 = vmatprep.subr.mxu0 0.0
      %1847 = vmatpush1.msra.mxu0 0.0
      %1848 = vmatprep.subr.mxu0 0.0
      %1849 = vmatpush1.msra.mxu0 0.0
      %1850 = vmatprep.subr.mxu0 0.0
      %1851 = vmatpush1.msra.mxu0 0.0
      %1852 = vmatprep.subr.mxu0 0.0
      %1853 = vmatpush1.msra.mxu0 0.0
      %1854 = vmatprep.subr.mxu0 0.0
      %1855 = vmatpush1.msra.mxu0 0.0
      %1856 = vmatprep.subr.mxu0 0.0
      %1857 = vmatpush1.msra.mxu0 0.0
      %1858 = vmatprep.subr.mxu0 0.0
      %1859 = vmatpush1.msra.mxu0 0.0
      %1860 = vmatprep.subr.mxu0 0.0
      %1861 = vmatpush1.msra.mxu0 0.0
      %1862 = vmatprep.subr.mxu0 0.0
      %1863 = vmatpush1.msra.mxu0 0.0
      %1864 = vmatprep.mubr.f32.mxu0 0.0
      %1865 = vmatmul.mubr.f32.gmra.mrb[0].mxu0 %v1456
      %v1866 = vpop.f32.mrb[0].mxu0
      %v1867 = vadd.f32 %v1725, %v1866
      %v1868 = vpop.f32.mrb[0].mxu0
      %v1869 = vadd.f32 %v1727, %v1868
      %1870 = vdwg.mxu0
      %v1871 = vld [vmem:[%s8] sm:$0xf]
      %v1873 = vlaneseq
      %v1874 = vshrl.u32 %v1873, 7
      %v1875 = vsub.s32 0, %v1874
      %v1876 = vrot.slane %v1871, %v1875
      %v1877 = vlaneseq
      %v1878 = vshrl.u32 %v1877, 7
      %v1879 = vsub.s32 1, %v1878
      %v1880 = vrot.slane %v1871, %v1879
      %v1881 = vlaneseq
      %v1882 = vshrl.u32 %v1881, 7
      %v1883 = vsub.s32 2, %v1882
      %v1884 = vrot.slane %v1871, %v1883
      %v1885 = vlaneseq
      %v1886 = vshrl.u32 %v1885, 7
      %v1887 = vsub.s32 3, %v1886
      %v1888 = vrot.slane %v1871, %v1887
      %v1893 = vadd.f32 %v1796, %v1876
      %v1894 = vadd.f32 %v1798, %v1880
      %v1895 = vadd.f32 %v1867, %v1884
      %v1896 = vadd.f32 %v1869, %v1888
      %v1897 = vxor.u32 %v1893, 2147483648
      %v1898 = vmul.f32 %v1897, 1.442695
      %v1899 = vpow.pop %v1898
      %v1900 = vadd.f32 %v1899, 1.0
      %v1901 = vrcp.pop %v1900
      %v1902 = vmul.f32 1.0, %v1901
      %v1903 = vxor.u32 %v1894, 2147483648
      %v1904 = vmul.f32 %v1903, 1.442695
      %v1905 = vpow.pop %v1904
      %v1906 = vadd.f32 %v1905, 1.0
      %v1907 = vrcp.pop %v1906
      %v1908 = vmul.f32 1.0, %v1907
      %v1909 = vtanh.pop %v1895
      %v1910 = vxor.u32 %v1896, 2147483648
      %v1911 = vmul.f32 %v1910, 1.442695
      %v1912 = vpow.pop %v1911
      %v1913 = vadd.f32 %v1912, 1.0
      %v1914 = vrcp.pop %v1913
      %v1915 = vmul.f32 1.0, %v1914
      %v1916 = vld [vmem:[%s1205] sm:$0xff]
      %v1917 = vmul.f32 %v1908, %v1916
      %v1918 = vmul.f32 %v1902, %v1909
      %v1919 = vadd.f32 %v1917, %v1918
      %1920 = vst [vmem:[%s1205] sm:$0xff] %v1919
      %v1921 = vtanh.pop %v1919
      %v1922 = vmul.f32 %v1915, %v1921
      %1923 = vst [vmem:[%s810] sm:$0xff] %v1922
      %s1924 = scalar_lea.vmem [#allocation6], 8
      %1925 = vst [vmem:[%s1924] sm:$0xff] %v1922
    $region57: #{tpu_custom_call.1} parent=1 // pred_fallthru
      _
    %v1926 = vld [vmem:[#allocation6] sm:$0xff]
    %v1927 = vld [vmem:[#allocation6 + $0x8] sm:$0xff]
    %v1928 = vld [vmem:[%s9] sm:$0xff]
    %v1929 = vld [vmem:[%s9 + $0x8] sm:$0xff]
    %v1930 = vld [vmem:[%s9 + $0x10] sm:$0xff]
    %v1931 = vld [vmem:[%s9 + $0x18] sm:$0xff]
    %v1932 = vld [vmem:[%s9 + $0x20] sm:$0xff]
    %v1933 = vld [vmem:[%s9 + $0x28] sm:$0xff]
    %v1934 = vld [vmem:[%s9 + $0x30] sm:$0xff]
    %v1935 = vld [vmem:[%s9 + $0x38] sm:$0xff]
    %v1936 = vld [vmem:[%s9 + $0x40] sm:$0xff]
    %v1937 = vld [vmem:[%s9 + $0x48] sm:$0xff]
    %v1938 = vld [vmem:[%s9 + $0x50] sm:$0xff]
    %v1939 = vld [vmem:[%s9 + $0x58] sm:$0xff]
    %v1940 = vld [vmem:[%s9 + $0x60] sm:$0xff]
    %v1941 = vld [vmem:[%s9 + $0x68] sm:$0xff]
    %v1942 = vld [vmem:[%s9 + $0x70] sm:$0xff]
    %v1943 = vld [vmem:[%s9 + $0x78] sm:$0xff]
    %v1944 = vld [vmem:[%s10] sm:$0x1]
    %v1946 = vlaneseq
    %v1947 = vshrl.u32 %v1946, 7
    %v1948 = vsub.s32 0, %v1947
    %v1949 = vrot.slane %v1944, %v1948
    %1951 = vmatprep.subr.mxu0 0.0
    %1952 = vmatpush1.msra.mxu0 %v1928
    %1953 = vmatprep.subr.mxu0 0.0
    %1954 = vmatpush1.msra.mxu0 %v1929
    %1955 = vmatprep.subr.mxu0 0.0
    %1956 = vmatpush1.msra.mxu0 %v1930
    %1957 = vmatprep.subr.mxu0 0.0
    %1958 = vmatpush1.msra.mxu0 %v1931
    %1959 = vmatprep.subr.mxu0 0.0
    %1960 = vmatpush1.msra.mxu0 %v1932
    %1961 = vmatprep.subr.mxu0 0.0
    %1962 = vmatpush1.msra.mxu0 %v1933
    %1963 = vmatprep.subr.mxu0 0.0
    %1964 = vmatpush1.msra.mxu0 %v1934
    %1965 = vmatprep.subr.mxu0 0.0
    %1966 = vmatpush1.msra.mxu0 %v1935
    %1967 = vmatprep.subr.mxu0 0.0
    %1968 = vmatpush1.msra.mxu0 %v1936
    %1969 = vmatprep.subr.mxu0 0.0
    %1970 = vmatpush1.msra.mxu0 %v1937
    %1971 = vmatprep.subr.mxu0 0.0
    %1972 = vmatpush1.msra.mxu0 %v1938
    %1973 = vmatprep.subr.mxu0 0.0
    %1974 = vmatpush1.msra.mxu0 %v1939
    %1975 = vmatprep.subr.mxu0 0.0
    %1976 = vmatpush1.msra.mxu0 %v1940
    %1977 = vmatprep.subr.mxu0 0.0
    %1978 = vmatpush1.msra.mxu0 %v1941
    %1979 = vmatprep.subr.mxu0 0.0
    %1980 = vmatpush1.msra.mxu0 %v1942
    %1981 = vmatprep.subr.mxu0 0.0
    %1982 = vmatpush1.msra.mxu0 %v1943
    %1983 = vmatprep.subr.mxu0 0.0
    %1984 = vmatpush1.msra.mxu0 0.0
    %1985 = vmatprep.subr.mxu0 0.0
    %1986 = vmatpush1.msra.mxu0 0.0
    %1987 = vmatprep.subr.mxu0 0.0
    %1988 = vmatpush1.msra.mxu0 0.0
    %1989 = vmatprep.subr.mxu0 0.0
    %1990 = vmatpush1.msra.mxu0 0.0
    %1991 = vmatprep.subr.mxu0 0.0
    %1992 = vmatpush1.msra.mxu0 0.0
    %1993 = vmatprep.subr.mxu0 0.0
    %1994 = vmatpush1.msra.mxu0 0.0
    %1995 = vmatprep.subr.mxu0 0.0
    %1996 = vmatpush1.msra.mxu0 0.0
    %1997 = vmatprep.subr.mxu0 0.0
    %1998 = vmatpush1.msra.mxu0 0.0
    %1999 = vmatprep.subr.mxu0 0.0
    %2000 = vmatpush1.msra.mxu0 0.0
    %2001 = vmatprep.subr.mxu0 0.0
    %2002 = vmatpush1.msra.mxu0 0.0
    %2003 = vmatprep.subr.mxu0 0.0
    %2004 = vmatpush1.msra.mxu0 0.0
    %2005 = vmatprep.subr.mxu0 0.0
    %2006 = vmatpush1.msra.mxu0 0.0
    %2007 = vmatprep.subr.mxu0 0.0
    %2008 = vmatpush1.msra.mxu0 0.0
    %2009 = vmatprep.subr.mxu0 0.0
    %2010 = vmatpush1.msra.mxu0 0.0
    %2011 = vmatprep.subr.mxu0 0.0
    %2012 = vmatpush1.msra.mxu0 0.0
    %2013 = vmatprep.subr.mxu0 0.0
    %2014 = vmatpush1.msra.mxu0 0.0
    %2015 = vmatprep.mubr.f32.mxu0 0.0
    %2016 = vmatmul.mubr.f32.gmra.mrb[0].mxu0 %v1926
    %v2017 = vpop.f32.mrb[0].mxu0
    %v2018 = vadd.f32 %v1949, %v2017
    %v2019 = vpop.f32.mrb[0].mxu0
    %2020 = vmatprep.mubr.f32.mxu0 0.0
    %2021 = vmatmul.mubr.f32.gmra.mrb[0].mxu0 %v1927
    %v2022 = vpop.f32.mrb[0].mxu0
    %v2023 = vadd.f32 %v1949, %v2022
    %v2024 = vpop.f32.mrb[0].mxu0
    %2025 = vdwg.mxu0
    %vm2026 = vcmask 261120
    %2027 = vst.msk [vmem:[#allocation18] sm:$0xff] %vm2026, %v2018
    %2028 = vst.msk [vmem:[#allocation18 + $0x8] sm:$0xff] %vm2026, %v2023
    // Predicated region
    $region150: #{tpu_custom_call.1} parent=1 // pred_check
      _
    $region151: #{tpu_custom_call.1} parent=1 // pred_check_branch
      %2030 = sbr.rel (0) target = $region153
    $region152: #{tpu_custom_call.1} parent=1 // pred_region
      %s2032 = ssub.s32 256, 256
      %2033 = vsyncadd [#allocation12], %s2032
      %s2034 = sshll.u32 [#allocation18], 4
      %s2035 = int_to_ptr.vmem [resolvable:$true] %s2034
      %2040 = dma.vmem_to_hbm [thread:$0]  %s2035, 256, %s11, [#allocation12], 128, 128, 8
    $region153: #{tpu_custom_call.1} parent=1 // pred_fallthru
      _
    // Predicated region
    $region154: #{tpu_custom_call.1} parent=1 // pred_check
      _
    $region155: #{tpu_custom_call.1} parent=1 // pred_check_branch
      %2042 = sbr.rel (0) target = $region157
    $region156: #{tpu_custom_call.1} parent=1 // pred_region
      %2043 = dma.done [#allocation12], 256
    $region157: #{tpu_custom_call.1} parent=1 // pred_fallthru
      _
    %2044 = vsyncpa [#allocation11], 1
    %2045 = vsyncpa [#allocation14], 1
    %2046 = vsyncpa [#allocation17], 1
    %2047 = vsyncpa [#allocation12], 1
  %2048 = vsyncmov [#allocation7]
  %s2049 = vpop.sfrf %2048
  %p2050 = scmp.eq.s32.totalorder %s2049, 0
  %p2051 = pneg %p2050
  %2053 = shalt.err (%p2051)

</llo_original>
